<compile_context>
chip_gen: v5e
topology: v5e:2x2
jax: 0.10.0
libtpu: 0.0.40
codegen_flags: <defaults>
</compile_context>

<pallas_src>
import functools

import jax
import jax.numpy as jnp
from jax.experimental import pallas as pl
from jax.experimental.pallas import tpu as pltpu
from jax.scipy.linalg import block_diag


def _round_up(x, m):
    return ((x + m - 1) // m) * m


# ----------------------------------------------------------------------------
# Slab packing: many tiny weights -> one sublane-stacked VMEM slab.
# Every entry starts on an 8-row (sublane tile) boundary; offsets are static.
# ----------------------------------------------------------------------------
def _pack_slab(entries, width):
    offs, rows, off = {}, [], 0
    for name, a in entries:
        a = jnp.asarray(a, jnp.float32)
        if a.ndim == 1:
            a = a.reshape(1, -1)
        r, c = a.shape
        assert c <= width, (name, c, width)
        rp = _round_up(r, 8)
        rows.append(jnp.pad(a, ((0, rp - r), (0, width - c))))
        offs[name] = (off, r, c)
        off += rp
    return jnp.concatenate(rows, axis=0), offs


def _take(ref, offs, name, full_width=False):
    off, r, c = offs[name]
    if full_width:
        return ref[pl.ds(off, r), :]
    return ref[pl.ds(off, r), pl.ds(0, c)]


# ----------------------------------------------------------------------------
# Fused kernel: 3x(Encoder -> reparameterize -> Decoder) for all phases.
# ----------------------------------------------------------------------------
def _gru_step(h, gi_r, gi_z, gi_n, w_r, w_z, w_n, b_r, b_z, b_n):
    gh_r = jnp.dot(h, w_r, preferred_element_type=jnp.float32) + b_r
    gh_z = jnp.dot(h, w_z, preferred_element_type=jnp.float32) + b_z
    gh_n = jnp.dot(h, w_n, preferred_element_type=jnp.float32) + b_n
    r = jax.nn.sigmoid(gi_r + gh_r)
    z = jax.nn.sigmoid(gi_z + gh_z)
    n = jnp.tanh(gi_n + r * gh_n)
    return (1.0 - z) * n + z * h


def _fused_kernel(data_ref, wa_ref, wb_ref, out_ref, hs_ref, *,
                  dims, d_offs, a_offs, b_offs):
    Bp, T, HP = dims            # HP = num_phases * latent_dim

    A = lambda n, fw=False: _take(wa_ref, a_offs, n, fw)
    Wb = lambda n, fw=False: _take(wb_ref, b_offs, n, fw)
    Dt = lambda n: _take(data_ref, d_offs, n)

    x_all = Dt("x")       # (T*Bp, P*D) step-major, sublane-stacked
    label = Dt("label")   # (Bp, C_tot) phase-stacked one-hot labels
    init = Dt("init")     # (Bp, P*D)   phase-stacked init poses
    eps = Dt("eps")       # (Bp, P*H)   reparameterization noise
    last = Dt("last")     # (Bp, P*H)   per-phase last-valid-frame index (f32)

    # ---------------- Encoder --------------------------------------------
    # Input projections are h-independent: one dot per gate covers all steps
    # and all phases (pose-embedding Linear already folded into the weights).
    gi_r = jnp.dot(x_all, A("e_in_r"), preferred_element_type=jnp.float32) + A("e_in_r_b")
    gi_z = jnp.dot(x_all, A("e_in_z"), preferred_element_type=jnp.float32) + A("e_in_z_b")
    gi_n = jnp.dot(x_all, A("e_in_n"), preferred_element_type=jnp.float32) + A("e_in_n_b")

    w_r, w_z, w_n = A("e_hh_r"), A("e_hh_z"), A("e_hh_n")
    b_r, b_z, b_n = A("e_hh_r_b"), A("e_hh_z_b"), A("e_hh_n_b")

    h = jnp.dot(label, A("e_lab"), preferred_element_type=jnp.float32) + A("e_lab_b")
    h_last = jnp.zeros_like(h)
    for t in range(T):                      # serial recurrence, all phases at once
        lo = t * Bp
        h = _gru_step(h, gi_r[lo:lo + Bp, :], gi_z[lo:lo + Bp, :],
                      gi_n[lo:lo + Bp, :], w_r, w_z, w_n, b_r, b_z, b_n)
        h_last = jnp.where(last == jnp.float32(t), h, h_last)

    mu = jnp.dot(h_last, A("e_mu"), preferred_element_type=jnp.float32) + A("e_mu_b")
    lv = jnp.dot(h_last, A("e_lv"), preferred_element_type=jnp.float32) + A("e_lv_b")

    # ---------------- Reparameterize --------------------------------------
    z_lat = eps * jnp.exp(lv * 0.5) + mu

    # ---------------- Decoder (DecodeWithInitPose) -------------------------
    a_part = (z_lat + jnp.dot(label, A("d_lab"), preferred_element_type=jnp.float32)
              + A("d_lab_b"))
    i_part = (jnp.dot(init, A("d_init"), preferred_element_type=jnp.float32)
              + A("d_init_b"))
    # h0 = per-phase concat([z + lab_emb, init_emb]); built with constant
    # placement matmuls instead of interleaved lane concatenation.
    h0 = (jnp.dot(a_part, Wb("p_top"), preferred_element_type=jnp.float32)
          + jnp.dot(i_part, Wb("p_bot"), preferred_element_type=jnp.float32))

    # Decoder input is h0 at every step -> input gates computed ONCE.
    di_r = jnp.dot(h0, Wb("d_ih_r"), preferred_element_type=jnp.float32) + Wb("d_ih_r_b")
    di_z = jnp.dot(h0, Wb("d_ih_z"), preferred_element_type=jnp.float32) + Wb("d_ih_z_b")
    di_n = jnp.dot(h0, Wb("d_ih_n"), preferred_element_type=jnp.float32) + Wb("d_ih_n_b")
    u_r, u_z, u_n = Wb("d_hh_r"), Wb("d_hh_z"), Wb("d_hh_n")
    c_r, c_z, c_n = Wb("d_hh_r_b"), Wb("d_hh_z_b"), Wb("d_hh_n_b")

    hd = h0
    for t in range(T):
        hd = _gru_step(hd, di_r, di_z, di_n, u_r, u_z, u_n, c_r, c_z, c_n)
        hs_ref[pl.ds(t * Bp, Bp), :] = hd          # sublane-aligned scratch store

    # Output projection hoisted out of the recurrence: one dot, one store.
    h_seq = hs_ref[...]
    dec = (jnp.dot(h_seq, A("d_out", True), preferred_element_type=jnp.float32)
           + A("d_out_b", True))

    # ---------------- Single packed output slab ----------------------------
    out_ref[pl.ds(0, Bp), pl.ds(0, HP)] = mu
    out_ref[pl.ds(Bp, Bp), pl.ds(0, HP)] = lv
    out_ref[pl.ds(2 * Bp, Bp), pl.ds(0, HP)] = z_lat
    out_ref[pl.ds(3 * Bp, hs_ref.shape[0]), :] = dec


# ----------------------------------------------------------------------------
# Parameter construction (deterministic, mirrors the reference Linears/GRUs)
# ----------------------------------------------------------------------------
def _init_linear(key, fan_in, fan_out):
    k1, k2 = jax.random.split(key)
    scale = 1.0 / jnp.sqrt(jnp.float32(fan_in))
    w = jax.random.uniform(k1, (fan_in, fan_out), jnp.float32, -scale, scale)
    b = jax.random.uniform(k2, (fan_out,), jnp.float32, -scale, scale)
    return w, b


def init_phase_params(key, d_in, num_classes, latent_dim):
    H = latent_dim
    keys = jax.random.split(key, 12)
    p = {}
    # Encoder
    p["enc_pose_w"], p["enc_pose_b"] = _init_linear(keys[0], d_in, H)
    p["enc_label_w"], p["enc_label_b"] = _init_linear(keys[1], num_classes, H)
    p["enc_wih"], p["enc_bih"] = _init_linear(keys[2], H, 3 * H)
    p["enc_whh"], p["enc_bhh"] = _init_linear(keys[3], H, 3 * H)
    p["enc_mu_w"], p["enc_mu_b"] = _init_linear(keys[4], H, H)
    p["enc_lv_w"], p["enc_lv_b"] = _init_linear(keys[5], H, H)
    # Decoder (hidden = 2H, matching latent_dim * 2 in the module)
    p["dec_init_w"], p["dec_init_b"] = _init_linear(keys[6], d_in, H)
    p["dec_label_w"], p["dec_label_b"] = _init_linear(keys[7], num_classes, H)
    p["dec_wih"], p["dec_bih"] = _init_linear(keys[8], 2 * H, 6 * H)
    p["dec_whh"], p["dec_bhh"] = _init_linear(keys[9], 2 * H, 6 * H)
    p["dec_out_w"], p["dec_out_b"] = _init_linear(keys[10], 2 * H, d_in)
    return p


# ----------------------------------------------------------------------------
# Model wrapper (forward pass mirroring CVAE3E3D_RNN.forward)
# ----------------------------------------------------------------------------
class CVAE3E3D_RNN_Pallas:
    def __init__(self, phase_names, num_joints, feat_dim, label_sizes,
                 latent_dim, key):
        self.phase_names = tuple(phase_names)
        self.P = len(self.phase_names)
        self.num_joints = num_joints
        self.feat_dim = feat_dim
        self.d_in = num_joints * feat_dim
        self.latent_dim = latent_dim
        self.c_tot = sum(label_sizes[p] for p in self.phase_names)
        self.width_a = max(self.P * latent_dim, self.P * self.d_in)
        self.width_d = max(self.width_a, self.c_tot)

        self.params = {
            ph: init_phase_params(jax.random.fold_in(key, i), self.d_in,
                                  label_sizes[ph], latent_dim)
            for i, ph in enumerate(self.phase_names)
        }
        # One-time constant preprocessing: fold the pose Linear into W_ih,
        # build block-diagonal per-gate slabs, pack into two VMEM slabs.
        self.wa, self.a_offs, self.wb, self.b_offs = self._pack_weights()
        self._forward_jit = jax.jit(self._forward_impl)

    # ---- block-diagonal per-gate weight packing (init-time only) ----------
    def _pack_weights(self):
        H, P = self.latent_dim, self.P
        H2 = 2 * H
        ps = [self.params[ph] for ph in self.phase_names]
        bd = lambda mats: block_diag(*mats)
        cat = lambda vs: jnp.concatenate(vs)

        ent_a = [
            ("e_lab", bd([p["enc_label_w"] for p in ps])),
            ("e_lab_b", cat([p["enc_label_b"] for p in ps])),
        ]
        for g, gn in enumerate("rzn"):
            sl = slice(g * H, (g + 1) * H)
            ent_a += [
                # pose-embedding Linear folded into the GRU input projection
                (f"e_in_{gn}", bd([p["enc_pose_w"] @ p["enc_wih"][:, sl] for p in ps])),
                (f"e_in_{gn}_b", cat([p["enc_pose_b"] @ p["enc_wih"][:, sl]
                                      + p["enc_bih"][sl] for p in ps])),
                (f"e_hh_{gn}", bd([p["enc_whh"][:, sl] for p in ps])),
                (f"e_hh_{gn}_b", cat([p["enc_bhh"][sl] for p in ps])),
            ]
        ent_a += [
            ("e_mu", bd([p["enc_mu_w"] for p in ps])),
            ("e_mu_b", cat([p["enc_mu_b"] for p in ps])),
            ("e_lv", bd([p["enc_lv_w"] for p in ps])),
            ("e_lv_b", cat([p["enc_lv_b"] for p in ps])),
            ("d_lab", bd([p["dec_label_w"] for p in ps])),
            ("d_lab_b", cat([p["dec_label_b"] for p in ps])),
            ("d_init", bd([p["dec_init_w"] for p in ps])),
            ("d_init_b", cat([p["dec_init_b"] for p in ps])),
            ("d_out", bd([p["dec_out_w"] for p in ps])),
            ("d_out_b", cat([p["dec_out_b"] for p in ps])),
        ]
        wa, a_offs = _pack_slab(ent_a, self.width_a)

        eye = jnp.eye(H, dtype=jnp.float32)
        zer = jnp.zeros((H, H), jnp.float32)
        ent_b = [
            ("p_top", bd([jnp.concatenate([eye, zer], axis=1)] * P)),
            ("p_bot", bd([jnp.concatenate([zer, eye], axis=1)] * P)),
        ]
        for g, gn in enumerate("rzn"):
            sl = slice(g * H2, (g + 1) * H2)
            ent_b += [
                (f"d_ih_{gn}", bd([p["dec_wih"][:, sl] for p in ps])),
                (f"d_ih_{gn}_b", cat([p["dec_bih"][sl] for p in ps])),
                (f"d_hh_{gn}", bd([p["dec_whh"][:, sl] for p in ps])),
                (f"d_hh_{gn}_b", cat([p["dec_bhh"][sl] for p in ps])),
            ]
        wb, b_offs = _pack_slab(ent_b, 2 * P * H)
        return wa, a_offs, wb, b_offs

    # ---- jitted forward ----------------------------------------------------
    def _forward_impl(self, wa, wb, batch, key):
        batch = dict(batch)
        phases = self.phase_names
        P, H, D = self.P, self.latent_dim, self.d_in
        B, T, _ = batch[f"{phases[0]}_combined_poses"].shape
        for ph in phases:   # TODO(synk): ragged per-phase sequence lengths unsupported
            assert batch[f"{ph}_combined_poses"].shape[1] == T
        Bp = _round_up(max(B, 8), 8)
        WD, WA = self.width_d, self.width_a

        # get_init_pose: last valid frame of the previous phase's INPUT poses.
        last_idx, init_pose = [], []
        for i, ph in enumerate(phases):
            mask = batch[f"{ph}_src_key_padding_mask"]
            li = jnp.argmax(mask, axis=1) - 1
            li = jnp.where(li < 0, T - 1, li)      # torch -1 indexing wraps
            last_idx.append(li)
            if i == 0:
                ip = jnp.zeros((B, D), jnp.float32)
            else:
                prev = phases[i - 1]
                ip = batch[f"{prev}_combined_poses"][jnp.arange(B), last_idx[i - 1], :]
                ip = ip.reshape(B, D).astype(jnp.float32)
            init_pose.append(ip)
            batch[f"{ph}_init_pose"] = ip

        # ---- pack all per-call data into ONE sublane-stacked slab ----------
        def pad_bp(a):
            return jnp.pad(a, ((0, Bp - a.shape[0]), (0, WD - a.shape[1])))

        x = jnp.concatenate([batch[f"{ph}_combined_poses"].astype(jnp.float32)
                             for ph in phases], axis=-1)            # (B,T,P*D)
        x = jnp.transpose(x, (1, 0, 2))                              # (T,B,P*D)
        x = jnp.pad(x, ((0, 0), (0, Bp - B), (0, WD - P * D))).reshape(T * Bp, WD)

        label = pad_bp(jnp.concatenate(
            [batch[f"{ph}_label"].astype(jnp.float32) for ph in phases], axis=-1))
        init = pad_bp(jnp.concatenate(init_pose, axis=-1))
        eps = pad_bp(jnp.concatenate(
            [jax.random.normal(jax.random.fold_in(key, i), (B, H), jnp.float32)
             for i in range(P)], axis=-1))
        last = pad_bp(jnp.concatenate(
            [jnp.repeat(li.reshape(B, 1).astype(jnp.float32), H, axis=1)
             for li in last_idx], axis=-1))

        data = jnp.concatenate([x, label, init, eps, last], axis=0)
        d_offs = {
            "x": (0, T * Bp, P * D),
            "label": (T * Bp, Bp, self.c_tot),
            "init": (T * Bp + Bp, Bp, P * D),
            "eps": (T * Bp + 2 * Bp, Bp, P * H),
            "last": (T * Bp + 3 * Bp, Bp, P * H),
        }

        out = pl.pallas_call(
            functools.partial(_fused_kernel, dims=(Bp, T, P * H),
                              d_offs=d_offs, a_offs=self.a_offs,
                              b_offs=self.b_offs),
            out_shape=jax.ShapeDtypeStruct((3 * Bp + T * Bp, WA), jnp.float32),
            in_specs=[pl.BlockSpec(memory_space=pltpu.MemorySpace.VMEM)] * 3,
            out_specs=pl.BlockSpec(memory_space=pltpu.MemorySpace.VMEM),
            scratch_shapes=[pltpu.VMEM((T * Bp, 2 * P * H), jnp.float32)],
        )(data, wa, wb)

        mu = out[0:B, :P * H]
        lv = out[Bp:Bp + B, :P * H]
        z = out[2 * Bp:2 * Bp + B, :P * H]
        dec = out[3 * Bp:3 * Bp + T * Bp, :P * D].reshape(T, Bp, P * D)[:, :B, :]
        dec = jnp.transpose(dec, (1, 0, 2))                          # (B,T,P*D)

        for i, ph in enumerate(phases):
            batch[f"{ph}_mu"] = mu[:, i * H:(i + 1) * H]
            batch[f"{ph}_sigma"] = lv[:, i * H:(i + 1) * H]
            batch[f"{ph}_z"] = z[:, i * H:(i + 1) * H]
            batch[f"{ph}_output"] = dec[:, :, i * D:(i + 1) * D].reshape(
                B, T, self.num_joints, self.feat_dim)
        return batch

    def forward(self, batch, seed=0):
        key = jax.random.PRNGKey(seed)
        return self._forward_jit(self.wa, self.wb, batch, key)


# ----------------------------------------------------------------------------
# Main
# ----------------------------------------------------------------------------
if __name__ == "__main__":
    PHASES = ("impa", "glit", "fall")
    B = 2
    T = 8
    NUM_JOINTS = 4
    FEAT_DIM = 3
    D_IN = NUM_JOINTS * FEAT_DIM       # 12
    LATENT_DIM = 16
    LABEL_SIZES = {"impa": 3, "glit": 4, "fall": 5}

    key = jax.random.PRNGKey(0)
    model = CVAE3E3D_RNN_Pallas(PHASES, NUM_JOINTS, FEAT_DIM, LABEL_SIZES,
                                LATENT_DIM, jax.random.fold_in(key, 1000))

    batch = {}
    for i, phase in enumerate(PHASES):
        kp = jax.random.fold_in(key, i)
        k1, k2 = jax.random.split(kp)
        batch[f"{phase}_combined_poses"] = jax.random.normal(
            k1, (B, T, D_IN), dtype=jnp.float32)
        lbl_idx = jax.random.randint(k2, (B,), 0, LABEL_SIZES[phase])
        batch[f"{phase}_label"] = jax.nn.one_hot(
            lbl_idx, LABEL_SIZES[phase], dtype=jnp.float32)
        # padding mask: 0 = valid, 1 = padded (last 2 frames padded)
        mask = jnp.concatenate(
            [jnp.zeros((B, T - 2), jnp.int32), jnp.ones((B, 2), jnp.int32)],
            axis=1)
        batch[f"{phase}_src_key_padding_mask"] = mask

    out_batch = model.forward(batch, seed=0)

    for phase in PHASES:
        jax.block_until_ready(out_batch[f"{phase}_mu"])
        jax.block_until_ready(out_batch[f"{phase}_sigma"])
        jax.block_until_ready(out_batch[f"{phase}_z"])
        jax.block_until_ready(out_batch[f"{phase}_output"])
        assert out_batch[f"{phase}_output"].shape == (B, T, NUM_JOINTS, FEAT_DIM)
        assert out_batch[f"{phase}_mu"].shape == (B, LATENT_DIM)
        assert out_batch[f"{phase}_z"].shape == (B, LATENT_DIM)

    # TODO(synk): compute_loss / generate paths of the reference module are not
    # implemented (forward pass only).
    print("KERNEL_OK")
</pallas_src>

<mosaic_0001>
module attributes {stable_mosaic.version = 11 : i64} {
  func.func @_fused_kernel(%arg0: memref<96x48xf32, #tpu.memory_space<vmem>>, %arg1: memref<624x48xf32, #tpu.memory_space<vmem>>, %arg2: memref<720x96xf32, #tpu.memory_space<vmem>>, %arg3: memref<88x48xf32, #tpu.memory_space<vmem>>, %arg4: memref<64x96xf32, #tpu.memory_space<vmem>>) attributes {dimension_semantics = [], scalar_prefetch = 0 : i64, scratch_operands = 1 : i64, tpu.core_type = #tpu.core_type<tc>} {
    %c0 = arith.constant 0 : index
    %c0_0 = arith.constant 0 : index
    %0 = vector.load %arg0[%c0, %c0_0] : memref<96x48xf32, #tpu.memory_space<vmem>>, vector<64x36xf32>
    %c64 = arith.constant 64 : index
    %c0_1 = arith.constant 0 : index
    %1 = vector.load %arg0[%c64, %c0_1] : memref<96x48xf32, #tpu.memory_space<vmem>>, vector<8x12xf32>
    %c72 = arith.constant 72 : index
    %c0_2 = arith.constant 0 : index
    %2 = vector.load %arg0[%c72, %c0_2] : memref<96x48xf32, #tpu.memory_space<vmem>>, vector<8x36xf32>
    %c80 = arith.constant 80 : index
    %c0_3 = arith.constant 0 : index
    %3 = vector.load %arg0[%c80, %c0_3] : memref<96x48xf32, #tpu.memory_space<vmem>>, vector<8x48xf32>
    %c88 = arith.constant 88 : index
    %c0_4 = arith.constant 0 : index
    %4 = vector.load %arg0[%c88, %c0_4] : memref<96x48xf32, #tpu.memory_space<vmem>>, vector<8x48xf32>
    %c24 = arith.constant 24 : index
    %c0_5 = arith.constant 0 : index
    %5 = vector.load %arg1[%c24, %c0_5] : memref<624x48xf32, #tpu.memory_space<vmem>>, vector<36x48xf32>
    %cst = arith.constant dense<0.000000e+00> : vector<64x48xf32>
    %6 = tpu.matmul %0, %5, %cst {dimension_numbers = #tpu.dot_dimension_numbers<[1], [0], [0], [1], [0, 0, 1, 1], [], []>} : vector<64x36xf32>, vector<36x48xf32>, vector<64x48xf32> -> vector<64x48xf32>
    %c64_6 = arith.constant 64 : index
    %c0_7 = arith.constant 0 : index
    %7 = vector.load %arg1[%c64_6, %c0_7] : memref<624x48xf32, #tpu.memory_space<vmem>>, vector<1x48xf32>
    %8 = vector.broadcast %7 : vector<1x48xf32> to vector<64x48xf32>
    %9 = arith.addf %6, %8 : vector<64x48xf32>
    %c128 = arith.constant 128 : index
    %c0_8 = arith.constant 0 : index
    %10 = vector.load %arg1[%c128, %c0_8] : memref<624x48xf32, #tpu.memory_space<vmem>>, vector<36x48xf32>
    %cst_9 = arith.constant dense<0.000000e+00> : vector<64x48xf32>
    %11 = tpu.matmul %0, %10, %cst_9 {dimension_numbers = #tpu.dot_dimension_numbers<[1], [0], [0], [1], [0, 0, 1, 1], [], []>} : vector<64x36xf32>, vector<36x48xf32>, vector<64x48xf32> -> vector<64x48xf32>
    %c168 = arith.constant 168 : index
    %c0_10 = arith.constant 0 : index
    %12 = vector.load %arg1[%c168, %c0_10] : memref<624x48xf32, #tpu.memory_space<vmem>>, vector<1x48xf32>
    %13 = vector.broadcast %12 : vector<1x48xf32> to vector<64x48xf32>
    %14 = arith.addf %11, %13 : vector<64x48xf32>
    %c232 = arith.constant 232 : index
    %c0_11 = arith.constant 0 : index
    %15 = vector.load %arg1[%c232, %c0_11] : memref<624x48xf32, #tpu.memory_space<vmem>>, vector<36x48xf32>
    %cst_12 = arith.constant dense<0.000000e+00> : vector<64x48xf32>
    %16 = tpu.matmul %0, %15, %cst_12 {dimension_numbers = #tpu.dot_dimension_numbers<[1], [0], [0], [1], [0, 0, 1, 1], [], []>} : vector<64x36xf32>, vector<36x48xf32>, vector<64x48xf32> -> vector<64x48xf32>
    %c272 = arith.constant 272 : index
    %c0_13 = arith.constant 0 : index
    %17 = vector.load %arg1[%c272, %c0_13] : memref<624x48xf32, #tpu.memory_space<vmem>>, vector<1x48xf32>
    %18 = vector.broadcast %17 : vector<1x48xf32> to vector<64x48xf32>
    %19 = arith.addf %16, %18 : vector<64x48xf32>
    %c72_14 = arith.constant 72 : index
    %c0_15 = arith.constant 0 : index
    %20 = vector.load %arg1[%c72_14, %c0_15] : memref<624x48xf32, #tpu.memory_space<vmem>>, vector<48x48xf32>
    %c176 = arith.constant 176 : index
    %c0_16 = arith.constant 0 : index
    %21 = vector.load %arg1[%c176, %c0_16] : memref<624x48xf32, #tpu.memory_space<vmem>>, vector<48x48xf32>
    %c280 = arith.constant 280 : index
    %c0_17 = arith.constant 0 : index
    %22 = vector.load %arg1[%c280, %c0_17] : memref<624x48xf32, #tpu.memory_space<vmem>>, vector<48x48xf32>
    %c120 = arith.constant 120 : index
    %c0_18 = arith.constant 0 : index
    %23 = vector.load %arg1[%c120, %c0_18] : memref<624x48xf32, #tpu.memory_space<vmem>>, vector<1x48xf32>
    %c224 = arith.constant 224 : index
    %c0_19 = arith.constant 0 : index
    %24 = vector.load %arg1[%c224, %c0_19] : memref<624x48xf32, #tpu.memory_space<vmem>>, vector<1x48xf32>
    %c328 = arith.constant 328 : index
    %c0_20 = arith.constant 0 : index
    %25 = vector.load %arg1[%c328, %c0_20] : memref<624x48xf32, #tpu.memory_space<vmem>>, vector<1x48xf32>
    %c0_21 = arith.constant 0 : index
    %c0_22 = arith.constant 0 : index
    %26 = vector.load %arg1[%c0_21, %c0_22] : memref<624x48xf32, #tpu.memory_space<vmem>>, vector<12x48xf32>
    %cst_23 = arith.constant dense<0.000000e+00> : vector<8x48xf32>
    %27 = tpu.matmul %1, %26, %cst_23 {dimension_numbers = #tpu.dot_dimension_numbers<[1], [0], [0], [1], [0, 0, 1, 1], [], []>} : vector<8x12xf32>, vector<12x48xf32>, vector<8x48xf32> -> vector<8x48xf32>
    %c16 = arith.constant 16 : index
    %c0_24 = arith.constant 0 : index
    %28 = vector.load %arg1[%c16, %c0_24] : memref<624x48xf32, #tpu.memory_space<vmem>>, vector<1x48xf32>
    %29 = vector.broadcast %28 : vector<1x48xf32> to vector<8x48xf32>
    %30 = arith.addf %27, %29 : vector<8x48xf32>
    %cst_25 = arith.constant 0.000000e+00 : f32
    %31 = vector.broadcast %cst_25 : f32 to vector<8x48xf32>
    %32 = vector.extract_strided_slice %9 {offsets = [0, 0], sizes = [8, 48], strides = [1, 1]} : vector<64x48xf32> to vector<8x48xf32>
    %33 = vector.extract_strided_slice %14 {offsets = [0, 0], sizes = [8, 48], strides = [1, 1]} : vector<64x48xf32> to vector<8x48xf32>
    %34 = vector.extract_strided_slice %19 {offsets = [0, 0], sizes = [8, 48], strides = [1, 1]} : vector<64x48xf32> to vector<8x48xf32>
    %cst_26 = arith.constant dense<0.000000e+00> : vector<8x48xf32>
    %35 = tpu.matmul %30, %20, %cst_26 {dimension_numbers = #tpu.dot_dimension_numbers<[1], [0], [0], [1], [0, 0, 1, 1], [], []>} : vector<8x48xf32>, vector<48x48xf32>, vector<8x48xf32> -> vector<8x48xf32>
    %36 = vector.broadcast %23 : vector<1x48xf32> to vector<8x48xf32>
    %37 = arith.addf %35, %36 : vector<8x48xf32>
    %cst_27 = arith.constant dense<0.000000e+00> : vector<8x48xf32>
    %38 = tpu.matmul %30, %21, %cst_27 {dimension_numbers = #tpu.dot_dimension_numbers<[1], [0], [0], [1], [0, 0, 1, 1], [], []>} : vector<8x48xf32>, vector<48x48xf32>, vector<8x48xf32> -> vector<8x48xf32>
    %39 = vector.broadcast %24 : vector<1x48xf32> to vector<8x48xf32>
    %40 = arith.addf %38, %39 : vector<8x48xf32>
    %cst_28 = arith.constant dense<0.000000e+00> : vector<8x48xf32>
    %41 = tpu.matmul %30, %22, %cst_28 {dimension_numbers = #tpu.dot_dimension_numbers<[1], [0], [0], [1], [0, 0, 1, 1], [], []>} : vector<8x48xf32>, vector<48x48xf32>, vector<8x48xf32> -> vector<8x48xf32>
    %42 = vector.broadcast %25 : vector<1x48xf32> to vector<8x48xf32>
    %43 = arith.addf %41, %42 : vector<8x48xf32>
    %44 = arith.addf %32, %37 : vector<8x48xf32>
    %45 = arith.negf %44 : vector<8x48xf32>
    %46 = math.exp %45 : vector<8x48xf32>
    %cst_29 = arith.constant 1.000000e+00 : f32
    %47 = vector.broadcast %cst_29 : f32 to vector<8x48xf32>
    %48 = arith.addf %47, %46 : vector<8x48xf32>
    %49 = arith.divf %47, %48 : vector<8x48xf32>
    %50 = arith.addf %33, %40 : vector<8x48xf32>
    %51 = arith.negf %50 : vector<8x48xf32>
    %52 = math.exp %51 : vector<8x48xf32>
    %cst_30 = arith.constant 1.000000e+00 : f32
    %53 = vector.broadcast %cst_30 : f32 to vector<8x48xf32>
    %54 = arith.addf %53, %52 : vector<8x48xf32>
    %55 = arith.divf %53, %54 : vector<8x48xf32>
    %56 = arith.mulf %49, %43 : vector<8x48xf32>
    %57 = arith.addf %34, %56 : vector<8x48xf32>
    %58 = math.tanh %57 : vector<8x48xf32>
    %cst_31 = arith.constant 1.000000e+00 : f32
    %59 = vector.broadcast %cst_31 : f32 to vector<8x48xf32>
    %60 = arith.subf %59, %55 : vector<8x48xf32>
    %61 = arith.mulf %60, %58 : vector<8x48xf32>
    %62 = arith.mulf %55, %30 : vector<8x48xf32>
    %63 = arith.addf %61, %62 : vector<8x48xf32>
    %cst_32 = arith.constant 0.000000e+00 : f32
    %64 = vector.broadcast %cst_32 : f32 to vector<8x48xf32>
    %65 = arith.cmpf oeq, %4, %64 : vector<8x48xf32>
    %66 = arith.select %65, %63, %31 : vector<8x48xi1>, vector<8x48xf32>
    %67 = vector.extract_strided_slice %9 {offsets = [8, 0], sizes = [8, 48], strides = [1, 1]} : vector<64x48xf32> to vector<8x48xf32>
    %68 = vector.extract_strided_slice %14 {offsets = [8, 0], sizes = [8, 48], strides = [1, 1]} : vector<64x48xf32> to vector<8x48xf32>
    %69 = vector.extract_strided_slice %19 {offsets = [8, 0], sizes = [8, 48], strides = [1, 1]} : vector<64x48xf32> to vector<8x48xf32>
    %cst_33 = arith.constant dense<0.000000e+00> : vector<8x48xf32>
    %70 = tpu.matmul %63, %20, %cst_33 {dimension_numbers = #tpu.dot_dimension_numbers<[1], [0], [0], [1], [0, 0, 1, 1], [], []>} : vector<8x48xf32>, vector<48x48xf32>, vector<8x48xf32> -> vector<8x48xf32>
    %71 = vector.broadcast %23 : vector<1x48xf32> to vector<8x48xf32>
    %72 = arith.addf %70, %71 : vector<8x48xf32>
    %cst_34 = arith.constant dense<0.000000e+00> : vector<8x48xf32>
    %73 = tpu.matmul %63, %21, %cst_34 {dimension_numbers = #tpu.dot_dimension_numbers<[1], [0], [0], [1], [0, 0, 1, 1], [], []>} : vector<8x48xf32>, vector<48x48xf32>, vector<8x48xf32> -> vector<8x48xf32>
    %74 = vector.broadcast %24 : vector<1x48xf32> to vector<8x48xf32>
    %75 = arith.addf %73, %74 : vector<8x48xf32>
    %cst_35 = arith.constant dense<0.000000e+00> : vector<8x48xf32>
    %76 = tpu.matmul %63, %22, %cst_35 {dimension_numbers = #tpu.dot_dimension_numbers<[1], [0], [0], [1], [0, 0, 1, 1], [], []>} : vector<8x48xf32>, vector<48x48xf32>, vector<8x48xf32> -> vector<8x48xf32>
    %77 = vector.broadcast %25 : vector<1x48xf32> to vector<8x48xf32>
    %78 = arith.addf %76, %77 : vector<8x48xf32>
    %79 = arith.addf %67, %72 : vector<8x48xf32>
    %80 = arith.negf %79 : vector<8x48xf32>
    %81 = math.exp %80 : vector<8x48xf32>
    %cst_36 = arith.constant 1.000000e+00 : f32
    %82 = vector.broadcast %cst_36 : f32 to vector<8x48xf32>
    %83 = arith.addf %82, %81 : vector<8x48xf32>
    %84 = arith.divf %82, %83 : vector<8x48xf32>
    %85 = arith.addf %68, %75 : vector<8x48xf32>
    %86 = arith.negf %85 : vector<8x48xf32>
    %87 = math.exp %86 : vector<8x48xf32>
    %cst_37 = arith.constant 1.000000e+00 : f32
    %88 = vector.broadcast %cst_37 : f32 to vector<8x48xf32>
    %89 = arith.addf %88, %87 : vector<8x48xf32>
    %90 = arith.divf %88, %89 : vector<8x48xf32>
    %91 = arith.mulf %84, %78 : vector<8x48xf32>
    %92 = arith.addf %69, %91 : vector<8x48xf32>
    %93 = math.tanh %92 : vector<8x48xf32>
    %cst_38 = arith.constant 1.000000e+00 : f32
    %94 = vector.broadcast %cst_38 : f32 to vector<8x48xf32>
    %95 = arith.subf %94, %90 : vector<8x48xf32>
    %96 = arith.mulf %95, %93 : vector<8x48xf32>
    %97 = arith.mulf %90, %63 : vector<8x48xf32>
    %98 = arith.addf %96, %97 : vector<8x48xf32>
    %cst_39 = arith.constant 1.000000e+00 : f32
    %99 = vector.broadcast %cst_39 : f32 to vector<8x48xf32>
    %100 = arith.cmpf oeq, %4, %99 : vector<8x48xf32>
    %101 = arith.select %100, %98, %66 : vector<8x48xi1>, vector<8x48xf32>
    %102 = vector.extract_strided_slice %9 {offsets = [16, 0], sizes = [8, 48], strides = [1, 1]} : vector<64x48xf32> to vector<8x48xf32>
    %103 = vector.extract_strided_slice %14 {offsets = [16, 0], sizes = [8, 48], strides = [1, 1]} : vector<64x48xf32> to vector<8x48xf32>
    %104 = vector.extract_strided_slice %19 {offsets = [16, 0], sizes = [8, 48], strides = [1, 1]} : vector<64x48xf32> to vector<8x48xf32>
    %cst_40 = arith.constant dense<0.000000e+00> : vector<8x48xf32>
    %105 = tpu.matmul %98, %20, %cst_40 {dimension_numbers = #tpu.dot_dimension_numbers<[1], [0], [0], [1], [0, 0, 1, 1], [], []>} : vector<8x48xf32>, vector<48x48xf32>, vector<8x48xf32> -> vector<8x48xf32>
    %106 = vector.broadcast %23 : vector<1x48xf32> to vector<8x48xf32>
    %107 = arith.addf %105, %106 : vector<8x48xf32>
    %cst_41 = arith.constant dense<0.000000e+00> : vector<8x48xf32>
    %108 = tpu.matmul %98, %21, %cst_41 {dimension_numbers = #tpu.dot_dimension_numbers<[1], [0], [0], [1], [0, 0, 1, 1], [], []>} : vector<8x48xf32>, vector<48x48xf32>, vector<8x48xf32> -> vector<8x48xf32>
    %109 = vector.broadcast %24 : vector<1x48xf32> to vector<8x48xf32>
    %110 = arith.addf %108, %109 : vector<8x48xf32>
    %cst_42 = arith.constant dense<0.000000e+00> : vector<8x48xf32>
    %111 = tpu.matmul %98, %22, %cst_42 {dimension_numbers = #tpu.dot_dimension_numbers<[1], [0], [0], [1], [0, 0, 1, 1], [], []>} : vector<8x48xf32>, vector<48x48xf32>, vector<8x48xf32> -> vector<8x48xf32>
    %112 = vector.broadcast %25 : vector<1x48xf32> to vector<8x48xf32>
    %113 = arith.addf %111, %112 : vector<8x48xf32>
    %114 = arith.addf %102, %107 : vector<8x48xf32>
    %115 = arith.negf %114 : vector<8x48xf32>
    %116 = math.exp %115 : vector<8x48xf32>
    %cst_43 = arith.constant 1.000000e+00 : f32
    %117 = vector.broadcast %cst_43 : f32 to vector<8x48xf32>
    %118 = arith.addf %117, %116 : vector<8x48xf32>
    %119 = arith.divf %117, %118 : vector<8x48xf32>
    %120 = arith.addf %103, %110 : vector<8x48xf32>
    %121 = arith.negf %120 : vector<8x48xf32>
    %122 = math.exp %121 : vector<8x48xf32>
    %cst_44 = arith.constant 1.000000e+00 : f32
    %123 = vector.broadcast %cst_44 : f32 to vector<8x48xf32>
    %124 = arith.addf %123, %122 : vector<8x48xf32>
    %125 = arith.divf %123, %124 : vector<8x48xf32>
    %126 = arith.mulf %119, %113 : vector<8x48xf32>
    %127 = arith.addf %104, %126 : vector<8x48xf32>
    %128 = math.tanh %127 : vector<8x48xf32>
    %cst_45 = arith.constant 1.000000e+00 : f32
    %129 = vector.broadcast %cst_45 : f32 to vector<8x48xf32>
    %130 = arith.subf %129, %125 : vector<8x48xf32>
    %131 = arith.mulf %130, %128 : vector<8x48xf32>
    %132 = arith.mulf %125, %98 : vector<8x48xf32>
    %133 = arith.addf %131, %132 : vector<8x48xf32>
    %cst_46 = arith.constant 2.000000e+00 : f32
    %134 = vector.broadcast %cst_46 : f32 to vector<8x48xf32>
    %135 = arith.cmpf oeq, %4, %134 : vector<8x48xf32>
    %136 = arith.select %135, %133, %101 : vector<8x48xi1>, vector<8x48xf32>
    %137 = vector.extract_strided_slice %9 {offsets = [24, 0], sizes = [8, 48], strides = [1, 1]} : vector<64x48xf32> to vector<8x48xf32>
    %138 = vector.extract_strided_slice %14 {offsets = [24, 0], sizes = [8, 48], strides = [1, 1]} : vector<64x48xf32> to vector<8x48xf32>
    %139 = vector.extract_strided_slice %19 {offsets = [24, 0], sizes = [8, 48], strides = [1, 1]} : vector<64x48xf32> to vector<8x48xf32>
    %cst_47 = arith.constant dense<0.000000e+00> : vector<8x48xf32>
    %140 = tpu.matmul %133, %20, %cst_47 {dimension_numbers = #tpu.dot_dimension_numbers<[1], [0], [0], [1], [0, 0, 1, 1], [], []>} : vector<8x48xf32>, vector<48x48xf32>, vector<8x48xf32> -> vector<8x48xf32>
    %141 = vector.broadcast %23 : vector<1x48xf32> to vector<8x48xf32>
    %142 = arith.addf %140, %141 : vector<8x48xf32>
    %cst_48 = arith.constant dense<0.000000e+00> : vector<8x48xf32>
    %143 = tpu.matmul %133, %21, %cst_48 {dimension_numbers = #tpu.dot_dimension_numbers<[1], [0], [0], [1], [0, 0, 1, 1], [], []>} : vector<8x48xf32>, vector<48x48xf32>, vector<8x48xf32> -> vector<8x48xf32>
    %144 = vector.broadcast %24 : vector<1x48xf32> to vector<8x48xf32>
    %145 = arith.addf %143, %144 : vector<8x48xf32>
    %cst_49 = arith.constant dense<0.000000e+00> : vector<8x48xf32>
    %146 = tpu.matmul %133, %22, %cst_49 {dimension_numbers = #tpu.dot_dimension_numbers<[1], [0], [0], [1], [0, 0, 1, 1], [], []>} : vector<8x48xf32>, vector<48x48xf32>, vector<8x48xf32> -> vector<8x48xf32>
    %147 = vector.broadcast %25 : vector<1x48xf32> to vector<8x48xf32>
    %148 = arith.addf %146, %147 : vector<8x48xf32>
    %149 = arith.addf %137, %142 : vector<8x48xf32>
    %150 = arith.negf %149 : vector<8x48xf32>
    %151 = math.exp %150 : vector<8x48xf32>
    %cst_50 = arith.constant 1.000000e+00 : f32
    %152 = vector.broadcast %cst_50 : f32 to vector<8x48xf32>
    %153 = arith.addf %152, %151 : vector<8x48xf32>
    %154 = arith.divf %152, %153 : vector<8x48xf32>
    %155 = arith.addf %138, %145 : vector<8x48xf32>
    %156 = arith.negf %155 : vector<8x48xf32>
    %157 = math.exp %156 : vector<8x48xf32>
    %cst_51 = arith.constant 1.000000e+00 : f32
    %158 = vector.broadcast %cst_51 : f32 to vector<8x48xf32>
    %159 = arith.addf %158, %157 : vector<8x48xf32>
    %160 = arith.divf %158, %159 : vector<8x48xf32>
    %161 = arith.mulf %154, %148 : vector<8x48xf32>
    %162 = arith.addf %139, %161 : vector<8x48xf32>
    %163 = math.tanh %162 : vector<8x48xf32>
    %cst_52 = arith.constant 1.000000e+00 : f32
    %164 = vector.broadcast %cst_52 : f32 to vector<8x48xf32>
    %165 = arith.subf %164, %160 : vector<8x48xf32>
    %166 = arith.mulf %165, %163 : vector<8x48xf32>
    %167 = arith.mulf %160, %133 : vector<8x48xf32>
    %168 = arith.addf %166, %167 : vector<8x48xf32>
    %cst_53 = arith.constant 3.000000e+00 : f32
    %169 = vector.broadcast %cst_53 : f32 to vector<8x48xf32>
    %170 = arith.cmpf oeq, %4, %169 : vector<8x48xf32>
    %171 = arith.select %170, %168, %136 : vector<8x48xi1>, vector<8x48xf32>
    %172 = vector.extract_strided_slice %9 {offsets = [32, 0], sizes = [8, 48], strides = [1, 1]} : vector<64x48xf32> to vector<8x48xf32>
    %173 = vector.extract_strided_slice %14 {offsets = [32, 0], sizes = [8, 48], strides = [1, 1]} : vector<64x48xf32> to vector<8x48xf32>
    %174 = vector.extract_strided_slice %19 {offsets = [32, 0], sizes = [8, 48], strides = [1, 1]} : vector<64x48xf32> to vector<8x48xf32>
    %cst_54 = arith.constant dense<0.000000e+00> : vector<8x48xf32>
    %175 = tpu.matmul %168, %20, %cst_54 {dimension_numbers = #tpu.dot_dimension_numbers<[1], [0], [0], [1], [0, 0, 1, 1], [], []>} : vector<8x48xf32>, vector<48x48xf32>, vector<8x48xf32> -> vector<8x48xf32>
    %176 = vector.broadcast %23 : vector<1x48xf32> to vector<8x48xf32>
    %177 = arith.addf %175, %176 : vector<8x48xf32>
    %cst_55 = arith.constant dense<0.000000e+00> : vector<8x48xf32>
    %178 = tpu.matmul %168, %21, %cst_55 {dimension_numbers = #tpu.dot_dimension_numbers<[1], [0], [0], [1], [0, 0, 1, 1], [], []>} : vector<8x48xf32>, vector<48x48xf32>, vector<8x48xf32> -> vector<8x48xf32>
    %179 = vector.broadcast %24 : vector<1x48xf32> to vector<8x48xf32>
    %180 = arith.addf %178, %179 : vector<8x48xf32>
    %cst_56 = arith.constant dense<0.000000e+00> : vector<8x48xf32>
    %181 = tpu.matmul %168, %22, %cst_56 {dimension_numbers = #tpu.dot_dimension_numbers<[1], [0], [0], [1], [0, 0, 1, 1], [], []>} : vector<8x48xf32>, vector<48x48xf32>, vector<8x48xf32> -> vector<8x48xf32>
    %182 = vector.broadcast %25 : vector<1x48xf32> to vector<8x48xf32>
    %183 = arith.addf %181, %182 : vector<8x48xf32>
    %184 = arith.addf %172, %177 : vector<8x48xf32>
    %185 = arith.negf %184 : vector<8x48xf32>
    %186 = math.exp %185 : vector<8x48xf32>
    %cst_57 = arith.constant 1.000000e+00 : f32
    %187 = vector.broadcast %cst_57 : f32 to vector<8x48xf32>
    %188 = arith.addf %187, %186 : vector<8x48xf32>
    %189 = arith.divf %187, %188 : vector<8x48xf32>
    %190 = arith.addf %173, %180 : vector<8x48xf32>
    %191 = arith.negf %190 : vector<8x48xf32>
    %192 = math.exp %191 : vector<8x48xf32>
    %cst_58 = arith.constant 1.000000e+00 : f32
    %193 = vector.broadcast %cst_58 : f32 to vector<8x48xf32>
    %194 = arith.addf %193, %192 : vector<8x48xf32>
    %195 = arith.divf %193, %194 : vector<8x48xf32>
    %196 = arith.mulf %189, %183 : vector<8x48xf32>
    %197 = arith.addf %174, %196 : vector<8x48xf32>
    %198 = math.tanh %197 : vector<8x48xf32>
    %cst_59 = arith.constant 1.000000e+00 : f32
    %199 = vector.broadcast %cst_59 : f32 to vector<8x48xf32>
    %200 = arith.subf %199, %195 : vector<8x48xf32>
    %201 = arith.mulf %200, %198 : vector<8x48xf32>
    %202 = arith.mulf %195, %168 : vector<8x48xf32>
    %203 = arith.addf %201, %202 : vector<8x48xf32>
    %cst_60 = arith.constant 4.000000e+00 : f32
    %204 = vector.broadcast %cst_60 : f32 to vector<8x48xf32>
    %205 = arith.cmpf oeq, %4, %204 : vector<8x48xf32>
    %206 = arith.select %205, %203, %171 : vector<8x48xi1>, vector<8x48xf32>
    %207 = vector.extract_strided_slice %9 {offsets = [40, 0], sizes = [8, 48], strides = [1, 1]} : vector<64x48xf32> to vector<8x48xf32>
    %208 = vector.extract_strided_slice %14 {offsets = [40, 0], sizes = [8, 48], strides = [1, 1]} : vector<64x48xf32> to vector<8x48xf32>
    %209 = vector.extract_strided_slice %19 {offsets = [40, 0], sizes = [8, 48], strides = [1, 1]} : vector<64x48xf32> to vector<8x48xf32>
    %cst_61 = arith.constant dense<0.000000e+00> : vector<8x48xf32>
    %210 = tpu.matmul %203, %20, %cst_61 {dimension_numbers = #tpu.dot_dimension_numbers<[1], [0], [0], [1], [0, 0, 1, 1], [], []>} : vector<8x48xf32>, vector<48x48xf32>, vector<8x48xf32> -> vector<8x48xf32>
    %211 = vector.broadcast %23 : vector<1x48xf32> to vector<8x48xf32>
    %212 = arith.addf %210, %211 : vector<8x48xf32>
    %cst_62 = arith.constant dense<0.000000e+00> : vector<8x48xf32>
    %213 = tpu.matmul %203, %21, %cst_62 {dimension_numbers = #tpu.dot_dimension_numbers<[1], [0], [0], [1], [0, 0, 1, 1], [], []>} : vector<8x48xf32>, vector<48x48xf32>, vector<8x48xf32> -> vector<8x48xf32>
    %214 = vector.broadcast %24 : vector<1x48xf32> to vector<8x48xf32>
    %215 = arith.addf %213, %214 : vector<8x48xf32>
    %cst_63 = arith.constant dense<0.000000e+00> : vector<8x48xf32>
    %216 = tpu.matmul %203, %22, %cst_63 {dimension_numbers = #tpu.dot_dimension_numbers<[1], [0], [0], [1], [0, 0, 1, 1], [], []>} : vector<8x48xf32>, vector<48x48xf32>, vector<8x48xf32> -> vector<8x48xf32>
    %217 = vector.broadcast %25 : vector<1x48xf32> to vector<8x48xf32>
    %218 = arith.addf %216, %217 : vector<8x48xf32>
    %219 = arith.addf %207, %212 : vector<8x48xf32>
    %220 = arith.negf %219 : vector<8x48xf32>
    %221 = math.exp %220 : vector<8x48xf32>
    %cst_64 = arith.constant 1.000000e+00 : f32
    %222 = vector.broadcast %cst_64 : f32 to vector<8x48xf32>
    %223 = arith.addf %222, %221 : vector<8x48xf32>
    %224 = arith.divf %222, %223 : vector<8x48xf32>
    %225 = arith.addf %208, %215 : vector<8x48xf32>
    %226 = arith.negf %225 : vector<8x48xf32>
    %227 = math.exp %226 : vector<8x48xf32>
    %cst_65 = arith.constant 1.000000e+00 : f32
    %228 = vector.broadcast %cst_65 : f32 to vector<8x48xf32>
    %229 = arith.addf %228, %227 : vector<8x48xf32>
    %230 = arith.divf %228, %229 : vector<8x48xf32>
    %231 = arith.mulf %224, %218 : vector<8x48xf32>
    %232 = arith.addf %209, %231 : vector<8x48xf32>
    %233 = math.tanh %232 : vector<8x48xf32>
    %cst_66 = arith.constant 1.000000e+00 : f32
    %234 = vector.broadcast %cst_66 : f32 to vector<8x48xf32>
    %235 = arith.subf %234, %230 : vector<8x48xf32>
    %236 = arith.mulf %235, %233 : vector<8x48xf32>
    %237 = arith.mulf %230, %203 : vector<8x48xf32>
    %238 = arith.addf %236, %237 : vector<8x48xf32>
    %cst_67 = arith.constant 5.000000e+00 : f32
    %239 = vector.broadcast %cst_67 : f32 to vector<8x48xf32>
    %240 = arith.cmpf oeq, %4, %239 : vector<8x48xf32>
    %241 = arith.select %240, %238, %206 : vector<8x48xi1>, vector<8x48xf32>
    %242 = vector.extract_strided_slice %9 {offsets = [48, 0], sizes = [8, 48], strides = [1, 1]} : vector<64x48xf32> to vector<8x48xf32>
    %243 = vector.extract_strided_slice %14 {offsets = [48, 0], sizes = [8, 48], strides = [1, 1]} : vector<64x48xf32> to vector<8x48xf32>
    %244 = vector.extract_strided_slice %19 {offsets = [48, 0], sizes = [8, 48], strides = [1, 1]} : vector<64x48xf32> to vector<8x48xf32>
    %cst_68 = arith.constant dense<0.000000e+00> : vector<8x48xf32>
    %245 = tpu.matmul %238, %20, %cst_68 {dimension_numbers = #tpu.dot_dimension_numbers<[1], [0], [0], [1], [0, 0, 1, 1], [], []>} : vector<8x48xf32>, vector<48x48xf32>, vector<8x48xf32> -> vector<8x48xf32>
    %246 = vector.broadcast %23 : vector<1x48xf32> to vector<8x48xf32>
    %247 = arith.addf %245, %246 : vector<8x48xf32>
    %cst_69 = arith.constant dense<0.000000e+00> : vector<8x48xf32>
    %248 = tpu.matmul %238, %21, %cst_69 {dimension_numbers = #tpu.dot_dimension_numbers<[1], [0], [0], [1], [0, 0, 1, 1], [], []>} : vector<8x48xf32>, vector<48x48xf32>, vector<8x48xf32> -> vector<8x48xf32>
    %249 = vector.broadcast %24 : vector<1x48xf32> to vector<8x48xf32>
    %250 = arith.addf %248, %249 : vector<8x48xf32>
    %cst_70 = arith.constant dense<0.000000e+00> : vector<8x48xf32>
    %251 = tpu.matmul %238, %22, %cst_70 {dimension_numbers = #tpu.dot_dimension_numbers<[1], [0], [0], [1], [0, 0, 1, 1], [], []>} : vector<8x48xf32>, vector<48x48xf32>, vector<8x48xf32> -> vector<8x48xf32>
    %252 = vector.broadcast %25 : vector<1x48xf32> to vector<8x48xf32>
    %253 = arith.addf %251, %252 : vector<8x48xf32>
    %254 = arith.addf %242, %247 : vector<8x48xf32>
    %255 = arith.negf %254 : vector<8x48xf32>
    %256 = math.exp %255 : vector<8x48xf32>
    %cst_71 = arith.constant 1.000000e+00 : f32
    %257 = vector.broadcast %cst_71 : f32 to vector<8x48xf32>
    %258 = arith.addf %257, %256 : vector<8x48xf32>
    %259 = arith.divf %257, %258 : vector<8x48xf32>
    %260 = arith.addf %243, %250 : vector<8x48xf32>
    %261 = arith.negf %260 : vector<8x48xf32>
    %262 = math.exp %261 : vector<8x48xf32>
    %cst_72 = arith.constant 1.000000e+00 : f32
    %263 = vector.broadcast %cst_72 : f32 to vector<8x48xf32>
    %264 = arith.addf %263, %262 : vector<8x48xf32>
    %265 = arith.divf %263, %264 : vector<8x48xf32>
    %266 = arith.mulf %259, %253 : vector<8x48xf32>
    %267 = arith.addf %244, %266 : vector<8x48xf32>
    %268 = math.tanh %267 : vector<8x48xf32>
    %cst_73 = arith.constant 1.000000e+00 : f32
    %269 = vector.broadcast %cst_73 : f32 to vector<8x48xf32>
    %270 = arith.subf %269, %265 : vector<8x48xf32>
    %271 = arith.mulf %270, %268 : vector<8x48xf32>
    %272 = arith.mulf %265, %238 : vector<8x48xf32>
    %273 = arith.addf %271, %272 : vector<8x48xf32>
    %cst_74 = arith.constant 6.000000e+00 : f32
    %274 = vector.broadcast %cst_74 : f32 to vector<8x48xf32>
    %275 = arith.cmpf oeq, %4, %274 : vector<8x48xf32>
    %276 = arith.select %275, %273, %241 : vector<8x48xi1>, vector<8x48xf32>
    %277 = vector.extract_strided_slice %9 {offsets = [56, 0], sizes = [8, 48], strides = [1, 1]} : vector<64x48xf32> to vector<8x48xf32>
    %278 = vector.extract_strided_slice %14 {offsets = [56, 0], sizes = [8, 48], strides = [1, 1]} : vector<64x48xf32> to vector<8x48xf32>
    %279 = vector.extract_strided_slice %19 {offsets = [56, 0], sizes = [8, 48], strides = [1, 1]} : vector<64x48xf32> to vector<8x48xf32>
    %cst_75 = arith.constant dense<0.000000e+00> : vector<8x48xf32>
    %280 = tpu.matmul %273, %20, %cst_75 {dimension_numbers = #tpu.dot_dimension_numbers<[1], [0], [0], [1], [0, 0, 1, 1], [], []>} : vector<8x48xf32>, vector<48x48xf32>, vector<8x48xf32> -> vector<8x48xf32>
    %281 = vector.broadcast %23 : vector<1x48xf32> to vector<8x48xf32>
    %282 = arith.addf %280, %281 : vector<8x48xf32>
    %cst_76 = arith.constant dense<0.000000e+00> : vector<8x48xf32>
    %283 = tpu.matmul %273, %21, %cst_76 {dimension_numbers = #tpu.dot_dimension_numbers<[1], [0], [0], [1], [0, 0, 1, 1], [], []>} : vector<8x48xf32>, vector<48x48xf32>, vector<8x48xf32> -> vector<8x48xf32>
    %284 = vector.broadcast %24 : vector<1x48xf32> to vector<8x48xf32>
    %285 = arith.addf %283, %284 : vector<8x48xf32>
    %cst_77 = arith.constant dense<0.000000e+00> : vector<8x48xf32>
    %286 = tpu.matmul %273, %22, %cst_77 {dimension_numbers = #tpu.dot_dimension_numbers<[1], [0], [0], [1], [0, 0, 1, 1], [], []>} : vector<8x48xf32>, vector<48x48xf32>, vector<8x48xf32> -> vector<8x48xf32>
    %287 = vector.broadcast %25 : vector<1x48xf32> to vector<8x48xf32>
    %288 = arith.addf %286, %287 : vector<8x48xf32>
    %289 = arith.addf %277, %282 : vector<8x48xf32>
    %290 = arith.negf %289 : vector<8x48xf32>
    %291 = math.exp %290 : vector<8x48xf32>
    %cst_78 = arith.constant 1.000000e+00 : f32
    %292 = vector.broadcast %cst_78 : f32 to vector<8x48xf32>
    %293 = arith.addf %292, %291 : vector<8x48xf32>
    %294 = arith.divf %292, %293 : vector<8x48xf32>
    %295 = arith.addf %278, %285 : vector<8x48xf32>
    %296 = arith.negf %295 : vector<8x48xf32>
    %297 = math.exp %296 : vector<8x48xf32>
    %cst_79 = arith.constant 1.000000e+00 : f32
    %298 = vector.broadcast %cst_79 : f32 to vector<8x48xf32>
    %299 = arith.addf %298, %297 : vector<8x48xf32>
    %300 = arith.divf %298, %299 : vector<8x48xf32>
    %301 = arith.mulf %294, %288 : vector<8x48xf32>
    %302 = arith.addf %279, %301 : vector<8x48xf32>
    %303 = math.tanh %302 : vector<8x48xf32>
    %cst_80 = arith.constant 1.000000e+00 : f32
    %304 = vector.broadcast %cst_80 : f32 to vector<8x48xf32>
    %305 = arith.subf %304, %300 : vector<8x48xf32>
    %306 = arith.mulf %305, %303 : vector<8x48xf32>
    %307 = arith.mulf %300, %273 : vector<8x48xf32>
    %308 = arith.addf %306, %307 : vector<8x48xf32>
    %cst_81 = arith.constant 7.000000e+00 : f32
    %309 = vector.broadcast %cst_81 : f32 to vector<8x48xf32>
    %310 = arith.cmpf oeq, %4, %309 : vector<8x48xf32>
    %311 = arith.select %310, %308, %276 : vector<8x48xi1>, vector<8x48xf32>
    %c336 = arith.constant 336 : index
    %c0_82 = arith.constant 0 : index
    %312 = vector.load %arg1[%c336, %c0_82] : memref<624x48xf32, #tpu.memory_space<vmem>>, vector<48x48xf32>
    %cst_83 = arith.constant dense<0.000000e+00> : vector<8x48xf32>
    %313 = tpu.matmul %311, %312, %cst_83 {dimension_numbers = #tpu.dot_dimension_numbers<[1], [0], [0], [1], [0, 0, 1, 1], [], []>} : vector<8x48xf32>, vector<48x48xf32>, vector<8x48xf32> -> vector<8x48xf32>
    %c384 = arith.constant 384 : index
    %c0_84 = arith.constant 0 : index
    %314 = vector.load %arg1[%c384, %c0_84] : memref<624x48xf32, #tpu.memory_space<vmem>>, vector<1x48xf32>
    %315 = vector.broadcast %314 : vector<1x48xf32> to vector<8x48xf32>
    %316 = arith.addf %313, %315 : vector<8x48xf32>
    %c392 = arith.constant 392 : index
    %c0_85 = arith.constant 0 : index
    %317 = vector.load %arg1[%c392, %c0_85] : memref<624x48xf32, #tpu.memory_space<vmem>>, vector<48x48xf32>
    %cst_86 = arith.constant dense<0.000000e+00> : vector<8x48xf32>
    %318 = tpu.matmul %311, %317, %cst_86 {dimension_numbers = #tpu.dot_dimension_numbers<[1], [0], [0], [1], [0, 0, 1, 1], [], []>} : vector<8x48xf32>, vector<48x48xf32>, vector<8x48xf32> -> vector<8x48xf32>
    %c440 = arith.constant 440 : index
    %c0_87 = arith.constant 0 : index
    %319 = vector.load %arg1[%c440, %c0_87] : memref<624x48xf32, #tpu.memory_space<vmem>>, vector<1x48xf32>
    %320 = vector.broadcast %319 : vector<1x48xf32> to vector<8x48xf32>
    %321 = arith.addf %318, %320 : vector<8x48xf32>
    %cst_88 = arith.constant 5.000000e-01 : f32
    %322 = vector.broadcast %cst_88 : f32 to vector<8x48xf32>
    %323 = arith.mulf %321, %322 : vector<8x48xf32>
    %324 = math.exp %323 : vector<8x48xf32>
    %325 = arith.mulf %3, %324 : vector<8x48xf32>
    %326 = arith.addf %325, %316 : vector<8x48xf32>
    %c448 = arith.constant 448 : index
    %c0_89 = arith.constant 0 : index
    %327 = vector.load %arg1[%c448, %c0_89] : memref<624x48xf32, #tpu.memory_space<vmem>>, vector<12x48xf32>
    %cst_90 = arith.constant dense<0.000000e+00> : vector<8x48xf32>
    %328 = tpu.matmul %1, %327, %cst_90 {dimension_numbers = #tpu.dot_dimension_numbers<[1], [0], [0], [1], [0, 0, 1, 1], [], []>} : vector<8x12xf32>, vector<12x48xf32>, vector<8x48xf32> -> vector<8x48xf32>
    %329 = arith.addf %326, %328 : vector<8x48xf32>
    %c464 = arith.constant 464 : index
    %c0_91 = arith.constant 0 : index
    %330 = vector.load %arg1[%c464, %c0_91] : memref<624x48xf32, #tpu.memory_space<vmem>>, vector<1x48xf32>
    %331 = vector.broadcast %330 : vector<1x48xf32> to vector<8x48xf32>
    %332 = arith.addf %329, %331 : vector<8x48xf32>
    %c472 = arith.constant 472 : index
    %c0_92 = arith.constant 0 : index
    %333 = vector.load %arg1[%c472, %c0_92] : memref<624x48xf32, #tpu.memory_space<vmem>>, vector<36x48xf32>
    %cst_93 = arith.constant dense<0.000000e+00> : vector<8x48xf32>
    %334 = tpu.matmul %2, %333, %cst_93 {dimension_numbers = #tpu.dot_dimension_numbers<[1], [0], [0], [1], [0, 0, 1, 1], [], []>} : vector<8x36xf32>, vector<36x48xf32>, vector<8x48xf32> -> vector<8x48xf32>
    %c512 = arith.constant 512 : index
    %c0_94 = arith.constant 0 : index
    %335 = vector.load %arg1[%c512, %c0_94] : memref<624x48xf32, #tpu.memory_space<vmem>>, vector<1x48xf32>
    %336 = vector.broadcast %335 : vector<1x48xf32> to vector<8x48xf32>
    %337 = arith.addf %334, %336 : vector<8x48xf32>
    %c0_95 = arith.constant 0 : index
    %c0_96 = arith.constant 0 : index
    %338 = vector.load %arg2[%c0_95, %c0_96] : memref<720x96xf32, #tpu.memory_space<vmem>>, vector<48x96xf32>
    %cst_97 = arith.constant dense<0.000000e+00> : vector<8x96xf32>
    %339 = tpu.matmul %332, %338, %cst_97 {dimension_numbers = #tpu.dot_dimension_numbers<[1], [0], [0], [1], [0, 0, 1, 1], [], []>} : vector<8x48xf32>, vector<48x96xf32>, vector<8x96xf32> -> vector<8x96xf32>
    %c48 = arith.constant 48 : index
    %c0_98 = arith.constant 0 : index
    %340 = vector.load %arg2[%c48, %c0_98] : memref<720x96xf32, #tpu.memory_space<vmem>>, vector<48x96xf32>
    %cst_99 = arith.constant dense<0.000000e+00> : vector<8x96xf32>
    %341 = tpu.matmul %337, %340, %cst_99 {dimension_numbers = #tpu.dot_dimension_numbers<[1], [0], [0], [1], [0, 0, 1, 1], [], []>} : vector<8x48xf32>, vector<48x96xf32>, vector<8x96xf32> -> vector<8x96xf32>
    %342 = arith.addf %339, %341 : vector<8x96xf32>
    %c96 = arith.constant 96 : index
    %c0_100 = arith.constant 0 : index
    %343 = vector.load %arg2[%c96, %c0_100] : memref<720x96xf32, #tpu.memory_space<vmem>>, vector<96x96xf32>
    %cst_101 = arith.constant dense<0.000000e+00> : vector<8x96xf32>
    %344 = tpu.matmul %342, %343, %cst_101 {dimension_numbers = #tpu.dot_dimension_numbers<[1], [0], [0], [1], [0, 0, 1, 1], [], []>} : vector<8x96xf32>, vector<96x96xf32>, vector<8x96xf32> -> vector<8x96xf32>
    %c192 = arith.constant 192 : index
    %c0_102 = arith.constant 0 : index
    %345 = vector.load %arg2[%c192, %c0_102] : memref<720x96xf32, #tpu.memory_space<vmem>>, vector<1x96xf32>
    %346 = vector.broadcast %345 : vector<1x96xf32> to vector<8x96xf32>
    %347 = arith.addf %344, %346 : vector<8x96xf32>
    %c304 = arith.constant 304 : index
    %c0_103 = arith.constant 0 : index
    %348 = vector.load %arg2[%c304, %c0_103] : memref<720x96xf32, #tpu.memory_space<vmem>>, vector<96x96xf32>
    %cst_104 = arith.constant dense<0.000000e+00> : vector<8x96xf32>
    %349 = tpu.matmul %342, %348, %cst_104 {dimension_numbers = #tpu.dot_dimension_numbers<[1], [0], [0], [1], [0, 0, 1, 1], [], []>} : vector<8x96xf32>, vector<96x96xf32>, vector<8x96xf32> -> vector<8x96xf32>
    %c400 = arith.constant 400 : index
    %c0_105 = arith.constant 0 : index
    %350 = vector.load %arg2[%c400, %c0_105] : memref<720x96xf32, #tpu.memory_space<vmem>>, vector<1x96xf32>
    %351 = vector.broadcast %350 : vector<1x96xf32> to vector<8x96xf32>
    %352 = arith.addf %349, %351 : vector<8x96xf32>
    %c512_106 = arith.constant 512 : index
    %c0_107 = arith.constant 0 : index
    %353 = vector.load %arg2[%c512_106, %c0_107] : memref<720x96xf32, #tpu.memory_space<vmem>>, vector<96x96xf32>
    %cst_108 = arith.constant dense<0.000000e+00> : vector<8x96xf32>
    %354 = tpu.matmul %342, %353, %cst_108 {dimension_numbers = #tpu.dot_dimension_numbers<[1], [0], [0], [1], [0, 0, 1, 1], [], []>} : vector<8x96xf32>, vector<96x96xf32>, vector<8x96xf32> -> vector<8x96xf32>
    %c608 = arith.constant 608 : index
    %c0_109 = arith.constant 0 : index
    %355 = vector.load %arg2[%c608, %c0_109] : memref<720x96xf32, #tpu.memory_space<vmem>>, vector<1x96xf32>
    %356 = vector.broadcast %355 : vector<1x96xf32> to vector<8x96xf32>
    %357 = arith.addf %354, %356 : vector<8x96xf32>
    %c200 = arith.constant 200 : index
    %c0_110 = arith.constant 0 : index
    %358 = vector.load %arg2[%c200, %c0_110] : memref<720x96xf32, #tpu.memory_space<vmem>>, vector<96x96xf32>
    %c408 = arith.constant 408 : index
    %c0_111 = arith.constant 0 : index
    %359 = vector.load %arg2[%c408, %c0_111] : memref<720x96xf32, #tpu.memory_space<vmem>>, vector<96x96xf32>
    %c616 = arith.constant 616 : index
    %c0_112 = arith.constant 0 : index
    %360 = vector.load %arg2[%c616, %c0_112] : memref<720x96xf32, #tpu.memory_space<vmem>>, vector<96x96xf32>
    %c296 = arith.constant 296 : index
    %c0_113 = arith.constant 0 : index
    %361 = vector.load %arg2[%c296, %c0_113] : memref<720x96xf32, #tpu.memory_space<vmem>>, vector<1x96xf32>
    %c504 = arith.constant 504 : index
    %c0_114 = arith.constant 0 : index
    %362 = vector.load %arg2[%c504, %c0_114] : memref<720x96xf32, #tpu.memory_space<vmem>>, vector<1x96xf32>
    %c712 = arith.constant 712 : index
    %c0_115 = arith.constant 0 : index
    %363 = vector.load %arg2[%c712, %c0_115] : memref<720x96xf32, #tpu.memory_space<vmem>>, vector<1x96xf32>
    %cst_116 = arith.constant dense<0.000000e+00> : vector<8x96xf32>
    %364 = tpu.matmul %342, %358, %cst_116 {dimension_numbers = #tpu.dot_dimension_numbers<[1], [0], [0], [1], [0, 0, 1, 1], [], []>} : vector<8x96xf32>, vector<96x96xf32>, vector<8x96xf32> -> vector<8x96xf32>
    %365 = vector.broadcast %361 : vector<1x96xf32> to vector<8x96xf32>
    %366 = arith.addf %364, %365 : vector<8x96xf32>
    %cst_117 = arith.constant dense<0.000000e+00> : vector<8x96xf32>
    %367 = tpu.matmul %342, %359, %cst_117 {dimension_numbers = #tpu.dot_dimension_numbers<[1], [0], [0], [1], [0, 0, 1, 1], [], []>} : vector<8x96xf32>, vector<96x96xf32>, vector<8x96xf32> -> vector<8x96xf32>
    %368 = vector.broadcast %362 : vector<1x96xf32> to vector<8x96xf32>
    %369 = arith.addf %367, %368 : vector<8x96xf32>
    %cst_118 = arith.constant dense<0.000000e+00> : vector<8x96xf32>
    %370 = tpu.matmul %342, %360, %cst_118 {dimension_numbers = #tpu.dot_dimension_numbers<[1], [0], [0], [1], [0, 0, 1, 1], [], []>} : vector<8x96xf32>, vector<96x96xf32>, vector<8x96xf32> -> vector<8x96xf32>
    %371 = vector.broadcast %363 : vector<1x96xf32> to vector<8x96xf32>
    %372 = arith.addf %370, %371 : vector<8x96xf32>
    %373 = arith.addf %347, %366 : vector<8x96xf32>
    %374 = arith.negf %373 : vector<8x96xf32>
    %375 = math.exp %374 : vector<8x96xf32>
    %cst_119 = arith.constant 1.000000e+00 : f32
    %376 = vector.broadcast %cst_119 : f32 to vector<8x96xf32>
    %377 = arith.addf %376, %375 : vector<8x96xf32>
    %378 = arith.divf %376, %377 : vector<8x96xf32>
    %379 = arith.addf %352, %369 : vector<8x96xf32>
    %380 = arith.negf %379 : vector<8x96xf32>
    %381 = math.exp %380 : vector<8x96xf32>
    %cst_120 = arith.constant 1.000000e+00 : f32
    %382 = vector.broadcast %cst_120 : f32 to vector<8x96xf32>
    %383 = arith.addf %382, %381 : vector<8x96xf32>
    %384 = arith.divf %382, %383 : vector<8x96xf32>
    %385 = arith.mulf %378, %372 : vector<8x96xf32>
    %386 = arith.addf %357, %385 : vector<8x96xf32>
    %387 = math.tanh %386 : vector<8x96xf32>
    %cst_121 = arith.constant 1.000000e+00 : f32
    %388 = vector.broadcast %cst_121 : f32 to vector<8x96xf32>
    %389 = arith.subf %388, %384 : vector<8x96xf32>
    %390 = arith.mulf %389, %387 : vector<8x96xf32>
    %391 = arith.mulf %384, %342 : vector<8x96xf32>
    %392 = arith.addf %390, %391 : vector<8x96xf32>
    %c0_122 = arith.constant 0 : index
    %c0_123 = arith.constant 0 : index
    %393 = vector.load %arg4[%c0_122, %c0_123] : memref<64x96xf32, #tpu.memory_space<vmem>>, vector<8x96xf32>
    tpu.vector_store %arg4[%c0_122, %c0_123], %392 {strides = array<i32>} : memref<64x96xf32, #tpu.memory_space<vmem>>, vector<8x96xf32>,
    %cst_124 = arith.constant dense<0.000000e+00> : vector<8x96xf32>
    %394 = tpu.matmul %392, %358, %cst_124 {dimension_numbers = #tpu.dot_dimension_numbers<[1], [0], [0], [1], [0, 0, 1, 1], [], []>} : vector<8x96xf32>, vector<96x96xf32>, vector<8x96xf32> -> vector<8x96xf32>
    %395 = vector.broadcast %361 : vector<1x96xf32> to vector<8x96xf32>
    %396 = arith.addf %394, %395 : vector<8x96xf32>
    %cst_125 = arith.constant dense<0.000000e+00> : vector<8x96xf32>
    %397 = tpu.matmul %392, %359, %cst_125 {dimension_numbers = #tpu.dot_dimension_numbers<[1], [0], [0], [1], [0, 0, 1, 1], [], []>} : vector<8x96xf32>, vector<96x96xf32>, vector<8x96xf32> -> vector<8x96xf32>
    %398 = vector.broadcast %362 : vector<1x96xf32> to vector<8x96xf32>
    %399 = arith.addf %397, %398 : vector<8x96xf32>
    %cst_126 = arith.constant dense<0.000000e+00> : vector<8x96xf32>
    %400 = tpu.matmul %392, %360, %cst_126 {dimension_numbers = #tpu.dot_dimension_numbers<[1], [0], [0], [1], [0, 0, 1, 1], [], []>} : vector<8x96xf32>, vector<96x96xf32>, vector<8x96xf32> -> vector<8x96xf32>
    %401 = vector.broadcast %363 : vector<1x96xf32> to vector<8x96xf32>
    %402 = arith.addf %400, %401 : vector<8x96xf32>
    %403 = arith.addf %347, %396 : vector<8x96xf32>
    %404 = arith.negf %403 : vector<8x96xf32>
    %405 = math.exp %404 : vector<8x96xf32>
    %cst_127 = arith.constant 1.000000e+00 : f32
    %406 = vector.broadcast %cst_127 : f32 to vector<8x96xf32>
    %407 = arith.addf %406, %405 : vector<8x96xf32>
    %408 = arith.divf %406, %407 : vector<8x96xf32>
    %409 = arith.addf %352, %399 : vector<8x96xf32>
    %410 = arith.negf %409 : vector<8x96xf32>
    %411 = math.exp %410 : vector<8x96xf32>
    %cst_128 = arith.constant 1.000000e+00 : f32
    %412 = vector.broadcast %cst_128 : f32 to vector<8x96xf32>
    %413 = arith.addf %412, %411 : vector<8x96xf32>
    %414 = arith.divf %412, %413 : vector<8x96xf32>
    %415 = arith.mulf %408, %402 : vector<8x96xf32>
    %416 = arith.addf %357, %415 : vector<8x96xf32>
    %417 = math.tanh %416 : vector<8x96xf32>
    %cst_129 = arith.constant 1.000000e+00 : f32
    %418 = vector.broadcast %cst_129 : f32 to vector<8x96xf32>
    %419 = arith.subf %418, %414 : vector<8x96xf32>
    %420 = arith.mulf %419, %417 : vector<8x96xf32>
    %421 = arith.mulf %414, %392 : vector<8x96xf32>
    %422 = arith.addf %420, %421 : vector<8x96xf32>
    %c8 = arith.constant 8 : index
    %c0_130 = arith.constant 0 : index
    %423 = vector.load %arg4[%c8, %c0_130] : memref<64x96xf32, #tpu.memory_space<vmem>>, vector<8x96xf32>
    tpu.vector_store %arg4[%c8, %c0_130], %422 {strides = array<i32>} : memref<64x96xf32, #tpu.memory_space<vmem>>, vector<8x96xf32>,
    %cst_131 = arith.constant dense<0.000000e+00> : vector<8x96xf32>
    %424 = tpu.matmul %422, %358, %cst_131 {dimension_numbers = #tpu.dot_dimension_numbers<[1], [0], [0], [1], [0, 0, 1, 1], [], []>} : vector<8x96xf32>, vector<96x96xf32>, vector<8x96xf32> -> vector<8x96xf32>
    %425 = vector.broadcast %361 : vector<1x96xf32> to vector<8x96xf32>
    %426 = arith.addf %424, %425 : vector<8x96xf32>
    %cst_132 = arith.constant dense<0.000000e+00> : vector<8x96xf32>
    %427 = tpu.matmul %422, %359, %cst_132 {dimension_numbers = #tpu.dot_dimension_numbers<[1], [0], [0], [1], [0, 0, 1, 1], [], []>} : vector<8x96xf32>, vector<96x96xf32>, vector<8x96xf32> -> vector<8x96xf32>
    %428 = vector.broadcast %362 : vector<1x96xf32> to vector<8x96xf32>
    %429 = arith.addf %427, %428 : vector<8x96xf32>
    %cst_133 = arith.constant dense<0.000000e+00> : vector<8x96xf32>
    %430 = tpu.matmul %422, %360, %cst_133 {dimension_numbers = #tpu.dot_dimension_numbers<[1], [0], [0], [1], [0, 0, 1, 1], [], []>} : vector<8x96xf32>, vector<96x96xf32>, vector<8x96xf32> -> vector<8x96xf32>
    %431 = vector.broadcast %363 : vector<1x96xf32> to vector<8x96xf32>
    %432 = arith.addf %430, %431 : vector<8x96xf32>
    %433 = arith.addf %347, %426 : vector<8x96xf32>
    %434 = arith.negf %433 : vector<8x96xf32>
    %435 = math.exp %434 : vector<8x96xf32>
    %cst_134 = arith.constant 1.000000e+00 : f32
    %436 = vector.broadcast %cst_134 : f32 to vector<8x96xf32>
    %437 = arith.addf %436, %435 : vector<8x96xf32>
    %438 = arith.divf %436, %437 : vector<8x96xf32>
    %439 = arith.addf %352, %429 : vector<8x96xf32>
    %440 = arith.negf %439 : vector<8x96xf32>
    %441 = math.exp %440 : vector<8x96xf32>
    %cst_135 = arith.constant 1.000000e+00 : f32
    %442 = vector.broadcast %cst_135 : f32 to vector<8x96xf32>
    %443 = arith.addf %442, %441 : vector<8x96xf32>
    %444 = arith.divf %442, %443 : vector<8x96xf32>
    %445 = arith.mulf %438, %432 : vector<8x96xf32>
    %446 = arith.addf %357, %445 : vector<8x96xf32>
    %447 = math.tanh %446 : vector<8x96xf32>
    %cst_136 = arith.constant 1.000000e+00 : f32
    %448 = vector.broadcast %cst_136 : f32 to vector<8x96xf32>
    %449 = arith.subf %448, %444 : vector<8x96xf32>
    %450 = arith.mulf %449, %447 : vector<8x96xf32>
    %451 = arith.mulf %444, %422 : vector<8x96xf32>
    %452 = arith.addf %450, %451 : vector<8x96xf32>
    %c16_137 = arith.constant 16 : index
    %c0_138 = arith.constant 0 : index
    %453 = vector.load %arg4[%c16_137, %c0_138] : memref<64x96xf32, #tpu.memory_space<vmem>>, vector<8x96xf32>
    tpu.vector_store %arg4[%c16_137, %c0_138], %452 {strides = array<i32>} : memref<64x96xf32, #tpu.memory_space<vmem>>, vector<8x96xf32>,
    %cst_139 = arith.constant dense<0.000000e+00> : vector<8x96xf32>
    %454 = tpu.matmul %452, %358, %cst_139 {dimension_numbers = #tpu.dot_dimension_numbers<[1], [0], [0], [1], [0, 0, 1, 1], [], []>} : vector<8x96xf32>, vector<96x96xf32>, vector<8x96xf32> -> vector<8x96xf32>
    %455 = vector.broadcast %361 : vector<1x96xf32> to vector<8x96xf32>
    %456 = arith.addf %454, %455 : vector<8x96xf32>
    %cst_140 = arith.constant dense<0.000000e+00> : vector<8x96xf32>
    %457 = tpu.matmul %452, %359, %cst_140 {dimension_numbers = #tpu.dot_dimension_numbers<[1], [0], [0], [1], [0, 0, 1, 1], [], []>} : vector<8x96xf32>, vector<96x96xf32>, vector<8x96xf32> -> vector<8x96xf32>
    %458 = vector.broadcast %362 : vector<1x96xf32> to vector<8x96xf32>
    %459 = arith.addf %457, %458 : vector<8x96xf32>
    %cst_141 = arith.constant dense<0.000000e+00> : vector<8x96xf32>
    %460 = tpu.matmul %452, %360, %cst_141 {dimension_numbers = #tpu.dot_dimension_numbers<[1], [0], [0], [1], [0, 0, 1, 1], [], []>} : vector<8x96xf32>, vector<96x96xf32>, vector<8x96xf32> -> vector<8x96xf32>
    %461 = vector.broadcast %363 : vector<1x96xf32> to vector<8x96xf32>
    %462 = arith.addf %460, %461 : vector<8x96xf32>
    %463 = arith.addf %347, %456 : vector<8x96xf32>
    %464 = arith.negf %463 : vector<8x96xf32>
    %465 = math.exp %464 : vector<8x96xf32>
    %cst_142 = arith.constant 1.000000e+00 : f32
    %466 = vector.broadcast %cst_142 : f32 to vector<8x96xf32>
    %467 = arith.addf %466, %465 : vector<8x96xf32>
    %468 = arith.divf %466, %467 : vector<8x96xf32>
    %469 = arith.addf %352, %459 : vector<8x96xf32>
    %470 = arith.negf %469 : vector<8x96xf32>
    %471 = math.exp %470 : vector<8x96xf32>
    %cst_143 = arith.constant 1.000000e+00 : f32
    %472 = vector.broadcast %cst_143 : f32 to vector<8x96xf32>
    %473 = arith.addf %472, %471 : vector<8x96xf32>
    %474 = arith.divf %472, %473 : vector<8x96xf32>
    %475 = arith.mulf %468, %462 : vector<8x96xf32>
    %476 = arith.addf %357, %475 : vector<8x96xf32>
    %477 = math.tanh %476 : vector<8x96xf32>
    %cst_144 = arith.constant 1.000000e+00 : f32
    %478 = vector.broadcast %cst_144 : f32 to vector<8x96xf32>
    %479 = arith.subf %478, %474 : vector<8x96xf32>
    %480 = arith.mulf %479, %477 : vector<8x96xf32>
    %481 = arith.mulf %474, %452 : vector<8x96xf32>
    %482 = arith.addf %480, %481 : vector<8x96xf32>
    %c24_145 = arith.constant 24 : index
    %c0_146 = arith.constant 0 : index
    %483 = vector.load %arg4[%c24_145, %c0_146] : memref<64x96xf32, #tpu.memory_space<vmem>>, vector<8x96xf32>
    tpu.vector_store %arg4[%c24_145, %c0_146], %482 {strides = array<i32>} : memref<64x96xf32, #tpu.memory_space<vmem>>, vector<8x96xf32>,
    %cst_147 = arith.constant dense<0.000000e+00> : vector<8x96xf32>
    %484 = tpu.matmul %482, %358, %cst_147 {dimension_numbers = #tpu.dot_dimension_numbers<[1], [0], [0], [1], [0, 0, 1, 1], [], []>} : vector<8x96xf32>, vector<96x96xf32>, vector<8x96xf32> -> vector<8x96xf32>
    %485 = vector.broadcast %361 : vector<1x96xf32> to vector<8x96xf32>
    %486 = arith.addf %484, %485 : vector<8x96xf32>
    %cst_148 = arith.constant dense<0.000000e+00> : vector<8x96xf32>
    %487 = tpu.matmul %482, %359, %cst_148 {dimension_numbers = #tpu.dot_dimension_numbers<[1], [0], [0], [1], [0, 0, 1, 1], [], []>} : vector<8x96xf32>, vector<96x96xf32>, vector<8x96xf32> -> vector<8x96xf32>
    %488 = vector.broadcast %362 : vector<1x96xf32> to vector<8x96xf32>
    %489 = arith.addf %487, %488 : vector<8x96xf32>
    %cst_149 = arith.constant dense<0.000000e+00> : vector<8x96xf32>
    %490 = tpu.matmul %482, %360, %cst_149 {dimension_numbers = #tpu.dot_dimension_numbers<[1], [0], [0], [1], [0, 0, 1, 1], [], []>} : vector<8x96xf32>, vector<96x96xf32>, vector<8x96xf32> -> vector<8x96xf32>
    %491 = vector.broadcast %363 : vector<1x96xf32> to vector<8x96xf32>
    %492 = arith.addf %490, %491 : vector<8x96xf32>
    %493 = arith.addf %347, %486 : vector<8x96xf32>
    %494 = arith.negf %493 : vector<8x96xf32>
    %495 = math.exp %494 : vector<8x96xf32>
    %cst_150 = arith.constant 1.000000e+00 : f32
    %496 = vector.broadcast %cst_150 : f32 to vector<8x96xf32>
    %497 = arith.addf %496, %495 : vector<8x96xf32>
    %498 = arith.divf %496, %497 : vector<8x96xf32>
    %499 = arith.addf %352, %489 : vector<8x96xf32>
    %500 = arith.negf %499 : vector<8x96xf32>
    %501 = math.exp %500 : vector<8x96xf32>
    %cst_151 = arith.constant 1.000000e+00 : f32
    %502 = vector.broadcast %cst_151 : f32 to vector<8x96xf32>
    %503 = arith.addf %502, %501 : vector<8x96xf32>
    %504 = arith.divf %502, %503 : vector<8x96xf32>
    %505 = arith.mulf %498, %492 : vector<8x96xf32>
    %506 = arith.addf %357, %505 : vector<8x96xf32>
    %507 = math.tanh %506 : vector<8x96xf32>
    %cst_152 = arith.constant 1.000000e+00 : f32
    %508 = vector.broadcast %cst_152 : f32 to vector<8x96xf32>
    %509 = arith.subf %508, %504 : vector<8x96xf32>
    %510 = arith.mulf %509, %507 : vector<8x96xf32>
    %511 = arith.mulf %504, %482 : vector<8x96xf32>
    %512 = arith.addf %510, %511 : vector<8x96xf32>
    %c32 = arith.constant 32 : index
    %c0_153 = arith.constant 0 : index
    %513 = vector.load %arg4[%c32, %c0_153] : memref<64x96xf32, #tpu.memory_space<vmem>>, vector<8x96xf32>
    tpu.vector_store %arg4[%c32, %c0_153], %512 {strides = array<i32>} : memref<64x96xf32, #tpu.memory_space<vmem>>, vector<8x96xf32>,
    %cst_154 = arith.constant dense<0.000000e+00> : vector<8x96xf32>
    %514 = tpu.matmul %512, %358, %cst_154 {dimension_numbers = #tpu.dot_dimension_numbers<[1], [0], [0], [1], [0, 0, 1, 1], [], []>} : vector<8x96xf32>, vector<96x96xf32>, vector<8x96xf32> -> vector<8x96xf32>
    %515 = vector.broadcast %361 : vector<1x96xf32> to vector<8x96xf32>
    %516 = arith.addf %514, %515 : vector<8x96xf32>
    %cst_155 = arith.constant dense<0.000000e+00> : vector<8x96xf32>
    %517 = tpu.matmul %512, %359, %cst_155 {dimension_numbers = #tpu.dot_dimension_numbers<[1], [0], [0], [1], [0, 0, 1, 1], [], []>} : vector<8x96xf32>, vector<96x96xf32>, vector<8x96xf32> -> vector<8x96xf32>
    %518 = vector.broadcast %362 : vector<1x96xf32> to vector<8x96xf32>
    %519 = arith.addf %517, %518 : vector<8x96xf32>
    %cst_156 = arith.constant dense<0.000000e+00> : vector<8x96xf32>
    %520 = tpu.matmul %512, %360, %cst_156 {dimension_numbers = #tpu.dot_dimension_numbers<[1], [0], [0], [1], [0, 0, 1, 1], [], []>} : vector<8x96xf32>, vector<96x96xf32>, vector<8x96xf32> -> vector<8x96xf32>
    %521 = vector.broadcast %363 : vector<1x96xf32> to vector<8x96xf32>
    %522 = arith.addf %520, %521 : vector<8x96xf32>
    %523 = arith.addf %347, %516 : vector<8x96xf32>
    %524 = arith.negf %523 : vector<8x96xf32>
    %525 = math.exp %524 : vector<8x96xf32>
    %cst_157 = arith.constant 1.000000e+00 : f32
    %526 = vector.broadcast %cst_157 : f32 to vector<8x96xf32>
    %527 = arith.addf %526, %525 : vector<8x96xf32>
    %528 = arith.divf %526, %527 : vector<8x96xf32>
    %529 = arith.addf %352, %519 : vector<8x96xf32>
    %530 = arith.negf %529 : vector<8x96xf32>
    %531 = math.exp %530 : vector<8x96xf32>
    %cst_158 = arith.constant 1.000000e+00 : f32
    %532 = vector.broadcast %cst_158 : f32 to vector<8x96xf32>
    %533 = arith.addf %532, %531 : vector<8x96xf32>
    %534 = arith.divf %532, %533 : vector<8x96xf32>
    %535 = arith.mulf %528, %522 : vector<8x96xf32>
    %536 = arith.addf %357, %535 : vector<8x96xf32>
    %537 = math.tanh %536 : vector<8x96xf32>
    %cst_159 = arith.constant 1.000000e+00 : f32
    %538 = vector.broadcast %cst_159 : f32 to vector<8x96xf32>
    %539 = arith.subf %538, %534 : vector<8x96xf32>
    %540 = arith.mulf %539, %537 : vector<8x96xf32>
    %541 = arith.mulf %534, %512 : vector<8x96xf32>
    %542 = arith.addf %540, %541 : vector<8x96xf32>
    %c40 = arith.constant 40 : index
    %c0_160 = arith.constant 0 : index
    %543 = vector.load %arg4[%c40, %c0_160] : memref<64x96xf32, #tpu.memory_space<vmem>>, vector<8x96xf32>
    tpu.vector_store %arg4[%c40, %c0_160], %542 {strides = array<i32>} : memref<64x96xf32, #tpu.memory_space<vmem>>, vector<8x96xf32>,
    %cst_161 = arith.constant dense<0.000000e+00> : vector<8x96xf32>
    %544 = tpu.matmul %542, %358, %cst_161 {dimension_numbers = #tpu.dot_dimension_numbers<[1], [0], [0], [1], [0, 0, 1, 1], [], []>} : vector<8x96xf32>, vector<96x96xf32>, vector<8x96xf32> -> vector<8x96xf32>
    %545 = vector.broadcast %361 : vector<1x96xf32> to vector<8x96xf32>
    %546 = arith.addf %544, %545 : vector<8x96xf32>
    %cst_162 = arith.constant dense<0.000000e+00> : vector<8x96xf32>
    %547 = tpu.matmul %542, %359, %cst_162 {dimension_numbers = #tpu.dot_dimension_numbers<[1], [0], [0], [1], [0, 0, 1, 1], [], []>} : vector<8x96xf32>, vector<96x96xf32>, vector<8x96xf32> -> vector<8x96xf32>
    %548 = vector.broadcast %362 : vector<1x96xf32> to vector<8x96xf32>
    %549 = arith.addf %547, %548 : vector<8x96xf32>
    %cst_163 = arith.constant dense<0.000000e+00> : vector<8x96xf32>
    %550 = tpu.matmul %542, %360, %cst_163 {dimension_numbers = #tpu.dot_dimension_numbers<[1], [0], [0], [1], [0, 0, 1, 1], [], []>} : vector<8x96xf32>, vector<96x96xf32>, vector<8x96xf32> -> vector<8x96xf32>
    %551 = vector.broadcast %363 : vector<1x96xf32> to vector<8x96xf32>
    %552 = arith.addf %550, %551 : vector<8x96xf32>
    %553 = arith.addf %347, %546 : vector<8x96xf32>
    %554 = arith.negf %553 : vector<8x96xf32>
    %555 = math.exp %554 : vector<8x96xf32>
    %cst_164 = arith.constant 1.000000e+00 : f32
    %556 = vector.broadcast %cst_164 : f32 to vector<8x96xf32>
    %557 = arith.addf %556, %555 : vector<8x96xf32>
    %558 = arith.divf %556, %557 : vector<8x96xf32>
    %559 = arith.addf %352, %549 : vector<8x96xf32>
    %560 = arith.negf %559 : vector<8x96xf32>
    %561 = math.exp %560 : vector<8x96xf32>
    %cst_165 = arith.constant 1.000000e+00 : f32
    %562 = vector.broadcast %cst_165 : f32 to vector<8x96xf32>
    %563 = arith.addf %562, %561 : vector<8x96xf32>
    %564 = arith.divf %562, %563 : vector<8x96xf32>
    %565 = arith.mulf %558, %552 : vector<8x96xf32>
    %566 = arith.addf %357, %565 : vector<8x96xf32>
    %567 = math.tanh %566 : vector<8x96xf32>
    %cst_166 = arith.constant 1.000000e+00 : f32
    %568 = vector.broadcast %cst_166 : f32 to vector<8x96xf32>
    %569 = arith.subf %568, %564 : vector<8x96xf32>
    %570 = arith.mulf %569, %567 : vector<8x96xf32>
    %571 = arith.mulf %564, %542 : vector<8x96xf32>
    %572 = arith.addf %570, %571 : vector<8x96xf32>
    %c48_167 = arith.constant 48 : index
    %c0_168 = arith.constant 0 : index
    %573 = vector.load %arg4[%c48_167, %c0_168] : memref<64x96xf32, #tpu.memory_space<vmem>>, vector<8x96xf32>
    tpu.vector_store %arg4[%c48_167, %c0_168], %572 {strides = array<i32>} : memref<64x96xf32, #tpu.memory_space<vmem>>, vector<8x96xf32>,
    %cst_169 = arith.constant dense<0.000000e+00> : vector<8x96xf32>
    %574 = tpu.matmul %572, %358, %cst_169 {dimension_numbers = #tpu.dot_dimension_numbers<[1], [0], [0], [1], [0, 0, 1, 1], [], []>} : vector<8x96xf32>, vector<96x96xf32>, vector<8x96xf32> -> vector<8x96xf32>
    %575 = vector.broadcast %361 : vector<1x96xf32> to vector<8x96xf32>
    %576 = arith.addf %574, %575 : vector<8x96xf32>
    %cst_170 = arith.constant dense<0.000000e+00> : vector<8x96xf32>
    %577 = tpu.matmul %572, %359, %cst_170 {dimension_numbers = #tpu.dot_dimension_numbers<[1], [0], [0], [1], [0, 0, 1, 1], [], []>} : vector<8x96xf32>, vector<96x96xf32>, vector<8x96xf32> -> vector<8x96xf32>
    %578 = vector.broadcast %362 : vector<1x96xf32> to vector<8x96xf32>
    %579 = arith.addf %577, %578 : vector<8x96xf32>
    %cst_171 = arith.constant dense<0.000000e+00> : vector<8x96xf32>
    %580 = tpu.matmul %572, %360, %cst_171 {dimension_numbers = #tpu.dot_dimension_numbers<[1], [0], [0], [1], [0, 0, 1, 1], [], []>} : vector<8x96xf32>, vector<96x96xf32>, vector<8x96xf32> -> vector<8x96xf32>
    %581 = vector.broadcast %363 : vector<1x96xf32> to vector<8x96xf32>
    %582 = arith.addf %580, %581 : vector<8x96xf32>
    %583 = arith.addf %347, %576 : vector<8x96xf32>
    %584 = arith.negf %583 : vector<8x96xf32>
    %585 = math.exp %584 : vector<8x96xf32>
    %cst_172 = arith.constant 1.000000e+00 : f32
    %586 = vector.broadcast %cst_172 : f32 to vector<8x96xf32>
    %587 = arith.addf %586, %585 : vector<8x96xf32>
    %588 = arith.divf %586, %587 : vector<8x96xf32>
    %589 = arith.addf %352, %579 : vector<8x96xf32>
    %590 = arith.negf %589 : vector<8x96xf32>
    %591 = math.exp %590 : vector<8x96xf32>
    %cst_173 = arith.constant 1.000000e+00 : f32
    %592 = vector.broadcast %cst_173 : f32 to vector<8x96xf32>
    %593 = arith.addf %592, %591 : vector<8x96xf32>
    %594 = arith.divf %592, %593 : vector<8x96xf32>
    %595 = arith.mulf %588, %582 : vector<8x96xf32>
    %596 = arith.addf %357, %595 : vector<8x96xf32>
    %597 = math.tanh %596 : vector<8x96xf32>
    %cst_174 = arith.constant 1.000000e+00 : f32
    %598 = vector.broadcast %cst_174 : f32 to vector<8x96xf32>
    %599 = arith.subf %598, %594 : vector<8x96xf32>
    %600 = arith.mulf %599, %597 : vector<8x96xf32>
    %601 = arith.mulf %594, %572 : vector<8x96xf32>
    %602 = arith.addf %600, %601 : vector<8x96xf32>
    %c56 = arith.constant 56 : index
    %c0_175 = arith.constant 0 : index
    %603 = vector.load %arg4[%c56, %c0_175] : memref<64x96xf32, #tpu.memory_space<vmem>>, vector<8x96xf32>
    tpu.vector_store %arg4[%c56, %c0_175], %602 {strides = array<i32>} : memref<64x96xf32, #tpu.memory_space<vmem>>, vector<8x96xf32>,
    %c0_176 = arith.constant 0 : index
    %c0_177 = arith.constant 0 : index
    %604 = vector.load %arg4[%c0_176, %c0_177] : memref<64x96xf32, #tpu.memory_space<vmem>>, vector<64x96xf32>
    %c520 = arith.constant 520 : index
    %c0_178 = arith.constant 0 : index
    %605 = vector.load %arg1[%c520, %c0_178] : memref<624x48xf32, #tpu.memory_space<vmem>>, vector<96x48xf32>
    %cst_179 = arith.constant dense<0.000000e+00> : vector<64x48xf32>
    %606 = tpu.matmul %604, %605, %cst_179 {dimension_numbers = #tpu.dot_dimension_numbers<[1], [0], [0], [1], [0, 0, 1, 1], [], []>} : vector<64x96xf32>, vector<96x48xf32>, vector<64x48xf32> -> vector<64x48xf32>
    %c616_180 = arith.constant 616 : index
    %c0_181 = arith.constant 0 : index
    %607 = vector.load %arg1[%c616_180, %c0_181] : memref<624x48xf32, #tpu.memory_space<vmem>>, vector<1x48xf32>
    %608 = vector.broadcast %607 : vector<1x48xf32> to vector<64x48xf32>
    %609 = arith.addf %606, %608 : vector<64x48xf32>
    %c0_182 = arith.constant 0 : index
    %c0_183 = arith.constant 0 : index
    %610 = vector.load %arg3[%c0_182, %c0_183] : memref<88x48xf32, #tpu.memory_space<vmem>>, vector<8x48xf32>
    tpu.vector_store %arg3[%c0_182, %c0_183], %316 {strides = array<i32>} : memref<88x48xf32, #tpu.memory_space<vmem>>, vector<8x48xf32>,
    %c8_184 = arith.constant 8 : index
    %c0_185 = arith.constant 0 : index
    %611 = vector.load %arg3[%c8_184, %c0_185] : memref<88x48xf32, #tpu.memory_space<vmem>>, vector<8x48xf32>
    tpu.vector_store %arg3[%c8_184, %c0_185], %321 {strides = array<i32>} : memref<88x48xf32, #tpu.memory_space<vmem>>, vector<8x48xf32>,
    %c16_186 = arith.constant 16 : index
    %c0_187 = arith.constant 0 : index
    %612 = vector.load %arg3[%c16_186, %c0_187] : memref<88x48xf32, #tpu.memory_space<vmem>>, vector<8x48xf32>
    tpu.vector_store %arg3[%c16_186, %c0_187], %326 {strides = array<i32>} : memref<88x48xf32, #tpu.memory_space<vmem>>, vector<8x48xf32>,
    %c24_188 = arith.constant 24 : index
    %c0_189 = arith.constant 0 : index
    %613 = vector.load %arg3[%c24_188, %c0_189] : memref<88x48xf32, #tpu.memory_space<vmem>>, vector<64x48xf32>
    tpu.vector_store %arg3[%c24_188, %c0_189], %609 {strides = array<i32>} : memref<88x48xf32, #tpu.memory_space<vmem>>, vector<64x48xf32>,
    return
  }
}

</mosaic_0001>

<llo_original>
// kernel: _forward_impl.1
$region0: #{_forward_impl.1}
  #allocation0 [shape = 'u32[]', space=smem, size = 0x4, offset = 0x4, fixed_abs, tag = 'smem constant byte address 0x4 - core index']
  #allocation1 [shape = 'u32[72,128]{1,0:T(1,128)}', space=vmem, size = 0x9000, scoped, tag = 'internal scratch']
  #allocation2 [shape = 'f32[64,96]{1,0:T(8,128)}', space=vmem, size = 0x8000, scoped, tag = 'scratch operand']
  %s0 = inlined_call_operand.vmem [shape: f32[96,48], index: 0, kind: input, shape index: {}]
  %s1 = inlined_call_operand.vmem [shape: f32[624,48], index: 1, kind: input, shape index: {}]
  %s2 = inlined_call_operand.vmem [shape: f32[720,96], index: 2, kind: input, shape index: {}]
  %s3 = inlined_call_operand.vmem [shape: f32[88,48], index: 3, kind: output, shape index: {}]
  %s4 = sld [smem:[#allocation0]]
  $region22: #{_forward_impl.1} parent=0
    _
  %s6 = ssub.s32 1, %s4
  %s7 = scalar_select 0, %s6, %s4
  // Predicated region
  $region2: #{_forward_impl.1} parent=0 // pred_check
    _
  $region3: #{_forward_impl.1} parent=0 // pred_check_branch
    %9 = sbr.rel (0) target = $region5
  $region4: #{_forward_impl.1} parent=0 // pred_region
    _
  $region5: #{_forward_impl.1} parent=0 // pred_fallthru
    _
  // Predicated region
  $region6: #{_forward_impl.1} parent=0 // pred_check
    _
  $region7: #{_forward_impl.1} parent=0 // pred_check_branch
    %11 = sbr.rel (0) target = $region9
  $region8: #{_forward_impl.1} parent=0 // pred_region
    _
  $region9: #{_forward_impl.1} parent=0 // pred_fallthru
    _
  // Predicated region
  $region10: #{_forward_impl.1} parent=0 // pred_check
    _
  $region11: #{_forward_impl.1} parent=0 // pred_check_branch
    %13 = sbr.rel (0) target = $region13
  $region12: #{_forward_impl.1} parent=0 // pred_region
    _
  $region13: #{_forward_impl.1} parent=0 // pred_fallthru
    _
  %v14 = vld [vmem:[%s0] sm:$0xff]
  %v15 = vld [vmem:[%s0 + $0x8] sm:$0xff]
  %v16 = vld [vmem:[%s0 + $0x10] sm:$0xff]
  %v17 = vld [vmem:[%s0 + $0x18] sm:$0xff]
  %v18 = vld [vmem:[%s0 + $0x20] sm:$0xff]
  %v19 = vld [vmem:[%s0 + $0x28] sm:$0xff]
  %v20 = vld [vmem:[%s0 + $0x30] sm:$0xff]
  %v21 = vld [vmem:[%s0 + $0x38] sm:$0xff]
  %v22 = vld [vmem:[%s0 + $0x40] sm:$0xff]
  %v23 = vld [vmem:[%s0 + $0x48] sm:$0xff]
  %v24 = vld [vmem:[%s0 + $0x50] sm:$0xff]
  %v25 = vld [vmem:[%s0 + $0x58] sm:$0xff]
  %v26 = vld [vmem:[%s1 + $0x18] sm:$0xff]
  %v27 = vld [vmem:[%s1 + $0x20] sm:$0xff]
  %v28 = vld [vmem:[%s1 + $0x28] sm:$0xff]
  %v29 = vld [vmem:[%s1 + $0x30] sm:$0xff]
  %v30 = vld [vmem:[%s1 + $0x38] sm:$0xf]
  %v31 = vld [vmem:[%s1 + $0x40] sm:$0x1]
  %v32 = vperm.slane %v31, 0
  %vm33 = vcmask 293888
  %v35 = vsel %vm33, %v14, 0
  %v38 = vsel %vm33, %v15, 0
  %v41 = vsel %vm33, %v16, 0
  %v44 = vsel %vm33, %v17, 0
  %v47 = vsel %vm33, %v18, 0
  %v50 = vsel %vm33, %v19, 0
  %v53 = vsel %vm33, %v20, 0
  %v56 = vsel %vm33, %v21, 0
  %vm58 = vcmask 1043456
  %v60 = vsel %vm58, %v30, 0
  %62 = vmatpush.msra.mxu0 0.0
  %63 = vmatpush.msra.mxu0 0.0
  %64 = vmatpush.msra.mxu0 0.0
  %65 = vmatpush.msra.mxu0 0.0
  %66 = vmatpush.msra.mxu0 0.0
  %67 = vmatpush.msra.mxu0 0.0
  %68 = vmatpush.msra.mxu0 0.0
  %69 = vmatpush.msra.mxu0 0.0
  %70 = vmatpush.msra.mxu0 0.0
  %71 = vmatpush.msra.mxu0 0.0
  %72 = vmatpush.msra.mxu0 0.0
  %73 = vmatpush.msra.mxu0 %v60
  %74 = vmatpush.msra.mxu0 %v29
  %75 = vmatpush.msra.mxu0 %v28
  %76 = vmatpush.msra.mxu0 %v27
  %77 = vmatpush.msra.mxu0 %v26
  %78 = vmatmul.f32.gmra.mxu0 %v35
  %v79 = vpop.f32.mrf.mxu0
  %v80 = vadd.f32 %v32, %v79
  %81 = vmatmul.f32.gmra.mxu0 %v38
  %v82 = vpop.f32.mrf.mxu0
  %v83 = vadd.f32 %v32, %v82
  %84 = vmatmul.f32.gmra.mxu0 %v41
  %v85 = vpop.f32.mrf.mxu0
  %v86 = vadd.f32 %v32, %v85
  %87 = vmatmul.f32.gmra.mxu0 %v44
  %v88 = vpop.f32.mrf.mxu0
  %v89 = vadd.f32 %v32, %v88
  %90 = vmatmul.f32.gmra.mxu0 %v47
  %v91 = vpop.f32.mrf.mxu0
  %v92 = vadd.f32 %v32, %v91
  %93 = vmatmul.f32.gmra.mxu0 %v50
  %v94 = vpop.f32.mrf.mxu0
  %v95 = vadd.f32 %v32, %v94
  %96 = vmatmul.f32.gmra.mxu0 %v53
  %v97 = vpop.f32.mrf.mxu0
  %v98 = vadd.f32 %v32, %v97
  %99 = vmatmul.f32.gmra.mxu0 %v56
  %v100 = vpop.f32.mrf.mxu0
  %v101 = vadd.f32 %v32, %v100
  %102 = vdwg.mxu0
  %v103 = vld [vmem:[%s1 + $0x80] sm:$0xff]
  %v104 = vld [vmem:[%s1 + $0x88] sm:$0xff]
  %v105 = vld [vmem:[%s1 + $0x90] sm:$0xff]
  %v106 = vld [vmem:[%s1 + $0x98] sm:$0xff]
  %v107 = vld [vmem:[%s1 + $0xa0] sm:$0xf]
  %v108 = vld [vmem:[%s1 + $0xa8] sm:$0x1]
  %v109 = vperm.slane %v108, 0
  %v111 = vsel %vm58, %v107, 0
  %113 = vmatpush.msra.mxu0 0.0
  %114 = vmatpush.msra.mxu0 0.0
  %115 = vmatpush.msra.mxu0 0.0
  %116 = vmatpush.msra.mxu0 0.0
  %117 = vmatpush.msra.mxu0 0.0
  %118 = vmatpush.msra.mxu0 0.0
  %119 = vmatpush.msra.mxu0 0.0
  %120 = vmatpush.msra.mxu0 0.0
  %121 = vmatpush.msra.mxu0 0.0
  %122 = vmatpush.msra.mxu0 0.0
  %123 = vmatpush.msra.mxu0 0.0
  %124 = vmatpush.msra.mxu0 %v111
  %125 = vmatpush.msra.mxu0 %v106
  %126 = vmatpush.msra.mxu0 %v105
  %127 = vmatpush.msra.mxu0 %v104
  %128 = vmatpush.msra.mxu0 %v103
  %129 = vmatmul.f32.gmra.mxu0 %v35
  %v130 = vpop.f32.mrf.mxu0
  %v131 = vadd.f32 %v109, %v130
  %132 = vmatmul.f32.gmra.mxu0 %v38
  %v133 = vpop.f32.mrf.mxu0
  %v134 = vadd.f32 %v109, %v133
  %135 = vmatmul.f32.gmra.mxu0 %v41
  %v136 = vpop.f32.mrf.mxu0
  %v137 = vadd.f32 %v109, %v136
  %138 = vmatmul.f32.gmra.mxu0 %v44
  %v139 = vpop.f32.mrf.mxu0
  %v140 = vadd.f32 %v109, %v139
  %141 = vmatmul.f32.gmra.mxu0 %v47
  %v142 = vpop.f32.mrf.mxu0
  %v143 = vadd.f32 %v109, %v142
  %144 = vmatmul.f32.gmra.mxu0 %v50
  %v145 = vpop.f32.mrf.mxu0
  %v146 = vadd.f32 %v109, %v145
  %147 = vmatmul.f32.gmra.mxu0 %v53
  %v148 = vpop.f32.mrf.mxu0
  %v149 = vadd.f32 %v109, %v148
  %150 = vmatmul.f32.gmra.mxu0 %v56
  %v151 = vpop.f32.mrf.mxu0
  %v152 = vadd.f32 %v109, %v151
  %153 = vdwg.mxu0
  %v154 = vld [vmem:[%s1 + $0xe8] sm:$0xff]
  %v155 = vld [vmem:[%s1 + $0xf0] sm:$0xff]
  %v156 = vld [vmem:[%s1 + $0xf8] sm:$0xff]
  %v157 = vld [vmem:[%s1 + $0x100] sm:$0xff]
  %v158 = vld [vmem:[%s1 + $0x108] sm:$0xf]
  %v159 = vld [vmem:[%s1 + $0x110] sm:$0x1]
  %v160 = vperm.slane %v159, 0
  %v162 = vsel %vm58, %v158, 0
  %164 = vmatpush.msra.mxu0 0.0
  %165 = vmatpush.msra.mxu0 0.0
  %166 = vmatpush.msra.mxu0 0.0
  %167 = vmatpush.msra.mxu0 0.0
  %168 = vmatpush.msra.mxu0 0.0
  %169 = vmatpush.msra.mxu0 0.0
  %170 = vmatpush.msra.mxu0 0.0
  %171 = vmatpush.msra.mxu0 0.0
  %172 = vmatpush.msra.mxu0 0.0
  %173 = vmatpush.msra.mxu0 0.0
  %174 = vmatpush.msra.mxu0 0.0
  %175 = vmatpush.msra.mxu0 %v162
  %176 = vmatpush.msra.mxu0 %v157
  %177 = vmatpush.msra.mxu0 %v156
  %178 = vmatpush.msra.mxu0 %v155
  %179 = vmatpush.msra.mxu0 %v154
  %180 = vmatmul.f32.gmra.mxu0 %v35
  %v181 = vpop.f32.mrf.mxu0
  %v182 = vadd.f32 %v160, %v181
  %183 = vmatmul.f32.gmra.mxu0 %v38
  %v184 = vpop.f32.mrf.mxu0
  %v185 = vadd.f32 %v160, %v184
  %186 = vmatmul.f32.gmra.mxu0 %v41
  %v187 = vpop.f32.mrf.mxu0
  %v188 = vadd.f32 %v160, %v187
  %189 = vmatmul.f32.gmra.mxu0 %v44
  %v190 = vpop.f32.mrf.mxu0
  %v191 = vadd.f32 %v160, %v190
  %192 = vmatmul.f32.gmra.mxu0 %v47
  %v193 = vpop.f32.mrf.mxu0
  %v194 = vadd.f32 %v160, %v193
  %195 = vmatmul.f32.gmra.mxu0 %v50
  %v196 = vpop.f32.mrf.mxu0
  %v197 = vadd.f32 %v160, %v196
  %198 = vmatmul.f32.gmra.mxu0 %v53
  %v199 = vpop.f32.mrf.mxu0
  %v200 = vadd.f32 %v160, %v199
  %201 = vmatmul.f32.gmra.mxu0 %v56
  %v202 = vpop.f32.mrf.mxu0
  %v203 = vadd.f32 %v160, %v202
  %204 = vdwg.mxu0
  %v205 = vld [vmem:[%s1 + $0x48] sm:$0xff]
  %v206 = vld [vmem:[%s1 + $0x50] sm:$0xff]
  %v207 = vld [vmem:[%s1 + $0x58] sm:$0xff]
  %v208 = vld [vmem:[%s1 + $0x60] sm:$0xff]
  %v209 = vld [vmem:[%s1 + $0x68] sm:$0xff]
  %v210 = vld [vmem:[%s1 + $0x70] sm:$0xff]
  %v211 = vld [vmem:[%s1 + $0xb0] sm:$0xff]
  %v212 = vld [vmem:[%s1 + $0xb8] sm:$0xff]
  %v213 = vld [vmem:[%s1 + $0xc0] sm:$0xff]
  %v214 = vld [vmem:[%s1 + $0xc8] sm:$0xff]
  %v215 = vld [vmem:[%s1 + $0xd0] sm:$0xff]
  %v216 = vld [vmem:[%s1 + $0xd8] sm:$0xff]
  %v217 = vld [vmem:[%s1 + $0x118] sm:$0xff]
  %v218 = vld [vmem:[%s1 + $0x120] sm:$0xff]
  %v219 = vld [vmem:[%s1 + $0x128] sm:$0xff]
  %v220 = vld [vmem:[%s1 + $0x130] sm:$0xff]
  %v221 = vld [vmem:[%s1 + $0x138] sm:$0xff]
  %v222 = vld [vmem:[%s1 + $0x140] sm:$0xff]
  %v223 = vld [vmem:[%s1 + $0x78] sm:$0x1]
  %v224 = vld [vmem:[%s1 + $0xe0] sm:$0x1]
  %v225 = vld [vmem:[%s1 + $0x148] sm:$0x1]
  %v226 = vld [vmem:[%s1] sm:$0xff]
  %v227 = vld [vmem:[%s1 + $0x8] sm:$0xf]
  %v228 = vld [vmem:[%s1 + $0x10] sm:$0x1]
  %v229 = vperm.slane %v228, 0
  %vm230 = vcmask 97280
  %v232 = vsel %vm230, %v22, 0
  %v235 = vsel %vm58, %v227, 0
  %237 = vmatpush.msra.mxu0 0.0
  %238 = vmatpush.msra.mxu0 0.0
  %239 = vmatpush.msra.mxu0 0.0
  %240 = vmatpush.msra.mxu0 0.0
  %241 = vmatpush.msra.mxu0 0.0
  %242 = vmatpush.msra.mxu0 0.0
  %243 = vmatpush.msra.mxu0 0.0
  %244 = vmatpush.msra.mxu0 0.0
  %245 = vmatpush.msra.mxu0 0.0
  %246 = vmatpush.msra.mxu0 0.0
  %247 = vmatpush.msra.mxu0 0.0
  %248 = vmatpush.msra.mxu0 0.0
  %249 = vmatpush.msra.mxu0 0.0
  %250 = vmatpush.msra.mxu0 0.0
  %251 = vmatpush.msra.mxu0 %v235
  %252 = vmatpush.msra.mxu0 %v226
  %253 = vmatmul.f32.gmra.mxu0 %v232
  %v254 = vpop.f32.mrf.mxu0
  %v255 = vadd.f32 %v229, %v254
  %256 = vdwg.mxu0
  %v257 = vperm.slane %v223, 0
  %vm258 = vcmask 392192
  %v260 = vsel %vm258, %v255, 0
  %262 = vmatpush.msra.mxu0 0.0
  %263 = vmatpush.msra.mxu0 0.0
  %264 = vmatpush.msra.mxu0 0.0
  %265 = vmatpush.msra.mxu0 0.0
  %266 = vmatpush.msra.mxu0 0.0
  %267 = vmatpush.msra.mxu0 0.0
  %268 = vmatpush.msra.mxu0 0.0
  %269 = vmatpush.msra.mxu0 0.0
  %270 = vmatpush.msra.mxu0 0.0
  %271 = vmatpush.msra.mxu0 0.0
  %272 = vmatpush.msra.mxu0 %v210
  %273 = vmatpush.msra.mxu0 %v209
  %274 = vmatpush.msra.mxu0 %v208
  %275 = vmatpush.msra.mxu0 %v207
  %276 = vmatpush.msra.mxu0 %v206
  %277 = vmatpush.msra.mxu0 %v205
  %278 = vmatmul.f32.gmra.mxu0 %v260
  %v279 = vpop.f32.mrf.mxu0
  %v280 = vadd.f32 %v257, %v279
  %281 = vdwg.mxu0
  %v282 = vperm.slane %v224, 0
  %283 = vmatpush.msra.mxu0 0.0
  %284 = vmatpush.msra.mxu0 0.0
  %285 = vmatpush.msra.mxu0 0.0
  %286 = vmatpush.msra.mxu0 0.0
  %287 = vmatpush.msra.mxu0 0.0
  %288 = vmatpush.msra.mxu0 0.0
  %289 = vmatpush.msra.mxu0 0.0
  %290 = vmatpush.msra.mxu0 0.0
  %291 = vmatpush.msra.mxu0 0.0
  %292 = vmatpush.msra.mxu0 0.0
  %293 = vmatpush.msra.mxu0 %v216
  %294 = vmatpush.msra.mxu0 %v215
  %295 = vmatpush.msra.mxu0 %v214
  %296 = vmatpush.msra.mxu0 %v213
  %297 = vmatpush.msra.mxu0 %v212
  %298 = vmatpush.msra.mxu0 %v211
  %299 = vmatmul.f32.gmra.mxu0 %v260
  %v300 = vpop.f32.mrf.mxu0
  %v301 = vadd.f32 %v282, %v300
  %302 = vdwg.mxu0
  %v303 = vperm.slane %v225, 0
  %304 = vmatpush.msra.mxu0 0.0
  %305 = vmatpush.msra.mxu0 0.0
  %306 = vmatpush.msra.mxu0 0.0
  %307 = vmatpush.msra.mxu0 0.0
  %308 = vmatpush.msra.mxu0 0.0
  %309 = vmatpush.msra.mxu0 0.0
  %310 = vmatpush.msra.mxu0 0.0
  %311 = vmatpush.msra.mxu0 0.0
  %312 = vmatpush.msra.mxu0 0.0
  %313 = vmatpush.msra.mxu0 0.0
  %314 = vmatpush.msra.mxu0 %v222
  %315 = vmatpush.msra.mxu0 %v221
  %316 = vmatpush.msra.mxu0 %v220
  %317 = vmatpush.msra.mxu0 %v219
  %318 = vmatpush.msra.mxu0 %v218
  %319 = vmatpush.msra.mxu0 %v217
  %320 = vmatmul.f32.gmra.mxu0 %v260
  %v321 = vpop.f32.mrf.mxu0
  %v322 = vadd.f32 %v303, %v321
  %323 = vdwg.mxu0
  %v324 = vadd.f32 %v80, %v280
  %v325 = vxor.u32 %v324, 2147483648
  %v326 = vmul.f32 %v325, 1.442695
  %v327 = vpow.pop %v326
  %v328 = vadd.f32 %v327, 1.0
  %v329 = vrcp.pop %v328
  %v330 = vmul.f32 %v328, %v329
  %v331 = vsub.f32 1.0, %v330
  %v332 = vmul.f32 %v329, %v331
  %v333 = vadd.f32 %v329, %v332
  %vm334 = vweird.f32 %v328
  %vm335 = vweird.f32 %v329
  %vm336 = vmor %vm334, %vm335
  %v337 = vsel %vm336, %v329, %v333
  %v338 = vand.u32 2147483647, %v328
  %vm339 = vcmp.eq.f32.partialorder %v338, 8.507059e+37
  %v340 = vand.u32 %v328, 2147483648
  %v341 = vor.u32 1.1754944e-38, %v340
  %v342 = vsel %vm339, %v341, %v337
  %v343 = vmul.f32 1.0, %v342
  %v344 = vadd.f32 %v131, %v301
  %v345 = vxor.u32 %v344, 2147483648
  %v346 = vmul.f32 %v345, 1.442695
  %v347 = vpow.pop %v346
  %v348 = vadd.f32 %v347, 1.0
  %v349 = vrcp.pop %v348
  %v350 = vmul.f32 %v348, %v349
  %v351 = vsub.f32 1.0, %v350
  %v352 = vmul.f32 %v349, %v351
  %v353 = vadd.f32 %v349, %v352
  %vm354 = vweird.f32 %v348
  %vm355 = vweird.f32 %v349
  %vm356 = vmor %vm354, %vm355
  %v357 = vsel %vm356, %v349, %v353
  %v358 = vand.u32 2147483647, %v348
  %vm359 = vcmp.eq.f32.partialorder %v358, 8.507059e+37
  %v360 = vand.u32 %v348, 2147483648
  %v361 = vor.u32 1.1754944e-38, %v360
  %v362 = vsel %vm359, %v361, %v357
  %v363 = vmul.f32 1.0, %v362
  %v364 = vmul.f32 %v343, %v322
  %v365 = vadd.f32 %v182, %v364
  %v366 = vtanh.pop %v365
  %v367 = vsub.f32 1.0, %v363
  %v368 = vmul.f32 %v367, %v366
  %v369 = vmul.f32 %v363, %v255
  %v370 = vadd.f32 %v368, %v369
  %vm371 = vcmp.eq.f32.partialorder %v25, 0.0
  %v372 = vsel %vm371, %v370, 0.0
  %v374 = vsel %vm258, %v370, 0
  %376 = vmatpush.msra.mxu0 0.0
  %377 = vmatpush.msra.mxu0 0.0
  %378 = vmatpush.msra.mxu0 0.0
  %379 = vmatpush.msra.mxu0 0.0
  %380 = vmatpush.msra.mxu0 0.0
  %381 = vmatpush.msra.mxu0 0.0
  %382 = vmatpush.msra.mxu0 0.0
  %383 = vmatpush.msra.mxu0 0.0
  %384 = vmatpush.msra.mxu0 0.0
  %385 = vmatpush.msra.mxu0 0.0
  %386 = vmatpush.msra.mxu0 %v210
  %387 = vmatpush.msra.mxu0 %v209
  %388 = vmatpush.msra.mxu0 %v208
  %389 = vmatpush.msra.mxu0 %v207
  %390 = vmatpush.msra.mxu0 %v206
  %391 = vmatpush.msra.mxu0 %v205
  %392 = vmatmul.f32.gmra.mxu0 %v374
  %v393 = vpop.f32.mrf.mxu0
  %v394 = vadd.f32 %v257, %v393
  %395 = vdwg.mxu0
  %396 = vmatpush.msra.mxu0 0.0
  %397 = vmatpush.msra.mxu0 0.0
  %398 = vmatpush.msra.mxu0 0.0
  %399 = vmatpush.msra.mxu0 0.0
  %400 = vmatpush.msra.mxu0 0.0
  %401 = vmatpush.msra.mxu0 0.0
  %402 = vmatpush.msra.mxu0 0.0
  %403 = vmatpush.msra.mxu0 0.0
  %404 = vmatpush.msra.mxu0 0.0
  %405 = vmatpush.msra.mxu0 0.0
  %406 = vmatpush.msra.mxu0 %v216
  %407 = vmatpush.msra.mxu0 %v215
  %408 = vmatpush.msra.mxu0 %v214
  %409 = vmatpush.msra.mxu0 %v213
  %410 = vmatpush.msra.mxu0 %v212
  %411 = vmatpush.msra.mxu0 %v211
  %412 = vmatmul.f32.gmra.mxu0 %v374
  %v413 = vpop.f32.mrf.mxu0
  %v414 = vadd.f32 %v282, %v413
  %415 = vdwg.mxu0
  %416 = vmatpush.msra.mxu0 0.0
  %417 = vmatpush.msra.mxu0 0.0
  %418 = vmatpush.msra.mxu0 0.0
  %419 = vmatpush.msra.mxu0 0.0
  %420 = vmatpush.msra.mxu0 0.0
  %421 = vmatpush.msra.mxu0 0.0
  %422 = vmatpush.msra.mxu0 0.0
  %423 = vmatpush.msra.mxu0 0.0
  %424 = vmatpush.msra.mxu0 0.0
  %425 = vmatpush.msra.mxu0 0.0
  %426 = vmatpush.msra.mxu0 %v222
  %427 = vmatpush.msra.mxu0 %v221
  %428 = vmatpush.msra.mxu0 %v220
  %429 = vmatpush.msra.mxu0 %v219
  %430 = vmatpush.msra.mxu0 %v218
  %431 = vmatpush.msra.mxu0 %v217
  %432 = vmatmul.f32.gmra.mxu0 %v374
  %v433 = vpop.f32.mrf.mxu0
  %v434 = vadd.f32 %v303, %v433
  %435 = vdwg.mxu0
  %v436 = vadd.f32 %v83, %v394
  %v437 = vxor.u32 %v436, 2147483648
  %v438 = vmul.f32 %v437, 1.442695
  %v439 = vpow.pop %v438
  %v440 = vadd.f32 %v439, 1.0
  %v441 = vrcp.pop %v440
  %v442 = vmul.f32 %v440, %v441
  %v443 = vsub.f32 1.0, %v442
  %v444 = vmul.f32 %v441, %v443
  %v445 = vadd.f32 %v441, %v444
  %vm446 = vweird.f32 %v440
  %vm447 = vweird.f32 %v441
  %vm448 = vmor %vm446, %vm447
  %v449 = vsel %vm448, %v441, %v445
  %v450 = vand.u32 2147483647, %v440
  %vm451 = vcmp.eq.f32.partialorder %v450, 8.507059e+37
  %v452 = vand.u32 %v440, 2147483648
  %v453 = vor.u32 1.1754944e-38, %v452
  %v454 = vsel %vm451, %v453, %v449
  %v455 = vmul.f32 1.0, %v454
  %v456 = vadd.f32 %v134, %v414
  %v457 = vxor.u32 %v456, 2147483648
  %v458 = vmul.f32 %v457, 1.442695
  %v459 = vpow.pop %v458
  %v460 = vadd.f32 %v459, 1.0
  %v461 = vrcp.pop %v460
  %v462 = vmul.f32 %v460, %v461
  %v463 = vsub.f32 1.0, %v462
  %v464 = vmul.f32 %v461, %v463
  %v465 = vadd.f32 %v461, %v464
  %vm466 = vweird.f32 %v460
  %vm467 = vweird.f32 %v461
  %vm468 = vmor %vm466, %vm467
  %v469 = vsel %vm468, %v461, %v465
  %v470 = vand.u32 2147483647, %v460
  %vm471 = vcmp.eq.f32.partialorder %v470, 8.507059e+37
  %v472 = vand.u32 %v460, 2147483648
  %v473 = vor.u32 1.1754944e-38, %v472
  %v474 = vsel %vm471, %v473, %v469
  %v475 = vmul.f32 1.0, %v474
  %v476 = vmul.f32 %v455, %v434
  %v477 = vadd.f32 %v185, %v476
  %v478 = vtanh.pop %v477
  %v479 = vsub.f32 1.0, %v475
  %v480 = vmul.f32 %v479, %v478
  %v481 = vmul.f32 %v475, %v370
  %v482 = vadd.f32 %v480, %v481
  %vm483 = vcmp.eq.f32.partialorder %v25, 1.0
  %v484 = vsel %vm483, %v482, %v372
  %v486 = vsel %vm258, %v482, 0
  %488 = vmatpush.msra.mxu0 0.0
  %489 = vmatpush.msra.mxu0 0.0
  %490 = vmatpush.msra.mxu0 0.0
  %491 = vmatpush.msra.mxu0 0.0
  %492 = vmatpush.msra.mxu0 0.0
  %493 = vmatpush.msra.mxu0 0.0
  %494 = vmatpush.msra.mxu0 0.0
  %495 = vmatpush.msra.mxu0 0.0
  %496 = vmatpush.msra.mxu0 0.0
  %497 = vmatpush.msra.mxu0 0.0
  %498 = vmatpush.msra.mxu0 %v210
  %499 = vmatpush.msra.mxu0 %v209
  %500 = vmatpush.msra.mxu0 %v208
  %501 = vmatpush.msra.mxu0 %v207
  %502 = vmatpush.msra.mxu0 %v206
  %503 = vmatpush.msra.mxu0 %v205
  %504 = vmatmul.f32.gmra.mxu0 %v486
  %v505 = vpop.f32.mrf.mxu0
  %v506 = vadd.f32 %v257, %v505
  %507 = vdwg.mxu0
  %508 = vmatpush.msra.mxu0 0.0
  %509 = vmatpush.msra.mxu0 0.0
  %510 = vmatpush.msra.mxu0 0.0
  %511 = vmatpush.msra.mxu0 0.0
  %512 = vmatpush.msra.mxu0 0.0
  %513 = vmatpush.msra.mxu0 0.0
  %514 = vmatpush.msra.mxu0 0.0
  %515 = vmatpush.msra.mxu0 0.0
  %516 = vmatpush.msra.mxu0 0.0
  %517 = vmatpush.msra.mxu0 0.0
  %518 = vmatpush.msra.mxu0 %v216
  %519 = vmatpush.msra.mxu0 %v215
  %520 = vmatpush.msra.mxu0 %v214
  %521 = vmatpush.msra.mxu0 %v213
  %522 = vmatpush.msra.mxu0 %v212
  %523 = vmatpush.msra.mxu0 %v211
  %524 = vmatmul.f32.gmra.mxu0 %v486
  %v525 = vpop.f32.mrf.mxu0
  %v526 = vadd.f32 %v282, %v525
  %527 = vdwg.mxu0
  %528 = vmatpush.msra.mxu0 0.0
  %529 = vmatpush.msra.mxu0 0.0
  %530 = vmatpush.msra.mxu0 0.0
  %531 = vmatpush.msra.mxu0 0.0
  %532 = vmatpush.msra.mxu0 0.0
  %533 = vmatpush.msra.mxu0 0.0
  %534 = vmatpush.msra.mxu0 0.0
  %535 = vmatpush.msra.mxu0 0.0
  %536 = vmatpush.msra.mxu0 0.0
  %537 = vmatpush.msra.mxu0 0.0
  %538 = vmatpush.msra.mxu0 %v222
  %539 = vmatpush.msra.mxu0 %v221
  %540 = vmatpush.msra.mxu0 %v220
  %541 = vmatpush.msra.mxu0 %v219
  %542 = vmatpush.msra.mxu0 %v218
  %543 = vmatpush.msra.mxu0 %v217
  %544 = vmatmul.f32.gmra.mxu0 %v486
  %v545 = vpop.f32.mrf.mxu0
  %v546 = vadd.f32 %v303, %v545
  %547 = vdwg.mxu0
  %v548 = vadd.f32 %v86, %v506
  %v549 = vxor.u32 %v548, 2147483648
  %v550 = vmul.f32 %v549, 1.442695
  %v551 = vpow.pop %v550
  %v552 = vadd.f32 %v551, 1.0
  %v553 = vrcp.pop %v552
  %v554 = vmul.f32 %v552, %v553
  %v555 = vsub.f32 1.0, %v554
  %v556 = vmul.f32 %v553, %v555
  %v557 = vadd.f32 %v553, %v556
  %vm558 = vweird.f32 %v552
  %vm559 = vweird.f32 %v553
  %vm560 = vmor %vm558, %vm559
  %v561 = vsel %vm560, %v553, %v557
  %v562 = vand.u32 2147483647, %v552
  %vm563 = vcmp.eq.f32.partialorder %v562, 8.507059e+37
  %v564 = vand.u32 %v552, 2147483648
  %v565 = vor.u32 1.1754944e-38, %v564
  %v566 = vsel %vm563, %v565, %v561
  %v567 = vmul.f32 1.0, %v566
  %v568 = vadd.f32 %v137, %v526
  %v569 = vxor.u32 %v568, 2147483648
  %v570 = vmul.f32 %v569, 1.442695
  %v571 = vpow.pop %v570
  %v572 = vadd.f32 %v571, 1.0
  %v573 = vrcp.pop %v572
  %v574 = vmul.f32 %v572, %v573
  %v575 = vsub.f32 1.0, %v574
  %v576 = vmul.f32 %v573, %v575
  %v577 = vadd.f32 %v573, %v576
  %vm578 = vweird.f32 %v572
  %vm579 = vweird.f32 %v573
  %vm580 = vmor %vm578, %vm579
  %v581 = vsel %vm580, %v573, %v577
  %v582 = vand.u32 2147483647, %v572
  %vm583 = vcmp.eq.f32.partialorder %v582, 8.507059e+37
  %v584 = vand.u32 %v572, 2147483648
  %v585 = vor.u32 1.1754944e-38, %v584
  %v586 = vsel %vm583, %v585, %v581
  %v587 = vmul.f32 1.0, %v586
  %v588 = vmul.f32 %v567, %v546
  %v589 = vadd.f32 %v188, %v588
  %v590 = vtanh.pop %v589
  %v591 = vsub.f32 1.0, %v587
  %v592 = vmul.f32 %v591, %v590
  %v593 = vmul.f32 %v587, %v482
  %v594 = vadd.f32 %v592, %v593
  %vm595 = vcmp.eq.f32.partialorder %v25, 2.0
  %v596 = vsel %vm595, %v594, %v484
  %v598 = vsel %vm258, %v594, 0
  %600 = vmatpush.msra.mxu0 0.0
  %601 = vmatpush.msra.mxu0 0.0
  %602 = vmatpush.msra.mxu0 0.0
  %603 = vmatpush.msra.mxu0 0.0
  %604 = vmatpush.msra.mxu0 0.0
  %605 = vmatpush.msra.mxu0 0.0
  %606 = vmatpush.msra.mxu0 0.0
  %607 = vmatpush.msra.mxu0 0.0
  %608 = vmatpush.msra.mxu0 0.0
  %609 = vmatpush.msra.mxu0 0.0
  %610 = vmatpush.msra.mxu0 %v210
  %611 = vmatpush.msra.mxu0 %v209
  %612 = vmatpush.msra.mxu0 %v208
  %613 = vmatpush.msra.mxu0 %v207
  %614 = vmatpush.msra.mxu0 %v206
  %615 = vmatpush.msra.mxu0 %v205
  %616 = vmatmul.f32.gmra.mxu0 %v598
  %v617 = vpop.f32.mrf.mxu0
  %v618 = vadd.f32 %v257, %v617
  %619 = vdwg.mxu0
  %620 = vmatpush.msra.mxu0 0.0
  %621 = vmatpush.msra.mxu0 0.0
  %622 = vmatpush.msra.mxu0 0.0
  %623 = vmatpush.msra.mxu0 0.0
  %624 = vmatpush.msra.mxu0 0.0
  %625 = vmatpush.msra.mxu0 0.0
  %626 = vmatpush.msra.mxu0 0.0
  %627 = vmatpush.msra.mxu0 0.0
  %628 = vmatpush.msra.mxu0 0.0
  %629 = vmatpush.msra.mxu0 0.0
  %630 = vmatpush.msra.mxu0 %v216
  %631 = vmatpush.msra.mxu0 %v215
  %632 = vmatpush.msra.mxu0 %v214
  %633 = vmatpush.msra.mxu0 %v213
  %634 = vmatpush.msra.mxu0 %v212
  %635 = vmatpush.msra.mxu0 %v211
  %636 = vmatmul.f32.gmra.mxu0 %v598
  %v637 = vpop.f32.mrf.mxu0
  %v638 = vadd.f32 %v282, %v637
  %639 = vdwg.mxu0
  %640 = vmatpush.msra.mxu0 0.0
  %641 = vmatpush.msra.mxu0 0.0
  %642 = vmatpush.msra.mxu0 0.0
  %643 = vmatpush.msra.mxu0 0.0
  %644 = vmatpush.msra.mxu0 0.0
  %645 = vmatpush.msra.mxu0 0.0
  %646 = vmatpush.msra.mxu0 0.0
  %647 = vmatpush.msra.mxu0 0.0
  %648 = vmatpush.msra.mxu0 0.0
  %649 = vmatpush.msra.mxu0 0.0
  %650 = vmatpush.msra.mxu0 %v222
  %651 = vmatpush.msra.mxu0 %v221
  %652 = vmatpush.msra.mxu0 %v220
  %653 = vmatpush.msra.mxu0 %v219
  %654 = vmatpush.msra.mxu0 %v218
  %655 = vmatpush.msra.mxu0 %v217
  %656 = vmatmul.f32.gmra.mxu0 %v598
  %v657 = vpop.f32.mrf.mxu0
  %v658 = vadd.f32 %v303, %v657
  %659 = vdwg.mxu0
  %v660 = vadd.f32 %v89, %v618
  %v661 = vxor.u32 %v660, 2147483648
  %v662 = vmul.f32 %v661, 1.442695
  %v663 = vpow.pop %v662
  %v664 = vadd.f32 %v663, 1.0
  %v665 = vrcp.pop %v664
  %v666 = vmul.f32 %v664, %v665
  %v667 = vsub.f32 1.0, %v666
  %v668 = vmul.f32 %v665, %v667
  %v669 = vadd.f32 %v665, %v668
  %vm670 = vweird.f32 %v664
  %vm671 = vweird.f32 %v665
  %vm672 = vmor %vm670, %vm671
  %v673 = vsel %vm672, %v665, %v669
  %v674 = vand.u32 2147483647, %v664
  %vm675 = vcmp.eq.f32.partialorder %v674, 8.507059e+37
  %v676 = vand.u32 %v664, 2147483648
  %v677 = vor.u32 1.1754944e-38, %v676
  %v678 = vsel %vm675, %v677, %v673
  %v679 = vmul.f32 1.0, %v678
  %v680 = vadd.f32 %v140, %v638
  %v681 = vxor.u32 %v680, 2147483648
  %v682 = vmul.f32 %v681, 1.442695
  %v683 = vpow.pop %v682
  %v684 = vadd.f32 %v683, 1.0
  %v685 = vrcp.pop %v684
  %v686 = vmul.f32 %v684, %v685
  %v687 = vsub.f32 1.0, %v686
  %v688 = vmul.f32 %v685, %v687
  %v689 = vadd.f32 %v685, %v688
  %vm690 = vweird.f32 %v684
  %vm691 = vweird.f32 %v685
  %vm692 = vmor %vm690, %vm691
  %v693 = vsel %vm692, %v685, %v689
  %v694 = vand.u32 2147483647, %v684
  %vm695 = vcmp.eq.f32.partialorder %v694, 8.507059e+37
  %v696 = vand.u32 %v684, 2147483648
  %v697 = vor.u32 1.1754944e-38, %v696
  %v698 = vsel %vm695, %v697, %v693
  %v699 = vmul.f32 1.0, %v698
  %v700 = vmul.f32 %v679, %v658
  %v701 = vadd.f32 %v191, %v700
  %v702 = vtanh.pop %v701
  %v703 = vsub.f32 1.0, %v699
  %v704 = vmul.f32 %v703, %v702
  %v705 = vmul.f32 %v699, %v594
  %v706 = vadd.f32 %v704, %v705
  %vm707 = vcmp.eq.f32.partialorder %v25, 3.0
  %v708 = vsel %vm707, %v706, %v596
  %v710 = vsel %vm258, %v706, 0
  %712 = vmatpush.msra.mxu0 0.0
  %713 = vmatpush.msra.mxu0 0.0
  %714 = vmatpush.msra.mxu0 0.0
  %715 = vmatpush.msra.mxu0 0.0
  %716 = vmatpush.msra.mxu0 0.0
  %717 = vmatpush.msra.mxu0 0.0
  %718 = vmatpush.msra.mxu0 0.0
  %719 = vmatpush.msra.mxu0 0.0
  %720 = vmatpush.msra.mxu0 0.0
  %721 = vmatpush.msra.mxu0 0.0
  %722 = vmatpush.msra.mxu0 %v210
  %723 = vmatpush.msra.mxu0 %v209
  %724 = vmatpush.msra.mxu0 %v208
  %725 = vmatpush.msra.mxu0 %v207
  %726 = vmatpush.msra.mxu0 %v206
  %727 = vmatpush.msra.mxu0 %v205
  %728 = vmatmul.f32.gmra.mxu0 %v710
  %v729 = vpop.f32.mrf.mxu0
  %v730 = vadd.f32 %v257, %v729
  %731 = vdwg.mxu0
  %732 = vmatpush.msra.mxu0 0.0
  %733 = vmatpush.msra.mxu0 0.0
  %734 = vmatpush.msra.mxu0 0.0
  %735 = vmatpush.msra.mxu0 0.0
  %736 = vmatpush.msra.mxu0 0.0
  %737 = vmatpush.msra.mxu0 0.0
  %738 = vmatpush.msra.mxu0 0.0
  %739 = vmatpush.msra.mxu0 0.0
  %740 = vmatpush.msra.mxu0 0.0
  %741 = vmatpush.msra.mxu0 0.0
  %742 = vmatpush.msra.mxu0 %v216
  %743 = vmatpush.msra.mxu0 %v215
  %744 = vmatpush.msra.mxu0 %v214
  %745 = vmatpush.msra.mxu0 %v213
  %746 = vmatpush.msra.mxu0 %v212
  %747 = vmatpush.msra.mxu0 %v211
  %748 = vmatmul.f32.gmra.mxu0 %v710
  %v749 = vpop.f32.mrf.mxu0
  %v750 = vadd.f32 %v282, %v749
  %751 = vdwg.mxu0
  %752 = vmatpush.msra.mxu0 0.0
  %753 = vmatpush.msra.mxu0 0.0
  %754 = vmatpush.msra.mxu0 0.0
  %755 = vmatpush.msra.mxu0 0.0
  %756 = vmatpush.msra.mxu0 0.0
  %757 = vmatpush.msra.mxu0 0.0
  %758 = vmatpush.msra.mxu0 0.0
  %759 = vmatpush.msra.mxu0 0.0
  %760 = vmatpush.msra.mxu0 0.0
  %761 = vmatpush.msra.mxu0 0.0
  %762 = vmatpush.msra.mxu0 %v222
  %763 = vmatpush.msra.mxu0 %v221
  %764 = vmatpush.msra.mxu0 %v220
  %765 = vmatpush.msra.mxu0 %v219
  %766 = vmatpush.msra.mxu0 %v218
  %767 = vmatpush.msra.mxu0 %v217
  %768 = vmatmul.f32.gmra.mxu0 %v710
  %v769 = vpop.f32.mrf.mxu0
  %v770 = vadd.f32 %v303, %v769
  %771 = vdwg.mxu0
  %v772 = vadd.f32 %v92, %v730
  %v773 = vxor.u32 %v772, 2147483648
  %v774 = vmul.f32 %v773, 1.442695
  %v775 = vpow.pop %v774
  %v776 = vadd.f32 %v775, 1.0
  %v777 = vrcp.pop %v776
  %v778 = vmul.f32 %v776, %v777
  %v779 = vsub.f32 1.0, %v778
  %v780 = vmul.f32 %v777, %v779
  %v781 = vadd.f32 %v777, %v780
  %vm782 = vweird.f32 %v776
  %vm783 = vweird.f32 %v777
  %vm784 = vmor %vm782, %vm783
  %v785 = vsel %vm784, %v777, %v781
  %v786 = vand.u32 2147483647, %v776
  %vm787 = vcmp.eq.f32.partialorder %v786, 8.507059e+37
  %v788 = vand.u32 %v776, 2147483648
  %v789 = vor.u32 1.1754944e-38, %v788
  %v790 = vsel %vm787, %v789, %v785
  %v791 = vmul.f32 1.0, %v790
  %v792 = vadd.f32 %v143, %v750
  %v793 = vxor.u32 %v792, 2147483648
  %v794 = vmul.f32 %v793, 1.442695
  %v795 = vpow.pop %v794
  %v796 = vadd.f32 %v795, 1.0
  %v797 = vrcp.pop %v796
  %v798 = vmul.f32 %v796, %v797
  %v799 = vsub.f32 1.0, %v798
  %v800 = vmul.f32 %v797, %v799
  %v801 = vadd.f32 %v797, %v800
  %vm802 = vweird.f32 %v796
  %vm803 = vweird.f32 %v797
  %vm804 = vmor %vm802, %vm803
  %v805 = vsel %vm804, %v797, %v801
  %v806 = vand.u32 2147483647, %v796
  %vm807 = vcmp.eq.f32.partialorder %v806, 8.507059e+37
  %v808 = vand.u32 %v796, 2147483648
  %v809 = vor.u32 1.1754944e-38, %v808
  %v810 = vsel %vm807, %v809, %v805
  %v811 = vmul.f32 1.0, %v810
  %v812 = vmul.f32 %v791, %v770
  %v813 = vadd.f32 %v194, %v812
  %v814 = vtanh.pop %v813
  %v815 = vsub.f32 1.0, %v811
  %v816 = vmul.f32 %v815, %v814
  %v817 = vmul.f32 %v811, %v706
  %v818 = vadd.f32 %v816, %v817
  %vm819 = vcmp.eq.f32.partialorder %v25, 4.0
  %v820 = vsel %vm819, %v818, %v708
  %v822 = vsel %vm258, %v818, 0
  %824 = vmatpush.msra.mxu0 0.0
  %825 = vmatpush.msra.mxu0 0.0
  %826 = vmatpush.msra.mxu0 0.0
  %827 = vmatpush.msra.mxu0 0.0
  %828 = vmatpush.msra.mxu0 0.0
  %829 = vmatpush.msra.mxu0 0.0
  %830 = vmatpush.msra.mxu0 0.0
  %831 = vmatpush.msra.mxu0 0.0
  %832 = vmatpush.msra.mxu0 0.0
  %833 = vmatpush.msra.mxu0 0.0
  %834 = vmatpush.msra.mxu0 %v210
  %835 = vmatpush.msra.mxu0 %v209
  %836 = vmatpush.msra.mxu0 %v208
  %837 = vmatpush.msra.mxu0 %v207
  %838 = vmatpush.msra.mxu0 %v206
  %839 = vmatpush.msra.mxu0 %v205
  %840 = vmatmul.f32.gmra.mxu0 %v822
  %v841 = vpop.f32.mrf.mxu0
  %v842 = vadd.f32 %v257, %v841
  %843 = vdwg.mxu0
  %844 = vmatpush.msra.mxu0 0.0
  %845 = vmatpush.msra.mxu0 0.0
  %846 = vmatpush.msra.mxu0 0.0
  %847 = vmatpush.msra.mxu0 0.0
  %848 = vmatpush.msra.mxu0 0.0
  %849 = vmatpush.msra.mxu0 0.0
  %850 = vmatpush.msra.mxu0 0.0
  %851 = vmatpush.msra.mxu0 0.0
  %852 = vmatpush.msra.mxu0 0.0
  %853 = vmatpush.msra.mxu0 0.0
  %854 = vmatpush.msra.mxu0 %v216
  %855 = vmatpush.msra.mxu0 %v215
  %856 = vmatpush.msra.mxu0 %v214
  %857 = vmatpush.msra.mxu0 %v213
  %858 = vmatpush.msra.mxu0 %v212
  %859 = vmatpush.msra.mxu0 %v211
  %860 = vmatmul.f32.gmra.mxu0 %v822
  %v861 = vpop.f32.mrf.mxu0
  %v862 = vadd.f32 %v282, %v861
  %863 = vdwg.mxu0
  %864 = vmatpush.msra.mxu0 0.0
  %865 = vmatpush.msra.mxu0 0.0
  %866 = vmatpush.msra.mxu0 0.0
  %867 = vmatpush.msra.mxu0 0.0
  %868 = vmatpush.msra.mxu0 0.0
  %869 = vmatpush.msra.mxu0 0.0
  %870 = vmatpush.msra.mxu0 0.0
  %871 = vmatpush.msra.mxu0 0.0
  %872 = vmatpush.msra.mxu0 0.0
  %873 = vmatpush.msra.mxu0 0.0
  %874 = vmatpush.msra.mxu0 %v222
  %875 = vmatpush.msra.mxu0 %v221
  %876 = vmatpush.msra.mxu0 %v220
  %877 = vmatpush.msra.mxu0 %v219
  %878 = vmatpush.msra.mxu0 %v218
  %879 = vmatpush.msra.mxu0 %v217
  %880 = vmatmul.f32.gmra.mxu0 %v822
  %v881 = vpop.f32.mrf.mxu0
  %v882 = vadd.f32 %v303, %v881
  %883 = vdwg.mxu0
  %v884 = vadd.f32 %v95, %v842
  %v885 = vxor.u32 %v884, 2147483648
  %v886 = vmul.f32 %v885, 1.442695
  %v887 = vpow.pop %v886
  %v888 = vadd.f32 %v887, 1.0
  %v889 = vrcp.pop %v888
  %v890 = vmul.f32 %v888, %v889
  %v891 = vsub.f32 1.0, %v890
  %v892 = vmul.f32 %v889, %v891
  %v893 = vadd.f32 %v889, %v892
  %vm894 = vweird.f32 %v888
  %vm895 = vweird.f32 %v889
  %vm896 = vmor %vm894, %vm895
  %v897 = vsel %vm896, %v889, %v893
  %v898 = vand.u32 2147483647, %v888
  %vm899 = vcmp.eq.f32.partialorder %v898, 8.507059e+37
  %v900 = vand.u32 %v888, 2147483648
  %v901 = vor.u32 1.1754944e-38, %v900
  %v902 = vsel %vm899, %v901, %v897
  %v903 = vmul.f32 1.0, %v902
  %v904 = vadd.f32 %v146, %v862
  %v905 = vxor.u32 %v904, 2147483648
  %v906 = vmul.f32 %v905, 1.442695
  %v907 = vpow.pop %v906
  %v908 = vadd.f32 %v907, 1.0
  %v909 = vrcp.pop %v908
  %v910 = vmul.f32 %v908, %v909
  %v911 = vsub.f32 1.0, %v910
  %v912 = vmul.f32 %v909, %v911
  %v913 = vadd.f32 %v909, %v912
  %vm914 = vweird.f32 %v908
  %vm915 = vweird.f32 %v909
  %vm916 = vmor %vm914, %vm915
  %v917 = vsel %vm916, %v909, %v913
  %v918 = vand.u32 2147483647, %v908
  %vm919 = vcmp.eq.f32.partialorder %v918, 8.507059e+37
  %v920 = vand.u32 %v908, 2147483648
  %v921 = vor.u32 1.1754944e-38, %v920
  %v922 = vsel %vm919, %v921, %v917
  %v923 = vmul.f32 1.0, %v922
  %v924 = vmul.f32 %v903, %v882
  %v925 = vadd.f32 %v197, %v924
  %v926 = vtanh.pop %v925
  %v927 = vsub.f32 1.0, %v923
  %v928 = vmul.f32 %v927, %v926
  %v929 = vmul.f32 %v923, %v818
  %v930 = vadd.f32 %v928, %v929
  %vm931 = vcmp.eq.f32.partialorder %v25, 5.0
  %v932 = vsel %vm931, %v930, %v820
  %v934 = vsel %vm258, %v930, 0
  %936 = vmatpush.msra.mxu0 0.0
  %937 = vmatpush.msra.mxu0 0.0
  %938 = vmatpush.msra.mxu0 0.0
  %939 = vmatpush.msra.mxu0 0.0
  %940 = vmatpush.msra.mxu0 0.0
  %941 = vmatpush.msra.mxu0 0.0
  %942 = vmatpush.msra.mxu0 0.0
  %943 = vmatpush.msra.mxu0 0.0
  %944 = vmatpush.msra.mxu0 0.0
  %945 = vmatpush.msra.mxu0 0.0
  %946 = vmatpush.msra.mxu0 %v210
  %947 = vmatpush.msra.mxu0 %v209
  %948 = vmatpush.msra.mxu0 %v208
  %949 = vmatpush.msra.mxu0 %v207
  %950 = vmatpush.msra.mxu0 %v206
  %951 = vmatpush.msra.mxu0 %v205
  %952 = vmatmul.f32.gmra.mxu0 %v934
  %v953 = vpop.f32.mrf.mxu0
  %v954 = vadd.f32 %v257, %v953
  %955 = vdwg.mxu0
  %956 = vmatpush.msra.mxu0 0.0
  %957 = vmatpush.msra.mxu0 0.0
  %958 = vmatpush.msra.mxu0 0.0
  %959 = vmatpush.msra.mxu0 0.0
  %960 = vmatpush.msra.mxu0 0.0
  %961 = vmatpush.msra.mxu0 0.0
  %962 = vmatpush.msra.mxu0 0.0
  %963 = vmatpush.msra.mxu0 0.0
  %964 = vmatpush.msra.mxu0 0.0
  %965 = vmatpush.msra.mxu0 0.0
  %966 = vmatpush.msra.mxu0 %v216
  %967 = vmatpush.msra.mxu0 %v215
  %968 = vmatpush.msra.mxu0 %v214
  %969 = vmatpush.msra.mxu0 %v213
  %970 = vmatpush.msra.mxu0 %v212
  %971 = vmatpush.msra.mxu0 %v211
  %972 = vmatmul.f32.gmra.mxu0 %v934
  %v973 = vpop.f32.mrf.mxu0
  %v974 = vadd.f32 %v282, %v973
  %975 = vdwg.mxu0
  %976 = vmatpush.msra.mxu0 0.0
  %977 = vmatpush.msra.mxu0 0.0
  %978 = vmatpush.msra.mxu0 0.0
  %979 = vmatpush.msra.mxu0 0.0
  %980 = vmatpush.msra.mxu0 0.0
  %981 = vmatpush.msra.mxu0 0.0
  %982 = vmatpush.msra.mxu0 0.0
  %983 = vmatpush.msra.mxu0 0.0
  %984 = vmatpush.msra.mxu0 0.0
  %985 = vmatpush.msra.mxu0 0.0
  %986 = vmatpush.msra.mxu0 %v222
  %987 = vmatpush.msra.mxu0 %v221
  %988 = vmatpush.msra.mxu0 %v220
  %989 = vmatpush.msra.mxu0 %v219
  %990 = vmatpush.msra.mxu0 %v218
  %991 = vmatpush.msra.mxu0 %v217
  %992 = vmatmul.f32.gmra.mxu0 %v934
  %v993 = vpop.f32.mrf.mxu0
  %v994 = vadd.f32 %v303, %v993
  %995 = vdwg.mxu0
  %v996 = vadd.f32 %v98, %v954
  %v997 = vxor.u32 %v996, 2147483648
  %v998 = vmul.f32 %v997, 1.442695
  %v999 = vpow.pop %v998
  %v1000 = vadd.f32 %v999, 1.0
  %v1001 = vrcp.pop %v1000
  %v1002 = vmul.f32 %v1000, %v1001
  %v1003 = vsub.f32 1.0, %v1002
  %v1004 = vmul.f32 %v1001, %v1003
  %v1005 = vadd.f32 %v1001, %v1004
  %vm1006 = vweird.f32 %v1000
  %vm1007 = vweird.f32 %v1001
  %vm1008 = vmor %vm1006, %vm1007
  %v1009 = vsel %vm1008, %v1001, %v1005
  %v1010 = vand.u32 2147483647, %v1000
  %vm1011 = vcmp.eq.f32.partialorder %v1010, 8.507059e+37
  %v1012 = vand.u32 %v1000, 2147483648
  %v1013 = vor.u32 1.1754944e-38, %v1012
  %v1014 = vsel %vm1011, %v1013, %v1009
  %v1015 = vmul.f32 1.0, %v1014
  %v1016 = vadd.f32 %v149, %v974
  %v1017 = vxor.u32 %v1016, 2147483648
  %v1018 = vmul.f32 %v1017, 1.442695
  %v1019 = vpow.pop %v1018
  %v1020 = vadd.f32 %v1019, 1.0
  %v1021 = vrcp.pop %v1020
  %v1022 = vmul.f32 %v1020, %v1021
  %v1023 = vsub.f32 1.0, %v1022
  %v1024 = vmul.f32 %v1021, %v1023
  %v1025 = vadd.f32 %v1021, %v1024
  %vm1026 = vweird.f32 %v1020
  %vm1027 = vweird.f32 %v1021
  %vm1028 = vmor %vm1026, %vm1027
  %v1029 = vsel %vm1028, %v1021, %v1025
  %v1030 = vand.u32 2147483647, %v1020
  %vm1031 = vcmp.eq.f32.partialorder %v1030, 8.507059e+37
  %v1032 = vand.u32 %v1020, 2147483648
  %v1033 = vor.u32 1.1754944e-38, %v1032
  %v1034 = vsel %vm1031, %v1033, %v1029
  %v1035 = vmul.f32 1.0, %v1034
  %v1036 = vmul.f32 %v1015, %v994
  %v1037 = vadd.f32 %v200, %v1036
  %v1038 = vtanh.pop %v1037
  %v1039 = vsub.f32 1.0, %v1035
  %v1040 = vmul.f32 %v1039, %v1038
  %v1041 = vmul.f32 %v1035, %v930
  %v1042 = vadd.f32 %v1040, %v1041
  %vm1043 = vcmp.eq.f32.partialorder %v25, 6.0
  %v1044 = vsel %vm1043, %v1042, %v932
  %v1046 = vsel %vm258, %v1042, 0
  %1048 = vmatpush.msra.mxu0 0.0
  %1049 = vmatpush.msra.mxu0 0.0
  %1050 = vmatpush.msra.mxu0 0.0
  %1051 = vmatpush.msra.mxu0 0.0
  %1052 = vmatpush.msra.mxu0 0.0
  %1053 = vmatpush.msra.mxu0 0.0
  %1054 = vmatpush.msra.mxu0 0.0
  %1055 = vmatpush.msra.mxu0 0.0
  %1056 = vmatpush.msra.mxu0 0.0
  %1057 = vmatpush.msra.mxu0 0.0
  %1058 = vmatpush.msra.mxu0 %v210
  %1059 = vmatpush.msra.mxu0 %v209
  %1060 = vmatpush.msra.mxu0 %v208
  %1061 = vmatpush.msra.mxu0 %v207
  %1062 = vmatpush.msra.mxu0 %v206
  %1063 = vmatpush.msra.mxu0 %v205
  %1064 = vmatmul.f32.gmra.mxu0 %v1046
  %v1065 = vpop.f32.mrf.mxu0
  %v1066 = vadd.f32 %v257, %v1065
  %1067 = vdwg.mxu0
  %1068 = vmatpush.msra.mxu0 0.0
  %1069 = vmatpush.msra.mxu0 0.0
  %1070 = vmatpush.msra.mxu0 0.0
  %1071 = vmatpush.msra.mxu0 0.0
  %1072 = vmatpush.msra.mxu0 0.0
  %1073 = vmatpush.msra.mxu0 0.0
  %1074 = vmatpush.msra.mxu0 0.0
  %1075 = vmatpush.msra.mxu0 0.0
  %1076 = vmatpush.msra.mxu0 0.0
  %1077 = vmatpush.msra.mxu0 0.0
  %1078 = vmatpush.msra.mxu0 %v216
  %1079 = vmatpush.msra.mxu0 %v215
  %1080 = vmatpush.msra.mxu0 %v214
  %1081 = vmatpush.msra.mxu0 %v213
  %1082 = vmatpush.msra.mxu0 %v212
  %1083 = vmatpush.msra.mxu0 %v211
  %1084 = vmatmul.f32.gmra.mxu0 %v1046
  %v1085 = vpop.f32.mrf.mxu0
  %v1086 = vadd.f32 %v282, %v1085
  %1087 = vdwg.mxu0
  %1088 = vmatpush.msra.mxu0 0.0
  %1089 = vmatpush.msra.mxu0 0.0
  %1090 = vmatpush.msra.mxu0 0.0
  %1091 = vmatpush.msra.mxu0 0.0
  %1092 = vmatpush.msra.mxu0 0.0
  %1093 = vmatpush.msra.mxu0 0.0
  %1094 = vmatpush.msra.mxu0 0.0
  %1095 = vmatpush.msra.mxu0 0.0
  %1096 = vmatpush.msra.mxu0 0.0
  %1097 = vmatpush.msra.mxu0 0.0
  %1098 = vmatpush.msra.mxu0 %v222
  %1099 = vmatpush.msra.mxu0 %v221
  %1100 = vmatpush.msra.mxu0 %v220
  %1101 = vmatpush.msra.mxu0 %v219
  %1102 = vmatpush.msra.mxu0 %v218
  %1103 = vmatpush.msra.mxu0 %v217
  %1104 = vmatmul.f32.gmra.mxu0 %v1046
  %v1105 = vpop.f32.mrf.mxu0
  %v1106 = vadd.f32 %v303, %v1105
  %1107 = vdwg.mxu0
  %v1108 = vadd.f32 %v101, %v1066
  %v1109 = vxor.u32 %v1108, 2147483648
  %v1110 = vmul.f32 %v1109, 1.442695
  %v1111 = vpow.pop %v1110
  %v1112 = vadd.f32 %v1111, 1.0
  %v1113 = vrcp.pop %v1112
  %v1114 = vmul.f32 %v1112, %v1113
  %v1115 = vsub.f32 1.0, %v1114
  %v1116 = vmul.f32 %v1113, %v1115
  %v1117 = vadd.f32 %v1113, %v1116
  %vm1118 = vweird.f32 %v1112
  %vm1119 = vweird.f32 %v1113
  %vm1120 = vmor %vm1118, %vm1119
  %v1121 = vsel %vm1120, %v1113, %v1117
  %v1122 = vand.u32 2147483647, %v1112
  %vm1123 = vcmp.eq.f32.partialorder %v1122, 8.507059e+37
  %v1124 = vand.u32 %v1112, 2147483648
  %v1125 = vor.u32 1.1754944e-38, %v1124
  %v1126 = vsel %vm1123, %v1125, %v1121
  %v1127 = vmul.f32 1.0, %v1126
  %v1128 = vadd.f32 %v152, %v1086
  %v1129 = vxor.u32 %v1128, 2147483648
  %v1130 = vmul.f32 %v1129, 1.442695
  %v1131 = vpow.pop %v1130
  %v1132 = vadd.f32 %v1131, 1.0
  %v1133 = vrcp.pop %v1132
  %v1134 = vmul.f32 %v1132, %v1133
  %v1135 = vsub.f32 1.0, %v1134
  %v1136 = vmul.f32 %v1133, %v1135
  %v1137 = vadd.f32 %v1133, %v1136
  %vm1138 = vweird.f32 %v1132
  %vm1139 = vweird.f32 %v1133
  %vm1140 = vmor %vm1138, %vm1139
  %v1141 = vsel %vm1140, %v1133, %v1137
  %v1142 = vand.u32 2147483647, %v1132
  %vm1143 = vcmp.eq.f32.partialorder %v1142, 8.507059e+37
  %v1144 = vand.u32 %v1132, 2147483648
  %v1145 = vor.u32 1.1754944e-38, %v1144
  %v1146 = vsel %vm1143, %v1145, %v1141
  %v1147 = vmul.f32 1.0, %v1146
  %v1148 = vmul.f32 %v1127, %v1106
  %v1149 = vadd.f32 %v203, %v1148
  %v1150 = vtanh.pop %v1149
  %v1151 = vsub.f32 1.0, %v1147
  %v1152 = vmul.f32 %v1151, %v1150
  %v1153 = vmul.f32 %v1147, %v1042
  %v1154 = vadd.f32 %v1152, %v1153
  %vm1155 = vcmp.eq.f32.partialorder %v25, 7.0
  %v1156 = vsel %vm1155, %v1154, %v1044
  %v1157 = vld [vmem:[%s1 + $0x150] sm:$0xff]
  %v1158 = vld [vmem:[%s1 + $0x158] sm:$0xff]
  %v1159 = vld [vmem:[%s1 + $0x160] sm:$0xff]
  %v1160 = vld [vmem:[%s1 + $0x168] sm:$0xff]
  %v1161 = vld [vmem:[%s1 + $0x170] sm:$0xff]
  %v1162 = vld [vmem:[%s1 + $0x178] sm:$0xff]
  %v1163 = vld [vmem:[%s1 + $0x180] sm:$0x1]
  %v1164 = vperm.slane %v1163, 0
  %v1166 = vsel %vm258, %v1156, 0
  %1168 = vmatpush.msra.mxu0 0.0
  %1169 = vmatpush.msra.mxu0 0.0
  %1170 = vmatpush.msra.mxu0 0.0
  %1171 = vmatpush.msra.mxu0 0.0
  %1172 = vmatpush.msra.mxu0 0.0
  %1173 = vmatpush.msra.mxu0 0.0
  %1174 = vmatpush.msra.mxu0 0.0
  %1175 = vmatpush.msra.mxu0 0.0
  %1176 = vmatpush.msra.mxu0 0.0
  %1177 = vmatpush.msra.mxu0 0.0
  %1178 = vmatpush.msra.mxu0 %v1162
  %1179 = vmatpush.msra.mxu0 %v1161
  %1180 = vmatpush.msra.mxu0 %v1160
  %1181 = vmatpush.msra.mxu0 %v1159
  %1182 = vmatpush.msra.mxu0 %v1158
  %1183 = vmatpush.msra.mxu0 %v1157
  %1184 = vmatmul.f32.gmra.mxu0 %v1166
  %v1185 = vpop.f32.mrf.mxu0
  %v1186 = vadd.f32 %v1164, %v1185
  %1187 = vdwg.mxu0
  %v1188 = vld [vmem:[%s1 + $0x188] sm:$0xff]
  %v1189 = vld [vmem:[%s1 + $0x190] sm:$0xff]
  %v1190 = vld [vmem:[%s1 + $0x198] sm:$0xff]
  %v1191 = vld [vmem:[%s1 + $0x1a0] sm:$0xff]
  %v1192 = vld [vmem:[%s1 + $0x1a8] sm:$0xff]
  %v1193 = vld [vmem:[%s1 + $0x1b0] sm:$0xff]
  %v1194 = vld [vmem:[%s1 + $0x1b8] sm:$0x1]
  %v1195 = vperm.slane %v1194, 0
  %1196 = vmatpush.msra.mxu0 0.0
  %1197 = vmatpush.msra.mxu0 0.0
  %1198 = vmatpush.msra.mxu0 0.0
  %1199 = vmatpush.msra.mxu0 0.0
  %1200 = vmatpush.msra.mxu0 0.0
  %1201 = vmatpush.msra.mxu0 0.0
  %1202 = vmatpush.msra.mxu0 0.0
  %1203 = vmatpush.msra.mxu0 0.0
  %1204 = vmatpush.msra.mxu0 0.0
  %1205 = vmatpush.msra.mxu0 0.0
  %1206 = vmatpush.msra.mxu0 %v1193
  %1207 = vmatpush.msra.mxu0 %v1192
  %1208 = vmatpush.msra.mxu0 %v1191
  %1209 = vmatpush.msra.mxu0 %v1190
  %1210 = vmatpush.msra.mxu0 %v1189
  %1211 = vmatpush.msra.mxu0 %v1188
  %1212 = vmatmul.f32.gmra.mxu0 %v1166
  %v1213 = vpop.f32.mrf.mxu0
  %v1214 = vadd.f32 %v1195, %v1213
  %1215 = vdwg.mxu0
  %v1216 = vmul.f32 %v1214, 0.5
  %v1217 = vmul.f32 %v1216, 1.442695
  %v1218 = vpow.pop %v1217
  %v1219 = vmul.f32 %v24, %v1218
  %v1220 = vadd.f32 %v1219, %v1186
  %v1221 = vld [vmem:[%s1 + $0x1c0] sm:$0xff]
  %v1222 = vld [vmem:[%s1 + $0x1c8] sm:$0xf]
  %v1224 = vsel %vm58, %v1222, 0
  %1226 = vmatpush.msra.mxu0 0.0
  %1227 = vmatpush.msra.mxu0 0.0
  %1228 = vmatpush.msra.mxu0 0.0
  %1229 = vmatpush.msra.mxu0 0.0
  %1230 = vmatpush.msra.mxu0 0.0
  %1231 = vmatpush.msra.mxu0 0.0
  %1232 = vmatpush.msra.mxu0 0.0
  %1233 = vmatpush.msra.mxu0 0.0
  %1234 = vmatpush.msra.mxu0 0.0
  %1235 = vmatpush.msra.mxu0 0.0
  %1236 = vmatpush.msra.mxu0 0.0
  %1237 = vmatpush.msra.mxu0 0.0
  %1238 = vmatpush.msra.mxu0 0.0
  %1239 = vmatpush.msra.mxu0 0.0
  %1240 = vmatpush.msra.mxu0 %v1224
  %1241 = vmatpush.msra.mxu0 %v1221
  %1242 = vmatmul.f32.gmra.mxu0 %v232
  %v1243 = vpop.f32.mrf.mxu0
  %v1244 = vadd.f32 0.0, %v1243
  %1245 = vdwg.mxu0
  %v1246 = vadd.f32 %v1220, %v1244
  %v1247 = vld [vmem:[%s1 + $0x1d0] sm:$0x1]
  %v1248 = vperm.slane %v1247, 0
  %v1249 = vadd.f32 %v1246, %v1248
  %v1250 = vld [vmem:[%s1 + $0x1d8] sm:$0xff]
  %v1251 = vld [vmem:[%s1 + $0x1e0] sm:$0xff]
  %v1252 = vld [vmem:[%s1 + $0x1e8] sm:$0xff]
  %v1253 = vld [vmem:[%s1 + $0x1f0] sm:$0xff]
  %v1254 = vld [vmem:[%s1 + $0x1f8] sm:$0xf]
  %v1255 = vld [vmem:[%s1 + $0x200] sm:$0x1]
  %v1256 = vperm.slane %v1255, 0
  %v1258 = vsel %vm33, %v23, 0
  %v1261 = vsel %vm58, %v1254, 0
  %1263 = vmatpush.msra.mxu0 0.0
  %1264 = vmatpush.msra.mxu0 0.0
  %1265 = vmatpush.msra.mxu0 0.0
  %1266 = vmatpush.msra.mxu0 0.0
  %1267 = vmatpush.msra.mxu0 0.0
  %1268 = vmatpush.msra.mxu0 0.0
  %1269 = vmatpush.msra.mxu0 0.0
  %1270 = vmatpush.msra.mxu0 0.0
  %1271 = vmatpush.msra.mxu0 0.0
  %1272 = vmatpush.msra.mxu0 0.0
  %1273 = vmatpush.msra.mxu0 0.0
  %1274 = vmatpush.msra.mxu0 %v1261
  %1275 = vmatpush.msra.mxu0 %v1253
  %1276 = vmatpush.msra.mxu0 %v1252
  %1277 = vmatpush.msra.mxu0 %v1251
  %1278 = vmatpush.msra.mxu0 %v1250
  %1279 = vmatmul.f32.gmra.mxu0 %v1258
  %v1280 = vpop.f32.mrf.mxu0
  %v1281 = vadd.f32 %v1256, %v1280
  %1282 = vdwg.mxu0
  %v1283 = vld [vmem:[%s2] sm:$0xff]
  %v1284 = vld [vmem:[%s2 + $0x8] sm:$0xff]
  %v1285 = vld [vmem:[%s2 + $0x10] sm:$0xff]
  %v1286 = vld [vmem:[%s2 + $0x18] sm:$0xff]
  %v1287 = vld [vmem:[%s2 + $0x20] sm:$0xff]
  %v1288 = vld [vmem:[%s2 + $0x28] sm:$0xff]
  %v1289 = vld [vmem:[%s2 + $0x30] sm:$0xff]
  %v1290 = vld [vmem:[%s2 + $0x38] sm:$0xff]
  %v1291 = vld [vmem:[%s2 + $0x40] sm:$0xff]
  %v1292 = vld [vmem:[%s2 + $0x48] sm:$0xff]
  %v1293 = vld [vmem:[%s2 + $0x50] sm:$0xff]
  %v1294 = vld [vmem:[%s2 + $0x58] sm:$0xff]
  %v1296 = vsel %vm258, %v1281, 0
  %1298 = vmatpush.msra.mxu0 0.0
  %1299 = vmatpush.msra.mxu0 0.0
  %1300 = vmatpush.msra.mxu0 0.0
  %1301 = vmatpush.msra.mxu0 0.0
  %1302 = vmatpush.msra.mxu0 0.0
  %1303 = vmatpush.msra.mxu0 0.0
  %1304 = vmatpush.msra.mxu0 0.0
  %1305 = vmatpush.msra.mxu0 0.0
  %1306 = vmatpush.msra.mxu0 0.0
  %1307 = vmatpush.msra.mxu0 0.0
  %1308 = vmatpush.msra.mxu0 %v1294
  %1309 = vmatpush.msra.mxu0 %v1293
  %1310 = vmatpush.msra.mxu0 %v1292
  %1311 = vmatpush.msra.mxu0 %v1291
  %1312 = vmatpush.msra.mxu0 %v1290
  %1313 = vmatpush.msra.mxu0 %v1289
  %1314 = vmatmul.f32.gmra.mxu0 %v1296
  %v1315 = vpop.f32.mrf.mxu0
  %v1316 = vadd.f32 0.0, %v1315
  %1317 = vdwg.mxu0
  %v1319 = vsel %vm258, %v1249, 0
  %1321 = vmatpush.msra.mxu0 0.0
  %1322 = vmatpush.msra.mxu0 0.0
  %1323 = vmatpush.msra.mxu0 0.0
  %1324 = vmatpush.msra.mxu0 0.0
  %1325 = vmatpush.msra.mxu0 0.0
  %1326 = vmatpush.msra.mxu0 0.0
  %1327 = vmatpush.msra.mxu0 0.0
  %1328 = vmatpush.msra.mxu0 0.0
  %1329 = vmatpush.msra.mxu0 0.0
  %1330 = vmatpush.msra.mxu0 0.0
  %1331 = vmatpush.msra.mxu0 %v1288
  %1332 = vmatpush.msra.mxu0 %v1287
  %1333 = vmatpush.msra.mxu0 %v1286
  %1334 = vmatpush.msra.mxu0 %v1285
  %1335 = vmatpush.msra.mxu0 %v1284
  %1336 = vmatpush.msra.mxu0 %v1283
  %1337 = vmatmul.f32.gmra.mxu0 %v1319
  %v1338 = vpop.f32.mrf.mxu0
  %v1339 = vadd.f32 %v1316, %v1338
  %1340 = vdwg.mxu0
  %v1341 = vld [vmem:[%s2 + $0x60] sm:$0xff]
  %v1342 = vld [vmem:[%s2 + $0x68] sm:$0xff]
  %v1343 = vld [vmem:[%s2 + $0x70] sm:$0xff]
  %v1344 = vld [vmem:[%s2 + $0x78] sm:$0xff]
  %v1345 = vld [vmem:[%s2 + $0x80] sm:$0xff]
  %v1346 = vld [vmem:[%s2 + $0x88] sm:$0xff]
  %v1347 = vld [vmem:[%s2 + $0x90] sm:$0xff]
  %v1348 = vld [vmem:[%s2 + $0x98] sm:$0xff]
  %v1349 = vld [vmem:[%s2 + $0xa0] sm:$0xff]
  %v1350 = vld [vmem:[%s2 + $0xa8] sm:$0xff]
  %v1351 = vld [vmem:[%s2 + $0xb0] sm:$0xff]
  %v1352 = vld [vmem:[%s2 + $0xb8] sm:$0xff]
  %v1353 = vld [vmem:[%s2 + $0xc0] sm:$0x1]
  %v1354 = vperm.slane %v1353, 0
  %vm1355 = vcmask 785408
  %v1357 = vsel %vm1355, %v1339, 0
  %1359 = vmatpush.msra.mxu0 0.0
  %1360 = vmatpush.msra.mxu0 0.0
  %1361 = vmatpush.msra.mxu0 0.0
  %1362 = vmatpush.msra.mxu0 0.0
  %1363 = vmatpush.msra.mxu0 %v1352
  %1364 = vmatpush.msra.mxu0 %v1351
  %1365 = vmatpush.msra.mxu0 %v1350
  %1366 = vmatpush.msra.mxu0 %v1349
  %1367 = vmatpush.msra.mxu0 %v1348
  %1368 = vmatpush.msra.mxu0 %v1347
  %1369 = vmatpush.msra.mxu0 %v1346
  %1370 = vmatpush.msra.mxu0 %v1345
  %1371 = vmatpush.msra.mxu0 %v1344
  %1372 = vmatpush.msra.mxu0 %v1343
  %1373 = vmatpush.msra.mxu0 %v1342
  %1374 = vmatpush.msra.mxu0 %v1341
  %1375 = vmatmul.f32.gmra.mxu0 %v1357
  %v1376 = vpop.f32.mrf.mxu0
  %v1377 = vadd.f32 %v1354, %v1376
  %1378 = vdwg.mxu0
  %v1379 = vld [vmem:[%s2 + $0x130] sm:$0xff]
  %v1380 = vld [vmem:[%s2 + $0x138] sm:$0xff]
  %v1381 = vld [vmem:[%s2 + $0x140] sm:$0xff]
  %v1382 = vld [vmem:[%s2 + $0x148] sm:$0xff]
  %v1383 = vld [vmem:[%s2 + $0x150] sm:$0xff]
  %v1384 = vld [vmem:[%s2 + $0x158] sm:$0xff]
  %v1385 = vld [vmem:[%s2 + $0x160] sm:$0xff]
  %v1386 = vld [vmem:[%s2 + $0x168] sm:$0xff]
  %v1387 = vld [vmem:[%s2 + $0x170] sm:$0xff]
  %v1388 = vld [vmem:[%s2 + $0x178] sm:$0xff]
  %v1389 = vld [vmem:[%s2 + $0x180] sm:$0xff]
  %v1390 = vld [vmem:[%s2 + $0x188] sm:$0xff]
  %v1391 = vld [vmem:[%s2 + $0x190] sm:$0x1]
  %v1392 = vperm.slane %v1391, 0
  %1393 = vmatpush.msra.mxu0 0.0
  %1394 = vmatpush.msra.mxu0 0.0
  %1395 = vmatpush.msra.mxu0 0.0
  %1396 = vmatpush.msra.mxu0 0.0
  %1397 = vmatpush.msra.mxu0 %v1390
  %1398 = vmatpush.msra.mxu0 %v1389
  %1399 = vmatpush.msra.mxu0 %v1388
  %1400 = vmatpush.msra.mxu0 %v1387
  %1401 = vmatpush.msra.mxu0 %v1386
  %1402 = vmatpush.msra.mxu0 %v1385
  %1403 = vmatpush.msra.mxu0 %v1384
  %1404 = vmatpush.msra.mxu0 %v1383
  %1405 = vmatpush.msra.mxu0 %v1382
  %1406 = vmatpush.msra.mxu0 %v1381
  %1407 = vmatpush.msra.mxu0 %v1380
  %1408 = vmatpush.msra.mxu0 %v1379
  %1409 = vmatmul.f32.gmra.mxu0 %v1357
  %v1410 = vpop.f32.mrf.mxu0
  %v1411 = vadd.f32 %v1392, %v1410
  %1412 = vdwg.mxu0
  %v1413 = vld [vmem:[%s2 + $0x200] sm:$0xff]
  %v1414 = vld [vmem:[%s2 + $0x208] sm:$0xff]
  %v1415 = vld [vmem:[%s2 + $0x210] sm:$0xff]
  %v1416 = vld [vmem:[%s2 + $0x218] sm:$0xff]
  %v1417 = vld [vmem:[%s2 + $0x220] sm:$0xff]
  %v1418 = vld [vmem:[%s2 + $0x228] sm:$0xff]
  %v1419 = vld [vmem:[%s2 + $0x230] sm:$0xff]
  %v1420 = vld [vmem:[%s2 + $0x238] sm:$0xff]
  %v1421 = vld [vmem:[%s2 + $0x240] sm:$0xff]
  %v1422 = vld [vmem:[%s2 + $0x248] sm:$0xff]
  %v1423 = vld [vmem:[%s2 + $0x250] sm:$0xff]
  %v1424 = vld [vmem:[%s2 + $0x258] sm:$0xff]
  %v1425 = vld [vmem:[%s2 + $0x260] sm:$0x1]
  %v1426 = vperm.slane %v1425, 0
  %1427 = vmatpush.msra.mxu0 0.0
  %1428 = vmatpush.msra.mxu0 0.0
  %1429 = vmatpush.msra.mxu0 0.0
  %1430 = vmatpush.msra.mxu0 0.0
  %1431 = vmatpush.msra.mxu0 %v1424
  %1432 = vmatpush.msra.mxu0 %v1423
  %1433 = vmatpush.msra.mxu0 %v1422
  %1434 = vmatpush.msra.mxu0 %v1421
  %1435 = vmatpush.msra.mxu0 %v1420
  %1436 = vmatpush.msra.mxu0 %v1419
  %1437 = vmatpush.msra.mxu0 %v1418
  %1438 = vmatpush.msra.mxu0 %v1417
  %1439 = vmatpush.msra.mxu0 %v1416
  %1440 = vmatpush.msra.mxu0 %v1415
  %1441 = vmatpush.msra.mxu0 %v1414
  %1442 = vmatpush.msra.mxu0 %v1413
  %1443 = vmatmul.f32.gmra.mxu0 %v1357
  %v1444 = vpop.f32.mrf.mxu0
  %v1445 = vadd.f32 %v1426, %v1444
  %1446 = vdwg.mxu0
  %v1447 = vld [vmem:[%s2 + $0xc8] sm:$0xff]
  %v1448 = vld [vmem:[%s2 + $0xd0] sm:$0xff]
  %v1449 = vld [vmem:[%s2 + $0xd8] sm:$0xff]
  %v1450 = vld [vmem:[%s2 + $0xe0] sm:$0xff]
  %v1451 = vld [vmem:[%s2 + $0xe8] sm:$0xff]
  %v1452 = vld [vmem:[%s2 + $0xf0] sm:$0xff]
  %v1453 = vld [vmem:[%s2 + $0xf8] sm:$0xff]
  %v1454 = vld [vmem:[%s2 + $0x100] sm:$0xff]
  %v1455 = vld [vmem:[%s2 + $0x108] sm:$0xff]
  %v1456 = vld [vmem:[%s2 + $0x110] sm:$0xff]
  %v1457 = vld [vmem:[%s2 + $0x118] sm:$0xff]
  %v1458 = vld [vmem:[%s2 + $0x120] sm:$0xff]
  %v1459 = vld [vmem:[%s2 + $0x198] sm:$0xff]
  %v1460 = vld [vmem:[%s2 + $0x1a0] sm:$0xff]
  %v1461 = vld [vmem:[%s2 + $0x1a8] sm:$0xff]
  %v1462 = vld [vmem:[%s2 + $0x1b0] sm:$0xff]
  %v1463 = vld [vmem:[%s2 + $0x1b8] sm:$0xff]
  %v1464 = vld [vmem:[%s2 + $0x1c0] sm:$0xff]
  %v1465 = vld [vmem:[%s2 + $0x1c8] sm:$0xff]
  %v1466 = vld [vmem:[%s2 + $0x1d0] sm:$0xff]
  %v1467 = vld [vmem:[%s2 + $0x1d8] sm:$0xff]
  %v1468 = vld [vmem:[%s2 + $0x1e0] sm:$0xff]
  %v1469 = vld [vmem:[%s2 + $0x1e8] sm:$0xff]
  %v1470 = vld [vmem:[%s2 + $0x1f0] sm:$0xff]
  %v1471 = vld [vmem:[%s2 + $0x268] sm:$0xff]
  %v1472 = vld [vmem:[%s2 + $0x270] sm:$0xff]
  %v1473 = vld [vmem:[%s2 + $0x278] sm:$0xff]
  %v1474 = vld [vmem:[%s2 + $0x280] sm:$0xff]
  %v1475 = vld [vmem:[%s2 + $0x288] sm:$0xff]
  %v1476 = vld [vmem:[%s2 + $0x290] sm:$0xff]
  %v1477 = vld [vmem:[%s2 + $0x298] sm:$0xff]
  %v1478 = vld [vmem:[%s2 + $0x2a0] sm:$0xff]
  %v1479 = vld [vmem:[%s2 + $0x2a8] sm:$0xff]
  %v1480 = vld [vmem:[%s2 + $0x2b0] sm:$0xff]
  %v1481 = vld [vmem:[%s2 + $0x2b8] sm:$0xff]
  %v1482 = vld [vmem:[%s2 + $0x2c0] sm:$0xff]
  %v1483 = vld [vmem:[%s2 + $0x128] sm:$0x1]
  %v1484 = vld [vmem:[%s2 + $0x1f8] sm:$0x1]
  %v1485 = vld [vmem:[%s2 + $0x2c8] sm:$0x1]
  %v1486 = vperm.slane %v1483, 0
  %1487 = vmatpush.msra.mxu0 0.0
  %1488 = vmatpush.msra.mxu0 0.0
  %1489 = vmatpush.msra.mxu0 0.0
  %1490 = vmatpush.msra.mxu0 0.0
  %1491 = vmatpush.msra.mxu0 %v1458
  %1492 = vmatpush.msra.mxu0 %v1457
  %1493 = vmatpush.msra.mxu0 %v1456
  %1494 = vmatpush.msra.mxu0 %v1455
  %1495 = vmatpush.msra.mxu0 %v1454
  %1496 = vmatpush.msra.mxu0 %v1453
  %1497 = vmatpush.msra.mxu0 %v1452
  %1498 = vmatpush.msra.mxu0 %v1451
  %1499 = vmatpush.msra.mxu0 %v1450
  %1500 = vmatpush.msra.mxu0 %v1449
  %1501 = vmatpush.msra.mxu0 %v1448
  %1502 = vmatpush.msra.mxu0 %v1447
  %1503 = vmatmul.f32.gmra.mxu0 %v1357
  %v1504 = vpop.f32.mrf.mxu0
  %v1505 = vadd.f32 %v1486, %v1504
  %1506 = vdwg.mxu0
  %v1507 = vperm.slane %v1484, 0
  %1508 = vmatpush.msra.mxu0 0.0
  %1509 = vmatpush.msra.mxu0 0.0
  %1510 = vmatpush.msra.mxu0 0.0
  %1511 = vmatpush.msra.mxu0 0.0
  %1512 = vmatpush.msra.mxu0 %v1470
  %1513 = vmatpush.msra.mxu0 %v1469
  %1514 = vmatpush.msra.mxu0 %v1468
  %1515 = vmatpush.msra.mxu0 %v1467
  %1516 = vmatpush.msra.mxu0 %v1466
  %1517 = vmatpush.msra.mxu0 %v1465
  %1518 = vmatpush.msra.mxu0 %v1464
  %1519 = vmatpush.msra.mxu0 %v1463
  %1520 = vmatpush.msra.mxu0 %v1462
  %1521 = vmatpush.msra.mxu0 %v1461
  %1522 = vmatpush.msra.mxu0 %v1460
  %1523 = vmatpush.msra.mxu0 %v1459
  %1524 = vmatmul.f32.gmra.mxu0 %v1357
  %v1525 = vpop.f32.mrf.mxu0
  %v1526 = vadd.f32 %v1507, %v1525
  %1527 = vdwg.mxu0
  %v1528 = vperm.slane %v1485, 0
  %1529 = vmatpush.msra.mxu0 0.0
  %1530 = vmatpush.msra.mxu0 0.0
  %1531 = vmatpush.msra.mxu0 0.0
  %1532 = vmatpush.msra.mxu0 0.0
  %1533 = vmatpush.msra.mxu0 %v1482
  %1534 = vmatpush.msra.mxu0 %v1481
  %1535 = vmatpush.msra.mxu0 %v1480
  %1536 = vmatpush.msra.mxu0 %v1479
  %1537 = vmatpush.msra.mxu0 %v1478
  %1538 = vmatpush.msra.mxu0 %v1477
  %1539 = vmatpush.msra.mxu0 %v1476
  %1540 = vmatpush.msra.mxu0 %v1475
  %1541 = vmatpush.msra.mxu0 %v1474
  %1542 = vmatpush.msra.mxu0 %v1473
  %1543 = vmatpush.msra.mxu0 %v1472
  %1544 = vmatpush.msra.mxu0 %v1471
  %1545 = vmatmul.f32.gmra.mxu0 %v1357
  %v1546 = vpop.f32.mrf.mxu0
  %v1547 = vadd.f32 %v1528, %v1546
  %1548 = vdwg.mxu0
  %v1549 = vadd.f32 %v1377, %v1505
  %v1550 = vxor.u32 %v1549, 2147483648
  %v1551 = vmul.f32 %v1550, 1.442695
  %v1552 = vpow.pop %v1551
  %v1553 = vadd.f32 %v1552, 1.0
  %v1554 = vrcp.pop %v1553
  %v1555 = vmul.f32 %v1553, %v1554
  %v1556 = vsub.f32 1.0, %v1555
  %v1557 = vmul.f32 %v1554, %v1556
  %v1558 = vadd.f32 %v1554, %v1557
  %vm1559 = vweird.f32 %v1553
  %vm1560 = vweird.f32 %v1554
  %vm1561 = vmor %vm1559, %vm1560
  %v1562 = vsel %vm1561, %v1554, %v1558
  %v1563 = vand.u32 2147483647, %v1553
  %vm1564 = vcmp.eq.f32.partialorder %v1563, 8.507059e+37
  %v1565 = vand.u32 %v1553, 2147483648
  %v1566 = vor.u32 1.1754944e-38, %v1565
  %v1567 = vsel %vm1564, %v1566, %v1562
  %v1568 = vmul.f32 1.0, %v1567
  %v1569 = vadd.f32 %v1411, %v1526
  %v1570 = vxor.u32 %v1569, 2147483648
  %v1571 = vmul.f32 %v1570, 1.442695
  %v1572 = vpow.pop %v1571
  %v1573 = vadd.f32 %v1572, 1.0
  %v1574 = vrcp.pop %v1573
  %v1575 = vmul.f32 %v1573, %v1574
  %v1576 = vsub.f32 1.0, %v1575
  %v1577 = vmul.f32 %v1574, %v1576
  %v1578 = vadd.f32 %v1574, %v1577
  %vm1579 = vweird.f32 %v1573
  %vm1580 = vweird.f32 %v1574
  %vm1581 = vmor %vm1579, %vm1580
  %v1582 = vsel %vm1581, %v1574, %v1578
  %v1583 = vand.u32 2147483647, %v1573
  %vm1584 = vcmp.eq.f32.partialorder %v1583, 8.507059e+37
  %v1585 = vand.u32 %v1573, 2147483648
  %v1586 = vor.u32 1.1754944e-38, %v1585
  %v1587 = vsel %vm1584, %v1586, %v1582
  %v1588 = vmul.f32 1.0, %v1587
  %v1589 = vmul.f32 %v1568, %v1547
  %v1590 = vadd.f32 %v1445, %v1589
  %v1591 = vtanh.pop %v1590
  %v1592 = vsub.f32 1.0, %v1588
  %v1593 = vmul.f32 %v1592, %v1591
  %v1594 = vmul.f32 %v1588, %v1339
  %v1595 = vadd.f32 %v1593, %v1594
  %1596 = vst.msk [vmem:[#allocation2] sm:$0xff] %vm1355, %v1595
  %v1598 = vsel %vm1355, %v1595, 0
  %1600 = vmatpush.msra.mxu0 0.0
  %1601 = vmatpush.msra.mxu0 0.0
  %1602 = vmatpush.msra.mxu0 0.0
  %1603 = vmatpush.msra.mxu0 0.0
  %1604 = vmatpush.msra.mxu0 %v1458
  %1605 = vmatpush.msra.mxu0 %v1457
  %1606 = vmatpush.msra.mxu0 %v1456
  %1607 = vmatpush.msra.mxu0 %v1455
  %1608 = vmatpush.msra.mxu0 %v1454
  %1609 = vmatpush.msra.mxu0 %v1453
  %1610 = vmatpush.msra.mxu0 %v1452
  %1611 = vmatpush.msra.mxu0 %v1451
  %1612 = vmatpush.msra.mxu0 %v1450
  %1613 = vmatpush.msra.mxu0 %v1449
  %1614 = vmatpush.msra.mxu0 %v1448
  %1615 = vmatpush.msra.mxu0 %v1447
  %1616 = vmatmul.f32.gmra.mxu0 %v1598
  %v1617 = vpop.f32.mrf.mxu0
  %v1618 = vadd.f32 %v1486, %v1617
  %1619 = vdwg.mxu0
  %1620 = vmatpush.msra.mxu0 0.0
  %1621 = vmatpush.msra.mxu0 0.0
  %1622 = vmatpush.msra.mxu0 0.0
  %1623 = vmatpush.msra.mxu0 0.0
  %1624 = vmatpush.msra.mxu0 %v1470
  %1625 = vmatpush.msra.mxu0 %v1469
  %1626 = vmatpush.msra.mxu0 %v1468
  %1627 = vmatpush.msra.mxu0 %v1467
  %1628 = vmatpush.msra.mxu0 %v1466
  %1629 = vmatpush.msra.mxu0 %v1465
  %1630 = vmatpush.msra.mxu0 %v1464
  %1631 = vmatpush.msra.mxu0 %v1463
  %1632 = vmatpush.msra.mxu0 %v1462
  %1633 = vmatpush.msra.mxu0 %v1461
  %1634 = vmatpush.msra.mxu0 %v1460
  %1635 = vmatpush.msra.mxu0 %v1459
  %1636 = vmatmul.f32.gmra.mxu0 %v1598
  %v1637 = vpop.f32.mrf.mxu0
  %v1638 = vadd.f32 %v1507, %v1637
  %1639 = vdwg.mxu0
  %1640 = vmatpush.msra.mxu0 0.0
  %1641 = vmatpush.msra.mxu0 0.0
  %1642 = vmatpush.msra.mxu0 0.0
  %1643 = vmatpush.msra.mxu0 0.0
  %1644 = vmatpush.msra.mxu0 %v1482
  %1645 = vmatpush.msra.mxu0 %v1481
  %1646 = vmatpush.msra.mxu0 %v1480
  %1647 = vmatpush.msra.mxu0 %v1479
  %1648 = vmatpush.msra.mxu0 %v1478
  %1649 = vmatpush.msra.mxu0 %v1477
  %1650 = vmatpush.msra.mxu0 %v1476
  %1651 = vmatpush.msra.mxu0 %v1475
  %1652 = vmatpush.msra.mxu0 %v1474
  %1653 = vmatpush.msra.mxu0 %v1473
  %1654 = vmatpush.msra.mxu0 %v1472
  %1655 = vmatpush.msra.mxu0 %v1471
  %1656 = vmatmul.f32.gmra.mxu0 %v1598
  %v1657 = vpop.f32.mrf.mxu0
  %v1658 = vadd.f32 %v1528, %v1657
  %1659 = vdwg.mxu0
  %v1660 = vadd.f32 %v1377, %v1618
  %v1661 = vxor.u32 %v1660, 2147483648
  %v1662 = vmul.f32 %v1661, 1.442695
  %v1663 = vpow.pop %v1662
  %v1664 = vadd.f32 %v1663, 1.0
  %v1665 = vrcp.pop %v1664
  %v1666 = vmul.f32 %v1664, %v1665
  %v1667 = vsub.f32 1.0, %v1666
  %v1668 = vmul.f32 %v1665, %v1667
  %v1669 = vadd.f32 %v1665, %v1668
  %vm1670 = vweird.f32 %v1664
  %vm1671 = vweird.f32 %v1665
  %vm1672 = vmor %vm1670, %vm1671
  %v1673 = vsel %vm1672, %v1665, %v1669
  %v1674 = vand.u32 2147483647, %v1664
  %vm1675 = vcmp.eq.f32.partialorder %v1674, 8.507059e+37
  %v1676 = vand.u32 %v1664, 2147483648
  %v1677 = vor.u32 1.1754944e-38, %v1676
  %v1678 = vsel %vm1675, %v1677, %v1673
  %v1679 = vmul.f32 1.0, %v1678
  %v1680 = vadd.f32 %v1411, %v1638
  %v1681 = vxor.u32 %v1680, 2147483648
  %v1682 = vmul.f32 %v1681, 1.442695
  %v1683 = vpow.pop %v1682
  %v1684 = vadd.f32 %v1683, 1.0
  %v1685 = vrcp.pop %v1684
  %v1686 = vmul.f32 %v1684, %v1685
  %v1687 = vsub.f32 1.0, %v1686
  %v1688 = vmul.f32 %v1685, %v1687
  %v1689 = vadd.f32 %v1685, %v1688
  %vm1690 = vweird.f32 %v1684
  %vm1691 = vweird.f32 %v1685
  %vm1692 = vmor %vm1690, %vm1691
  %v1693 = vsel %vm1692, %v1685, %v1689
  %v1694 = vand.u32 2147483647, %v1684
  %vm1695 = vcmp.eq.f32.partialorder %v1694, 8.507059e+37
  %v1696 = vand.u32 %v1684, 2147483648
  %v1697 = vor.u32 1.1754944e-38, %v1696
  %v1698 = vsel %vm1695, %v1697, %v1693
  %v1699 = vmul.f32 1.0, %v1698
  %v1700 = vmul.f32 %v1679, %v1658
  %v1701 = vadd.f32 %v1445, %v1700
  %v1702 = vtanh.pop %v1701
  %v1703 = vsub.f32 1.0, %v1699
  %v1704 = vmul.f32 %v1703, %v1702
  %v1705 = vmul.f32 %v1699, %v1595
  %v1706 = vadd.f32 %v1704, %v1705
  %1707 = vst.msk [vmem:[#allocation2 + $0x8] sm:$0xff] %vm1355, %v1706
  %v1709 = vsel %vm1355, %v1706, 0
  %1711 = vmatpush.msra.mxu0 0.0
  %1712 = vmatpush.msra.mxu0 0.0
  %1713 = vmatpush.msra.mxu0 0.0
  %1714 = vmatpush.msra.mxu0 0.0
  %1715 = vmatpush.msra.mxu0 %v1458
  %1716 = vmatpush.msra.mxu0 %v1457
  %1717 = vmatpush.msra.mxu0 %v1456
  %1718 = vmatpush.msra.mxu0 %v1455
  %1719 = vmatpush.msra.mxu0 %v1454
  %1720 = vmatpush.msra.mxu0 %v1453
  %1721 = vmatpush.msra.mxu0 %v1452
  %1722 = vmatpush.msra.mxu0 %v1451
  %1723 = vmatpush.msra.mxu0 %v1450
  %1724 = vmatpush.msra.mxu0 %v1449
  %1725 = vmatpush.msra.mxu0 %v1448
  %1726 = vmatpush.msra.mxu0 %v1447
  %1727 = vmatmul.f32.gmra.mxu0 %v1709
  %v1728 = vpop.f32.mrf.mxu0
  %v1729 = vadd.f32 %v1486, %v1728
  %1730 = vdwg.mxu0
  %1731 = vmatpush.msra.mxu0 0.0
  %1732 = vmatpush.msra.mxu0 0.0
  %1733 = vmatpush.msra.mxu0 0.0
  %1734 = vmatpush.msra.mxu0 0.0
  %1735 = vmatpush.msra.mxu0 %v1470
  %1736 = vmatpush.msra.mxu0 %v1469
  %1737 = vmatpush.msra.mxu0 %v1468
  %1738 = vmatpush.msra.mxu0 %v1467
  %1739 = vmatpush.msra.mxu0 %v1466
  %1740 = vmatpush.msra.mxu0 %v1465
  %1741 = vmatpush.msra.mxu0 %v1464
  %1742 = vmatpush.msra.mxu0 %v1463
  %1743 = vmatpush.msra.mxu0 %v1462
  %1744 = vmatpush.msra.mxu0 %v1461
  %1745 = vmatpush.msra.mxu0 %v1460
  %1746 = vmatpush.msra.mxu0 %v1459
  %1747 = vmatmul.f32.gmra.mxu0 %v1709
  %v1748 = vpop.f32.mrf.mxu0
  %v1749 = vadd.f32 %v1507, %v1748
  %1750 = vdwg.mxu0
  %1751 = vmatpush.msra.mxu0 0.0
  %1752 = vmatpush.msra.mxu0 0.0
  %1753 = vmatpush.msra.mxu0 0.0
  %1754 = vmatpush.msra.mxu0 0.0
  %1755 = vmatpush.msra.mxu0 %v1482
  %1756 = vmatpush.msra.mxu0 %v1481
  %1757 = vmatpush.msra.mxu0 %v1480
  %1758 = vmatpush.msra.mxu0 %v1479
  %1759 = vmatpush.msra.mxu0 %v1478
  %1760 = vmatpush.msra.mxu0 %v1477
  %1761 = vmatpush.msra.mxu0 %v1476
  %1762 = vmatpush.msra.mxu0 %v1475
  %1763 = vmatpush.msra.mxu0 %v1474
  %1764 = vmatpush.msra.mxu0 %v1473
  %1765 = vmatpush.msra.mxu0 %v1472
  %1766 = vmatpush.msra.mxu0 %v1471
  %1767 = vmatmul.f32.gmra.mxu0 %v1709
  %v1768 = vpop.f32.mrf.mxu0
  %v1769 = vadd.f32 %v1528, %v1768
  %1770 = vdwg.mxu0
  %v1771 = vadd.f32 %v1377, %v1729
  %v1772 = vxor.u32 %v1771, 2147483648
  %v1773 = vmul.f32 %v1772, 1.442695
  %v1774 = vpow.pop %v1773
  %v1775 = vadd.f32 %v1774, 1.0
  %v1776 = vrcp.pop %v1775
  %v1777 = vmul.f32 %v1775, %v1776
  %v1778 = vsub.f32 1.0, %v1777
  %v1779 = vmul.f32 %v1776, %v1778
  %v1780 = vadd.f32 %v1776, %v1779
  %vm1781 = vweird.f32 %v1775
  %vm1782 = vweird.f32 %v1776
  %vm1783 = vmor %vm1781, %vm1782
  %v1784 = vsel %vm1783, %v1776, %v1780
  %v1785 = vand.u32 2147483647, %v1775
  %vm1786 = vcmp.eq.f32.partialorder %v1785, 8.507059e+37
  %v1787 = vand.u32 %v1775, 2147483648
  %v1788 = vor.u32 1.1754944e-38, %v1787
  %v1789 = vsel %vm1786, %v1788, %v1784
  %v1790 = vmul.f32 1.0, %v1789
  %v1791 = vadd.f32 %v1411, %v1749
  %v1792 = vxor.u32 %v1791, 2147483648
  %v1793 = vmul.f32 %v1792, 1.442695
  %v1794 = vpow.pop %v1793
  %v1795 = vadd.f32 %v1794, 1.0
  %v1796 = vrcp.pop %v1795
  %v1797 = vmul.f32 %v1795, %v1796
  %v1798 = vsub.f32 1.0, %v1797
  %v1799 = vmul.f32 %v1796, %v1798
  %v1800 = vadd.f32 %v1796, %v1799
  %vm1801 = vweird.f32 %v1795
  %vm1802 = vweird.f32 %v1796
  %vm1803 = vmor %vm1801, %vm1802
  %v1804 = vsel %vm1803, %v1796, %v1800
  %v1805 = vand.u32 2147483647, %v1795
  %vm1806 = vcmp.eq.f32.partialorder %v1805, 8.507059e+37
  %v1807 = vand.u32 %v1795, 2147483648
  %v1808 = vor.u32 1.1754944e-38, %v1807
  %v1809 = vsel %vm1806, %v1808, %v1804
  %v1810 = vmul.f32 1.0, %v1809
  %v1811 = vmul.f32 %v1790, %v1769
  %v1812 = vadd.f32 %v1445, %v1811
  %v1813 = vtanh.pop %v1812
  %v1814 = vsub.f32 1.0, %v1810
  %v1815 = vmul.f32 %v1814, %v1813
  %v1816 = vmul.f32 %v1810, %v1706
  %v1817 = vadd.f32 %v1815, %v1816
  %1818 = vst.msk [vmem:[#allocation2 + $0x10] sm:$0xff] %vm1355, %v1817
  %v1820 = vsel %vm1355, %v1817, 0
  %1822 = vmatpush.msra.mxu0 0.0
  %1823 = vmatpush.msra.mxu0 0.0
  %1824 = vmatpush.msra.mxu0 0.0
  %1825 = vmatpush.msra.mxu0 0.0
  %1826 = vmatpush.msra.mxu0 %v1458
  %1827 = vmatpush.msra.mxu0 %v1457
  %1828 = vmatpush.msra.mxu0 %v1456
  %1829 = vmatpush.msra.mxu0 %v1455
  %1830 = vmatpush.msra.mxu0 %v1454
  %1831 = vmatpush.msra.mxu0 %v1453
  %1832 = vmatpush.msra.mxu0 %v1452
  %1833 = vmatpush.msra.mxu0 %v1451
  %1834 = vmatpush.msra.mxu0 %v1450
  %1835 = vmatpush.msra.mxu0 %v1449
  %1836 = vmatpush.msra.mxu0 %v1448
  %1837 = vmatpush.msra.mxu0 %v1447
  %1838 = vmatmul.f32.gmra.mxu0 %v1820
  %v1839 = vpop.f32.mrf.mxu0
  %v1840 = vadd.f32 %v1486, %v1839
  %1841 = vdwg.mxu0
  %1842 = vmatpush.msra.mxu0 0.0
  %1843 = vmatpush.msra.mxu0 0.0
  %1844 = vmatpush.msra.mxu0 0.0
  %1845 = vmatpush.msra.mxu0 0.0
  %1846 = vmatpush.msra.mxu0 %v1470
  %1847 = vmatpush.msra.mxu0 %v1469
  %1848 = vmatpush.msra.mxu0 %v1468
  %1849 = vmatpush.msra.mxu0 %v1467
  %1850 = vmatpush.msra.mxu0 %v1466
  %1851 = vmatpush.msra.mxu0 %v1465
  %1852 = vmatpush.msra.mxu0 %v1464
  %1853 = vmatpush.msra.mxu0 %v1463
  %1854 = vmatpush.msra.mxu0 %v1462
  %1855 = vmatpush.msra.mxu0 %v1461
  %1856 = vmatpush.msra.mxu0 %v1460
  %1857 = vmatpush.msra.mxu0 %v1459
  %1858 = vmatmul.f32.gmra.mxu0 %v1820
  %v1859 = vpop.f32.mrf.mxu0
  %v1860 = vadd.f32 %v1507, %v1859
  %1861 = vdwg.mxu0
  %1862 = vmatpush.msra.mxu0 0.0
  %1863 = vmatpush.msra.mxu0 0.0
  %1864 = vmatpush.msra.mxu0 0.0
  %1865 = vmatpush.msra.mxu0 0.0
  %1866 = vmatpush.msra.mxu0 %v1482
  %1867 = vmatpush.msra.mxu0 %v1481
  %1868 = vmatpush.msra.mxu0 %v1480
  %1869 = vmatpush.msra.mxu0 %v1479
  %1870 = vmatpush.msra.mxu0 %v1478
  %1871 = vmatpush.msra.mxu0 %v1477
  %1872 = vmatpush.msra.mxu0 %v1476
  %1873 = vmatpush.msra.mxu0 %v1475
  %1874 = vmatpush.msra.mxu0 %v1474
  %1875 = vmatpush.msra.mxu0 %v1473
  %1876 = vmatpush.msra.mxu0 %v1472
  %1877 = vmatpush.msra.mxu0 %v1471
  %1878 = vmatmul.f32.gmra.mxu0 %v1820
  %v1879 = vpop.f32.mrf.mxu0
  %v1880 = vadd.f32 %v1528, %v1879
  %1881 = vdwg.mxu0
  %v1882 = vadd.f32 %v1377, %v1840
  %v1883 = vxor.u32 %v1882, 2147483648
  %v1884 = vmul.f32 %v1883, 1.442695
  %v1885 = vpow.pop %v1884
  %v1886 = vadd.f32 %v1885, 1.0
  %v1887 = vrcp.pop %v1886
  %v1888 = vmul.f32 %v1886, %v1887
  %v1889 = vsub.f32 1.0, %v1888
  %v1890 = vmul.f32 %v1887, %v1889
  %v1891 = vadd.f32 %v1887, %v1890
  %vm1892 = vweird.f32 %v1886
  %vm1893 = vweird.f32 %v1887
  %vm1894 = vmor %vm1892, %vm1893
  %v1895 = vsel %vm1894, %v1887, %v1891
  %v1896 = vand.u32 2147483647, %v1886
  %vm1897 = vcmp.eq.f32.partialorder %v1896, 8.507059e+37
  %v1898 = vand.u32 %v1886, 2147483648
  %v1899 = vor.u32 1.1754944e-38, %v1898
  %v1900 = vsel %vm1897, %v1899, %v1895
  %v1901 = vmul.f32 1.0, %v1900
  %v1902 = vadd.f32 %v1411, %v1860
  %v1903 = vxor.u32 %v1902, 2147483648
  %v1904 = vmul.f32 %v1903, 1.442695
  %v1905 = vpow.pop %v1904
  %v1906 = vadd.f32 %v1905, 1.0
  %v1907 = vrcp.pop %v1906
  %v1908 = vmul.f32 %v1906, %v1907
  %v1909 = vsub.f32 1.0, %v1908
  %v1910 = vmul.f32 %v1907, %v1909
  %v1911 = vadd.f32 %v1907, %v1910
  %vm1912 = vweird.f32 %v1906
  %vm1913 = vweird.f32 %v1907
  %vm1914 = vmor %vm1912, %vm1913
  %v1915 = vsel %vm1914, %v1907, %v1911
  %v1916 = vand.u32 2147483647, %v1906
  %vm1917 = vcmp.eq.f32.partialorder %v1916, 8.507059e+37
  %v1918 = vand.u32 %v1906, 2147483648
  %v1919 = vor.u32 1.1754944e-38, %v1918
  %v1920 = vsel %vm1917, %v1919, %v1915
  %v1921 = vmul.f32 1.0, %v1920
  %v1922 = vmul.f32 %v1901, %v1880
  %v1923 = vadd.f32 %v1445, %v1922
  %v1924 = vtanh.pop %v1923
  %v1925 = vsub.f32 1.0, %v1921
  %v1926 = vmul.f32 %v1925, %v1924
  %v1927 = vmul.f32 %v1921, %v1817
  %v1928 = vadd.f32 %v1926, %v1927
  %1929 = vst.msk [vmem:[#allocation2 + $0x18] sm:$0xff] %vm1355, %v1928
  %v1931 = vsel %vm1355, %v1928, 0
  %1933 = vmatpush.msra.mxu0 0.0
  %1934 = vmatpush.msra.mxu0 0.0
  %1935 = vmatpush.msra.mxu0 0.0
  %1936 = vmatpush.msra.mxu0 0.0
  %1937 = vmatpush.msra.mxu0 %v1458
  %1938 = vmatpush.msra.mxu0 %v1457
  %1939 = vmatpush.msra.mxu0 %v1456
  %1940 = vmatpush.msra.mxu0 %v1455
  %1941 = vmatpush.msra.mxu0 %v1454
  %1942 = vmatpush.msra.mxu0 %v1453
  %1943 = vmatpush.msra.mxu0 %v1452
  %1944 = vmatpush.msra.mxu0 %v1451
  %1945 = vmatpush.msra.mxu0 %v1450
  %1946 = vmatpush.msra.mxu0 %v1449
  %1947 = vmatpush.msra.mxu0 %v1448
  %1948 = vmatpush.msra.mxu0 %v1447
  %1949 = vmatmul.f32.gmra.mxu0 %v1931
  %v1950 = vpop.f32.mrf.mxu0
  %v1951 = vadd.f32 %v1486, %v1950
  %1952 = vdwg.mxu0
  %1953 = vmatpush.msra.mxu0 0.0
  %1954 = vmatpush.msra.mxu0 0.0
  %1955 = vmatpush.msra.mxu0 0.0
  %1956 = vmatpush.msra.mxu0 0.0
  %1957 = vmatpush.msra.mxu0 %v1470
  %1958 = vmatpush.msra.mxu0 %v1469
  %1959 = vmatpush.msra.mxu0 %v1468
  %1960 = vmatpush.msra.mxu0 %v1467
  %1961 = vmatpush.msra.mxu0 %v1466
  %1962 = vmatpush.msra.mxu0 %v1465
  %1963 = vmatpush.msra.mxu0 %v1464
  %1964 = vmatpush.msra.mxu0 %v1463
  %1965 = vmatpush.msra.mxu0 %v1462
  %1966 = vmatpush.msra.mxu0 %v1461
  %1967 = vmatpush.msra.mxu0 %v1460
  %1968 = vmatpush.msra.mxu0 %v1459
  %1969 = vmatmul.f32.gmra.mxu0 %v1931
  %v1970 = vpop.f32.mrf.mxu0
  %v1971 = vadd.f32 %v1507, %v1970
  %1972 = vdwg.mxu0
  %1973 = vmatpush.msra.mxu0 0.0
  %1974 = vmatpush.msra.mxu0 0.0
  %1975 = vmatpush.msra.mxu0 0.0
  %1976 = vmatpush.msra.mxu0 0.0
  %1977 = vmatpush.msra.mxu0 %v1482
  %1978 = vmatpush.msra.mxu0 %v1481
  %1979 = vmatpush.msra.mxu0 %v1480
  %1980 = vmatpush.msra.mxu0 %v1479
  %1981 = vmatpush.msra.mxu0 %v1478
  %1982 = vmatpush.msra.mxu0 %v1477
  %1983 = vmatpush.msra.mxu0 %v1476
  %1984 = vmatpush.msra.mxu0 %v1475
  %1985 = vmatpush.msra.mxu0 %v1474
  %1986 = vmatpush.msra.mxu0 %v1473
  %1987 = vmatpush.msra.mxu0 %v1472
  %1988 = vmatpush.msra.mxu0 %v1471
  %1989 = vmatmul.f32.gmra.mxu0 %v1931
  %v1990 = vpop.f32.mrf.mxu0
  %v1991 = vadd.f32 %v1528, %v1990
  %1992 = vdwg.mxu0
  %v1993 = vadd.f32 %v1377, %v1951
  %v1994 = vxor.u32 %v1993, 2147483648
  %v1995 = vmul.f32 %v1994, 1.442695
  %v1996 = vpow.pop %v1995
  %v1997 = vadd.f32 %v1996, 1.0
  %v1998 = vrcp.pop %v1997
  %v1999 = vmul.f32 %v1997, %v1998
  %v2000 = vsub.f32 1.0, %v1999
  %v2001 = vmul.f32 %v1998, %v2000
  %v2002 = vadd.f32 %v1998, %v2001
  %vm2003 = vweird.f32 %v1997
  %vm2004 = vweird.f32 %v1998
  %vm2005 = vmor %vm2003, %vm2004
  %v2006 = vsel %vm2005, %v1998, %v2002
  %v2007 = vand.u32 2147483647, %v1997
  %vm2008 = vcmp.eq.f32.partialorder %v2007, 8.507059e+37
  %v2009 = vand.u32 %v1997, 2147483648
  %v2010 = vor.u32 1.1754944e-38, %v2009
  %v2011 = vsel %vm2008, %v2010, %v2006
  %v2012 = vmul.f32 1.0, %v2011
  %v2013 = vadd.f32 %v1411, %v1971
  %v2014 = vxor.u32 %v2013, 2147483648
  %v2015 = vmul.f32 %v2014, 1.442695
  %v2016 = vpow.pop %v2015
  %v2017 = vadd.f32 %v2016, 1.0
  %v2018 = vrcp.pop %v2017
  %v2019 = vmul.f32 %v2017, %v2018
  %v2020 = vsub.f32 1.0, %v2019
  %v2021 = vmul.f32 %v2018, %v2020
  %v2022 = vadd.f32 %v2018, %v2021
  %vm2023 = vweird.f32 %v2017
  %vm2024 = vweird.f32 %v2018
  %vm2025 = vmor %vm2023, %vm2024
  %v2026 = vsel %vm2025, %v2018, %v2022
  %v2027 = vand.u32 2147483647, %v2017
  %vm2028 = vcmp.eq.f32.partialorder %v2027, 8.507059e+37
  %v2029 = vand.u32 %v2017, 2147483648
  %v2030 = vor.u32 1.1754944e-38, %v2029
  %v2031 = vsel %vm2028, %v2030, %v2026
  %v2032 = vmul.f32 1.0, %v2031
  %v2033 = vmul.f32 %v2012, %v1991
  %v2034 = vadd.f32 %v1445, %v2033
  %v2035 = vtanh.pop %v2034
  %v2036 = vsub.f32 1.0, %v2032
  %v2037 = vmul.f32 %v2036, %v2035
  %v2038 = vmul.f32 %v2032, %v1928
  %v2039 = vadd.f32 %v2037, %v2038
  %2040 = vst.msk [vmem:[#allocation2 + $0x20] sm:$0xff] %vm1355, %v2039
  %v2042 = vsel %vm1355, %v2039, 0
  %2044 = vmatpush.msra.mxu0 0.0
  %2045 = vmatpush.msra.mxu0 0.0
  %2046 = vmatpush.msra.mxu0 0.0
  %2047 = vmatpush.msra.mxu0 0.0
  %2048 = vmatpush.msra.mxu0 %v1458
  %2049 = vmatpush.msra.mxu0 %v1457
  %2050 = vmatpush.msra.mxu0 %v1456
  %2051 = vmatpush.msra.mxu0 %v1455
  %2052 = vmatpush.msra.mxu0 %v1454
  %2053 = vmatpush.msra.mxu0 %v1453
  %2054 = vmatpush.msra.mxu0 %v1452
  %2055 = vmatpush.msra.mxu0 %v1451
  %2056 = vmatpush.msra.mxu0 %v1450
  %2057 = vmatpush.msra.mxu0 %v1449
  %2058 = vmatpush.msra.mxu0 %v1448
  %2059 = vmatpush.msra.mxu0 %v1447
  %2060 = vmatmul.f32.gmra.mxu0 %v2042
  %v2061 = vpop.f32.mrf.mxu0
  %v2062 = vadd.f32 %v1486, %v2061
  %2063 = vdwg.mxu0
  %2064 = vmatpush.msra.mxu0 0.0
  %2065 = vmatpush.msra.mxu0 0.0
  %2066 = vmatpush.msra.mxu0 0.0
  %2067 = vmatpush.msra.mxu0 0.0
  %2068 = vmatpush.msra.mxu0 %v1470
  %2069 = vmatpush.msra.mxu0 %v1469
  %2070 = vmatpush.msra.mxu0 %v1468
  %2071 = vmatpush.msra.mxu0 %v1467
  %2072 = vmatpush.msra.mxu0 %v1466
  %2073 = vmatpush.msra.mxu0 %v1465
  %2074 = vmatpush.msra.mxu0 %v1464
  %2075 = vmatpush.msra.mxu0 %v1463
  %2076 = vmatpush.msra.mxu0 %v1462
  %2077 = vmatpush.msra.mxu0 %v1461
  %2078 = vmatpush.msra.mxu0 %v1460
  %2079 = vmatpush.msra.mxu0 %v1459
  %2080 = vmatmul.f32.gmra.mxu0 %v2042
  %v2081 = vpop.f32.mrf.mxu0
  %v2082 = vadd.f32 %v1507, %v2081
  %2083 = vdwg.mxu0
  %2084 = vmatpush.msra.mxu0 0.0
  %2085 = vmatpush.msra.mxu0 0.0
  %2086 = vmatpush.msra.mxu0 0.0
  %2087 = vmatpush.msra.mxu0 0.0
  %2088 = vmatpush.msra.mxu0 %v1482
  %2089 = vmatpush.msra.mxu0 %v1481
  %2090 = vmatpush.msra.mxu0 %v1480
  %2091 = vmatpush.msra.mxu0 %v1479
  %2092 = vmatpush.msra.mxu0 %v1478
  %2093 = vmatpush.msra.mxu0 %v1477
  %2094 = vmatpush.msra.mxu0 %v1476
  %2095 = vmatpush.msra.mxu0 %v1475
  %2096 = vmatpush.msra.mxu0 %v1474
  %2097 = vmatpush.msra.mxu0 %v1473
  %2098 = vmatpush.msra.mxu0 %v1472
  %2099 = vmatpush.msra.mxu0 %v1471
  %2100 = vmatmul.f32.gmra.mxu0 %v2042
  %v2101 = vpop.f32.mrf.mxu0
  %v2102 = vadd.f32 %v1528, %v2101
  %2103 = vdwg.mxu0
  %v2104 = vadd.f32 %v1377, %v2062
  %v2105 = vxor.u32 %v2104, 2147483648
  %v2106 = vmul.f32 %v2105, 1.442695
  %v2107 = vpow.pop %v2106
  %v2108 = vadd.f32 %v2107, 1.0
  %v2109 = vrcp.pop %v2108
  %v2110 = vmul.f32 %v2108, %v2109
  %v2111 = vsub.f32 1.0, %v2110
  %v2112 = vmul.f32 %v2109, %v2111
  %v2113 = vadd.f32 %v2109, %v2112
  %vm2114 = vweird.f32 %v2108
  %vm2115 = vweird.f32 %v2109
  %vm2116 = vmor %vm2114, %vm2115
  %v2117 = vsel %vm2116, %v2109, %v2113
  %v2118 = vand.u32 2147483647, %v2108
  %vm2119 = vcmp.eq.f32.partialorder %v2118, 8.507059e+37
  %v2120 = vand.u32 %v2108, 2147483648
  %v2121 = vor.u32 1.1754944e-38, %v2120
  %v2122 = vsel %vm2119, %v2121, %v2117
  %v2123 = vmul.f32 1.0, %v2122
  %v2124 = vadd.f32 %v1411, %v2082
  %v2125 = vxor.u32 %v2124, 2147483648
  %v2126 = vmul.f32 %v2125, 1.442695
  %v2127 = vpow.pop %v2126
  %v2128 = vadd.f32 %v2127, 1.0
  %v2129 = vrcp.pop %v2128
  %v2130 = vmul.f32 %v2128, %v2129
  %v2131 = vsub.f32 1.0, %v2130
  %v2132 = vmul.f32 %v2129, %v2131
  %v2133 = vadd.f32 %v2129, %v2132
  %vm2134 = vweird.f32 %v2128
  %vm2135 = vweird.f32 %v2129
  %vm2136 = vmor %vm2134, %vm2135
  %v2137 = vsel %vm2136, %v2129, %v2133
  %v2138 = vand.u32 2147483647, %v2128
  %vm2139 = vcmp.eq.f32.partialorder %v2138, 8.507059e+37
  %v2140 = vand.u32 %v2128, 2147483648
  %v2141 = vor.u32 1.1754944e-38, %v2140
  %v2142 = vsel %vm2139, %v2141, %v2137
  %v2143 = vmul.f32 1.0, %v2142
  %v2144 = vmul.f32 %v2123, %v2102
  %v2145 = vadd.f32 %v1445, %v2144
  %v2146 = vtanh.pop %v2145
  %v2147 = vsub.f32 1.0, %v2143
  %v2148 = vmul.f32 %v2147, %v2146
  %v2149 = vmul.f32 %v2143, %v2039
  %v2150 = vadd.f32 %v2148, %v2149
  %2151 = vst.msk [vmem:[#allocation2 + $0x28] sm:$0xff] %vm1355, %v2150
  %v2153 = vsel %vm1355, %v2150, 0
  %2155 = vmatpush.msra.mxu0 0.0
  %2156 = vmatpush.msra.mxu0 0.0
  %2157 = vmatpush.msra.mxu0 0.0
  %2158 = vmatpush.msra.mxu0 0.0
  %2159 = vmatpush.msra.mxu0 %v1458
  %2160 = vmatpush.msra.mxu0 %v1457
  %2161 = vmatpush.msra.mxu0 %v1456
  %2162 = vmatpush.msra.mxu0 %v1455
  %2163 = vmatpush.msra.mxu0 %v1454
  %2164 = vmatpush.msra.mxu0 %v1453
  %2165 = vmatpush.msra.mxu0 %v1452
  %2166 = vmatpush.msra.mxu0 %v1451
  %2167 = vmatpush.msra.mxu0 %v1450
  %2168 = vmatpush.msra.mxu0 %v1449
  %2169 = vmatpush.msra.mxu0 %v1448
  %2170 = vmatpush.msra.mxu0 %v1447
  %2171 = vmatmul.f32.gmra.mxu0 %v2153
  %v2172 = vpop.f32.mrf.mxu0
  %v2173 = vadd.f32 %v1486, %v2172
  %2174 = vdwg.mxu0
  %2175 = vmatpush.msra.mxu0 0.0
  %2176 = vmatpush.msra.mxu0 0.0
  %2177 = vmatpush.msra.mxu0 0.0
  %2178 = vmatpush.msra.mxu0 0.0
  %2179 = vmatpush.msra.mxu0 %v1470
  %2180 = vmatpush.msra.mxu0 %v1469
  %2181 = vmatpush.msra.mxu0 %v1468
  %2182 = vmatpush.msra.mxu0 %v1467
  %2183 = vmatpush.msra.mxu0 %v1466
  %2184 = vmatpush.msra.mxu0 %v1465
  %2185 = vmatpush.msra.mxu0 %v1464
  %2186 = vmatpush.msra.mxu0 %v1463
  %2187 = vmatpush.msra.mxu0 %v1462
  %2188 = vmatpush.msra.mxu0 %v1461
  %2189 = vmatpush.msra.mxu0 %v1460
  %2190 = vmatpush.msra.mxu0 %v1459
  %2191 = vmatmul.f32.gmra.mxu0 %v2153
  %v2192 = vpop.f32.mrf.mxu0
  %v2193 = vadd.f32 %v1507, %v2192
  %2194 = vdwg.mxu0
  %2195 = vmatpush.msra.mxu0 0.0
  %2196 = vmatpush.msra.mxu0 0.0
  %2197 = vmatpush.msra.mxu0 0.0
  %2198 = vmatpush.msra.mxu0 0.0
  %2199 = vmatpush.msra.mxu0 %v1482
  %2200 = vmatpush.msra.mxu0 %v1481
  %2201 = vmatpush.msra.mxu0 %v1480
  %2202 = vmatpush.msra.mxu0 %v1479
  %2203 = vmatpush.msra.mxu0 %v1478
  %2204 = vmatpush.msra.mxu0 %v1477
  %2205 = vmatpush.msra.mxu0 %v1476
  %2206 = vmatpush.msra.mxu0 %v1475
  %2207 = vmatpush.msra.mxu0 %v1474
  %2208 = vmatpush.msra.mxu0 %v1473
  %2209 = vmatpush.msra.mxu0 %v1472
  %2210 = vmatpush.msra.mxu0 %v1471
  %2211 = vmatmul.f32.gmra.mxu0 %v2153
  %v2212 = vpop.f32.mrf.mxu0
  %v2213 = vadd.f32 %v1528, %v2212
  %2214 = vdwg.mxu0
  %v2215 = vadd.f32 %v1377, %v2173
  %v2216 = vxor.u32 %v2215, 2147483648
  %v2217 = vmul.f32 %v2216, 1.442695
  %v2218 = vpow.pop %v2217
  %v2219 = vadd.f32 %v2218, 1.0
  %v2220 = vrcp.pop %v2219
  %v2221 = vmul.f32 %v2219, %v2220
  %v2222 = vsub.f32 1.0, %v2221
  %v2223 = vmul.f32 %v2220, %v2222
  %v2224 = vadd.f32 %v2220, %v2223
  %vm2225 = vweird.f32 %v2219
  %vm2226 = vweird.f32 %v2220
  %vm2227 = vmor %vm2225, %vm2226
  %v2228 = vsel %vm2227, %v2220, %v2224
  %v2229 = vand.u32 2147483647, %v2219
  %vm2230 = vcmp.eq.f32.partialorder %v2229, 8.507059e+37
  %v2231 = vand.u32 %v2219, 2147483648
  %v2232 = vor.u32 1.1754944e-38, %v2231
  %v2233 = vsel %vm2230, %v2232, %v2228
  %v2234 = vmul.f32 1.0, %v2233
  %v2235 = vadd.f32 %v1411, %v2193
  %v2236 = vxor.u32 %v2235, 2147483648
  %v2237 = vmul.f32 %v2236, 1.442695
  %v2238 = vpow.pop %v2237
  %v2239 = vadd.f32 %v2238, 1.0
  %v2240 = vrcp.pop %v2239
  %v2241 = vmul.f32 %v2239, %v2240
  %v2242 = vsub.f32 1.0, %v2241
  %v2243 = vmul.f32 %v2240, %v2242
  %v2244 = vadd.f32 %v2240, %v2243
  %vm2245 = vweird.f32 %v2239
  %vm2246 = vweird.f32 %v2240
  %vm2247 = vmor %vm2245, %vm2246
  %v2248 = vsel %vm2247, %v2240, %v2244
  %v2249 = vand.u32 2147483647, %v2239
  %vm2250 = vcmp.eq.f32.partialorder %v2249, 8.507059e+37
  %v2251 = vand.u32 %v2239, 2147483648
  %v2252 = vor.u32 1.1754944e-38, %v2251
  %v2253 = vsel %vm2250, %v2252, %v2248
  %v2254 = vmul.f32 1.0, %v2253
  %v2255 = vmul.f32 %v2234, %v2213
  %v2256 = vadd.f32 %v1445, %v2255
  %v2257 = vtanh.pop %v2256
  %v2258 = vsub.f32 1.0, %v2254
  %v2259 = vmul.f32 %v2258, %v2257
  %v2260 = vmul.f32 %v2254, %v2150
  %v2261 = vadd.f32 %v2259, %v2260
  %2262 = vst.msk [vmem:[#allocation2 + $0x30] sm:$0xff] %vm1355, %v2261
  %v2264 = vsel %vm1355, %v2261, 0
  %2266 = vmatpush.msra.mxu0 0.0
  %2267 = vmatpush.msra.mxu0 0.0
  %2268 = vmatpush.msra.mxu0 0.0
  %2269 = vmatpush.msra.mxu0 0.0
  %2270 = vmatpush.msra.mxu0 %v1458
  %2271 = vmatpush.msra.mxu0 %v1457
  %2272 = vmatpush.msra.mxu0 %v1456
  %2273 = vmatpush.msra.mxu0 %v1455
  %2274 = vmatpush.msra.mxu0 %v1454
  %2275 = vmatpush.msra.mxu0 %v1453
  %2276 = vmatpush.msra.mxu0 %v1452
  %2277 = vmatpush.msra.mxu0 %v1451
  %2278 = vmatpush.msra.mxu0 %v1450
  %2279 = vmatpush.msra.mxu0 %v1449
  %2280 = vmatpush.msra.mxu0 %v1448
  %2281 = vmatpush.msra.mxu0 %v1447
  %2282 = vmatmul.f32.gmra.mxu0 %v2264
  %v2283 = vpop.f32.mrf.mxu0
  %v2284 = vadd.f32 %v1486, %v2283
  %2285 = vdwg.mxu0
  %2286 = vmatpush.msra.mxu0 0.0
  %2287 = vmatpush.msra.mxu0 0.0
  %2288 = vmatpush.msra.mxu0 0.0
  %2289 = vmatpush.msra.mxu0 0.0
  %2290 = vmatpush.msra.mxu0 %v1470
  %2291 = vmatpush.msra.mxu0 %v1469
  %2292 = vmatpush.msra.mxu0 %v1468
  %2293 = vmatpush.msra.mxu0 %v1467
  %2294 = vmatpush.msra.mxu0 %v1466
  %2295 = vmatpush.msra.mxu0 %v1465
  %2296 = vmatpush.msra.mxu0 %v1464
  %2297 = vmatpush.msra.mxu0 %v1463
  %2298 = vmatpush.msra.mxu0 %v1462
  %2299 = vmatpush.msra.mxu0 %v1461
  %2300 = vmatpush.msra.mxu0 %v1460
  %2301 = vmatpush.msra.mxu0 %v1459
  %2302 = vmatmul.f32.gmra.mxu0 %v2264
  %v2303 = vpop.f32.mrf.mxu0
  %v2304 = vadd.f32 %v1507, %v2303
  %2305 = vdwg.mxu0
  %2306 = vmatpush.msra.mxu0 0.0
  %2307 = vmatpush.msra.mxu0 0.0
  %2308 = vmatpush.msra.mxu0 0.0
  %2309 = vmatpush.msra.mxu0 0.0
  %2310 = vmatpush.msra.mxu0 %v1482
  %2311 = vmatpush.msra.mxu0 %v1481
  %2312 = vmatpush.msra.mxu0 %v1480
  %2313 = vmatpush.msra.mxu0 %v1479
  %2314 = vmatpush.msra.mxu0 %v1478
  %2315 = vmatpush.msra.mxu0 %v1477
  %2316 = vmatpush.msra.mxu0 %v1476
  %2317 = vmatpush.msra.mxu0 %v1475
  %2318 = vmatpush.msra.mxu0 %v1474
  %2319 = vmatpush.msra.mxu0 %v1473
  %2320 = vmatpush.msra.mxu0 %v1472
  %2321 = vmatpush.msra.mxu0 %v1471
  %2322 = vmatmul.f32.gmra.mxu0 %v2264
  %v2323 = vpop.f32.mrf.mxu0
  %v2324 = vadd.f32 %v1528, %v2323
  %2325 = vdwg.mxu0
  %v2326 = vadd.f32 %v1377, %v2284
  %v2327 = vxor.u32 %v2326, 2147483648
  %v2328 = vmul.f32 %v2327, 1.442695
  %v2329 = vpow.pop %v2328
  %v2330 = vadd.f32 %v2329, 1.0
  %v2331 = vrcp.pop %v2330
  %v2332 = vmul.f32 %v2330, %v2331
  %v2333 = vsub.f32 1.0, %v2332
  %v2334 = vmul.f32 %v2331, %v2333
  %v2335 = vadd.f32 %v2331, %v2334
  %vm2336 = vweird.f32 %v2330
  %vm2337 = vweird.f32 %v2331
  %vm2338 = vmor %vm2336, %vm2337
  %v2339 = vsel %vm2338, %v2331, %v2335
  %v2340 = vand.u32 2147483647, %v2330
  %vm2341 = vcmp.eq.f32.partialorder %v2340, 8.507059e+37
  %v2342 = vand.u32 %v2330, 2147483648
  %v2343 = vor.u32 1.1754944e-38, %v2342
  %v2344 = vsel %vm2341, %v2343, %v2339
  %v2345 = vmul.f32 1.0, %v2344
  %v2346 = vadd.f32 %v1411, %v2304
  %v2347 = vxor.u32 %v2346, 2147483648
  %v2348 = vmul.f32 %v2347, 1.442695
  %v2349 = vpow.pop %v2348
  %v2350 = vadd.f32 %v2349, 1.0
  %v2351 = vrcp.pop %v2350
  %v2352 = vmul.f32 %v2350, %v2351
  %v2353 = vsub.f32 1.0, %v2352
  %v2354 = vmul.f32 %v2351, %v2353
  %v2355 = vadd.f32 %v2351, %v2354
  %vm2356 = vweird.f32 %v2350
  %vm2357 = vweird.f32 %v2351
  %vm2358 = vmor %vm2356, %vm2357
  %v2359 = vsel %vm2358, %v2351, %v2355
  %v2360 = vand.u32 2147483647, %v2350
  %vm2361 = vcmp.eq.f32.partialorder %v2360, 8.507059e+37
  %v2362 = vand.u32 %v2350, 2147483648
  %v2363 = vor.u32 1.1754944e-38, %v2362
  %v2364 = vsel %vm2361, %v2363, %v2359
  %v2365 = vmul.f32 1.0, %v2364
  %v2366 = vmul.f32 %v2345, %v2324
  %v2367 = vadd.f32 %v1445, %v2366
  %v2368 = vtanh.pop %v2367
  %v2369 = vsub.f32 1.0, %v2365
  %v2370 = vmul.f32 %v2369, %v2368
  %v2371 = vmul.f32 %v2365, %v2261
  %v2372 = vadd.f32 %v2370, %v2371
  %2373 = vst.msk [vmem:[#allocation2 + $0x38] sm:$0xff] %vm1355, %v2372
  %v2374 = vld [vmem:[#allocation2] sm:$0xff]
  %v2375 = vld [vmem:[#allocation2 + $0x8] sm:$0xff]
  %v2376 = vld [vmem:[#allocation2 + $0x10] sm:$0xff]
  %v2377 = vld [vmem:[#allocation2 + $0x18] sm:$0xff]
  %v2378 = vld [vmem:[#allocation2 + $0x20] sm:$0xff]
  %v2379 = vld [vmem:[#allocation2 + $0x28] sm:$0xff]
  %v2380 = vld [vmem:[#allocation2 + $0x30] sm:$0xff]
  %v2381 = vld [vmem:[#allocation2 + $0x38] sm:$0xff]
  %v2382 = vld [vmem:[%s1 + $0x208] sm:$0xff]
  %v2383 = vld [vmem:[%s1 + $0x210] sm:$0xff]
  %v2384 = vld [vmem:[%s1 + $0x218] sm:$0xff]
  %v2385 = vld [vmem:[%s1 + $0x220] sm:$0xff]
  %v2386 = vld [vmem:[%s1 + $0x228] sm:$0xff]
  %v2387 = vld [vmem:[%s1 + $0x230] sm:$0xff]
  %v2388 = vld [vmem:[%s1 + $0x238] sm:$0xff]
  %v2389 = vld [vmem:[%s1 + $0x240] sm:$0xff]
  %v2390 = vld [vmem:[%s1 + $0x248] sm:$0xff]
  %v2391 = vld [vmem:[%s1 + $0x250] sm:$0xff]
  %v2392 = vld [vmem:[%s1 + $0x258] sm:$0xff]
  %v2393 = vld [vmem:[%s1 + $0x260] sm:$0xff]
  %v2394 = vld [vmem:[%s1 + $0x268] sm:$0x1]
  %v2395 = vperm.slane %v2394, 0
  %v2397 = vsel %vm1355, %v2374, 0
  %v2400 = vsel %vm1355, %v2375, 0
  %v2403 = vsel %vm1355, %v2376, 0
  %v2406 = vsel %vm1355, %v2377, 0
  %v2409 = vsel %vm1355, %v2378, 0
  %v2412 = vsel %vm1355, %v2379, 0
  %v2415 = vsel %vm1355, %v2380, 0
  %v2418 = vsel %vm1355, %v2381, 0
  %2420 = vmatpush.msra.mxu0 0.0
  %2421 = vmatpush.msra.mxu0 0.0
  %2422 = vmatpush.msra.mxu0 0.0
  %2423 = vmatpush.msra.mxu0 0.0
  %2424 = vmatpush.msra.mxu0 %v2393
  %2425 = vmatpush.msra.mxu0 %v2392
  %2426 = vmatpush.msra.mxu0 %v2391
  %2427 = vmatpush.msra.mxu0 %v2390
  %2428 = vmatpush.msra.mxu0 %v2389
  %2429 = vmatpush.msra.mxu0 %v2388
  %2430 = vmatpush.msra.mxu0 %v2387
  %2431 = vmatpush.msra.mxu0 %v2386
  %2432 = vmatpush.msra.mxu0 %v2385
  %2433 = vmatpush.msra.mxu0 %v2384
  %2434 = vmatpush.msra.mxu0 %v2383
  %2435 = vmatpush.msra.mxu0 %v2382
  %2436 = vmatmul.f32.gmra.mxu0 %v2397
  %v2437 = vpop.f32.mrf.mxu0
  %v2438 = vadd.f32 %v2395, %v2437
  %2439 = vmatmul.f32.gmra.mxu0 %v2400
  %v2440 = vpop.f32.mrf.mxu0
  %v2441 = vadd.f32 %v2395, %v2440
  %2442 = vmatmul.f32.gmra.mxu0 %v2403
  %v2443 = vpop.f32.mrf.mxu0
  %v2444 = vadd.f32 %v2395, %v2443
  %2445 = vmatmul.f32.gmra.mxu0 %v2406
  %v2446 = vpop.f32.mrf.mxu0
  %v2447 = vadd.f32 %v2395, %v2446
  %2448 = vmatmul.f32.gmra.mxu0 %v2409
  %v2449 = vpop.f32.mrf.mxu0
  %v2450 = vadd.f32 %v2395, %v2449
  %2451 = vmatmul.f32.gmra.mxu0 %v2412
  %v2452 = vpop.f32.mrf.mxu0
  %v2453 = vadd.f32 %v2395, %v2452
  %2454 = vmatmul.f32.gmra.mxu0 %v2415
  %v2455 = vpop.f32.mrf.mxu0
  %v2456 = vadd.f32 %v2395, %v2455
  %2457 = vmatmul.f32.gmra.mxu0 %v2418
  %v2458 = vpop.f32.mrf.mxu0
  %v2459 = vadd.f32 %v2395, %v2458
  %2460 = vdwg.mxu0
  %2461 = vst.msk [vmem:[%s3] sm:$0xff] %vm258, %v1186
  %2462 = vst.msk [vmem:[%s3 + $0x8] sm:$0xff] %vm258, %v1214
  %2463 = vst.msk [vmem:[%s3 + $0x10] sm:$0xff] %vm258, %v1220
  %2464 = vst.msk [vmem:[%s3 + $0x18] sm:$0xff] %vm258, %v2438
  %2465 = vst.msk [vmem:[%s3 + $0x20] sm:$0xff] %vm258, %v2441
  %2466 = vst.msk [vmem:[%s3 + $0x28] sm:$0xff] %vm258, %v2444
  %2467 = vst.msk [vmem:[%s3 + $0x30] sm:$0xff] %vm258, %v2447
  %2468 = vst.msk [vmem:[%s3 + $0x38] sm:$0xff] %vm258, %v2450
  %2469 = vst.msk [vmem:[%s3 + $0x40] sm:$0xff] %vm258, %v2453
  %2470 = vst.msk [vmem:[%s3 + $0x48] sm:$0xff] %vm258, %v2456
  %2471 = vst.msk [vmem:[%s3 + $0x50] sm:$0xff] %vm258, %v2459
  // Predicated region
  $region14: #{_forward_impl.1} parent=0 // pred_check
    _
  $region15: #{_forward_impl.1} parent=0 // pred_check_branch
    %2473 = sbr.rel (0) target = $region17
  $region16: #{_forward_impl.1} parent=0 // pred_region
    _
  $region17: #{_forward_impl.1} parent=0 // pred_fallthru
    _
  // Predicated region
  $region18: #{_forward_impl.1} parent=0 // pred_check
    _
  $region19: #{_forward_impl.1} parent=0 // pred_check_branch
    %2475 = sbr.rel (0) target = $region21
  $region20: #{_forward_impl.1} parent=0 // pred_region
    _
  $region21: #{_forward_impl.1} parent=0 // pred_fallthru
    _

</llo_original>
